<compile_context>
chip_gen: v6e
topology: v6e:2x2x1
jax: 0.10.0
libtpu: 0.0.40
codegen_flags: <defaults>
</compile_context>

<pallas_src>
import functools
import math

import numpy as np
import jax
import jax.numpy as jnp
from jax.experimental import pallas as pl
from jax.experimental.pallas import tpu as pltpu


def _ceil_to(x, m):
    return -(-x // m) * m


def _reflect_nearest_index(n_padded, pad, n_up, up):
    """Original-axis indices realizing reflection_pad(upsample_nearest(x)) on one axis."""
    i = np.arange(n_padded) - pad                     # coords in upsampled space
    i = np.abs(i)                                     # reflect at the low edge
    i = np.where(i >= n_up, 2 * (n_up - 1) - i, i)    # reflect at the high edge
    return (i // up).astype(np.int32)                 # nearest-upsample source index


def _upsamp_conv_in_kernel(x_ref, w_ref, r_ref, p_ref, o_ref, pat_ref, *,
                           c_in, c_out, kh, kw, h_out, w_out, stride, eps,
                           row_chunk, rows_pad, hp, wp):
    """One batch element per grid step.

    x_ref  : (1, C_in, Hp, W)    rows already upsampled + reflection-padded,
                                 columns are ORIGINAL width W (compute dtype)
    w_ref  : (C_out, KKC_pad)    packed conv weight, tap order (j, i, c), plus a
                                 bias column and zero padding to a sublane multiple
    r_ref  : (W, Wp)             0/1 selection matrix: W-upsample + reflection pad
    p_ref  : (2, C_out, 1) f32   [gamma, beta]
    o_ref  : (1, C_out, H_out*W_out)   lane-dense output
    pat_ref: VMEM scratch (KKC_pad, row_chunk*W_out)  persistent im2col buffer
    """
    kkc = kh * kw * c_in
    kkc_pad, chunk_cols = pat_ref.shape
    hw = h_out * w_out

    # Init the padded im2col rows once per invocation: a ones row (folds the conv
    # bias into the matmul) followed by zeros.  Unconditional (safe under megacore
    # grid splitting) and tiny.
    pad_rows = kkc_pad - kkc
    row_ids = jax.lax.broadcasted_iota(jnp.int32, (pad_rows, chunk_cols), 0)
    pat_ref[kkc:, :] = jnp.where(row_ids == 0, 1.0, 0.0).astype(pat_ref.dtype)

    w_pack = w_ref[...]                       # (C_out, kkc_pad)
    gamma = p_ref[0]                          # (C_out, 1) f32
    beta = p_ref[1]

    n_chunks = -(-h_out // row_chunk)
    ssum = jnp.zeros((c_out, 1), jnp.float32)
    ssq = jnp.zeros((c_out, 1), jnp.float32)

    # TODO(synk): for very large H_out convert this static chunk loop to a spatial
    # grid axis (halo-aware index_map) or a lax.fori_loop to bound trace size.
    for t in range(n_chunks):
        p0 = t * row_chunk
        tr = min(row_chunk, h_out - p0)
        cols = tr * w_out
        # Fixed-size row window (sublane-aligned), clamped to stay inside [0, Hp).
        r0 = min(p0 * stride, hp - rows_pad)
        delta = p0 * stride - r0

        xc = x_ref[0, :, r0:r0 + rows_pad, :].reshape(c_in * rows_pad, -1)

        # W-direction nearest-upsample + reflection pad: ONE selection matmul per
        # chunk (exact: r is 0/1).  Tap shifts below are cheap lane/sublane slices.
        xw = jnp.dot(xc, r_ref[...], preferred_element_type=jnp.float32)
        xw = xw.astype(pat_ref.dtype).reshape(c_in, rows_pad, wp)

        # im2col into the persistent scratch, tap order (j, i, c) matching w_pack.
        for j in range(kw):
            for i in range(kh):
                a = delta + i
                if stride == 1:
                    sl = xw[:, a:a + tr, j:j + w_out]
                else:
                    sl = xw[:, a:a + (tr - 1) * stride + 1:stride,
                            j:j + (w_out - 1) * stride + 1:stride]
                s0 = (j * kh + i) * c_in
                pat_ref[s0:s0 + c_in, :cols] = sl.reshape(c_in, cols)

        # Fused conv (+bias via the ones row) matmul, f32 accumulation on the MXU.
        acc = jnp.dot(w_pack, pat_ref[:, :cols], preferred_element_type=jnp.float32)

        # Streamed InstanceNorm statistics from the f32 accumulator (pre-cast).
        ssum = ssum + jnp.sum(acc, axis=1, keepdims=True)
        ssq = ssq + jnp.sum(acc * acc, axis=1, keepdims=True)

        c0 = p0 * w_out
        o_ref[0, :, c0:c0 + cols] = acc.astype(o_ref.dtype)

    # InstanceNorm2d(affine=True): biased variance, per (batch, channel), f32 stats.
    inv_hw = jnp.float32(1.0 / hw)
    mean = ssum * inv_hw
    var = jnp.maximum(ssq * inv_hw - mean * mean, 0.0)
    scale = gamma * jax.lax.rsqrt(var + jnp.float32(eps))
    shift = beta - mean * scale

    # Second (chunked) pass: normalize the output in place; bounds the f32 working set.
    for t in range(n_chunks):
        p0 = t * row_chunk
        tr = min(row_chunk, h_out - p0)
        cols = tr * w_out
        c0 = p0 * w_out
        blk = o_ref[0, :, c0:c0 + cols].astype(jnp.float32)
        o_ref[0, :, c0:c0 + cols] = (blk * scale + shift).astype(o_ref.dtype)


def upsamp_conv_layer(x, weight, bias, gamma, beta, *, kernel, stride,
                      upsample=None, eps=1e-5, row_chunk=None,
                      compute_dtype=jnp.bfloat16):
    """JAX/Pallas equivalent of UpSampConvLayer.forward.  x: (N, C_in, H, W)."""
    N, C_in, H, W = x.shape
    C_out = weight.shape[0]
    u = int(upsample) if upsample else 1
    pad = kernel // 2
    H_up, W_up = H * u, W * u
    Hp, Wp = H_up + 2 * pad, W_up + 2 * pad
    H_out = (Hp - kernel) // stride + 1
    W_out = (Wp - kernel) // stride + 1
    hw = H_out * W_out
    kkc = kernel * kernel * C_in
    kkc_pad = _ceil_to(kkc + 1, 8)            # + ones row for the folded bias

    mm_dtype = jnp.dtype(compute_dtype) if compute_dtype is not None else jnp.dtype(x.dtype)
    out_dtype = x.dtype

    # H-direction nearest-upsample + reflection pad: one cheap row gather (the much
    # larger W-direction expansion is fused into the kernel).  Cast to the compute
    # dtype here so the HBM->VMEM DMA moves bf16 bytes by default.
    row_src = _reflect_nearest_index(Hp, pad, H_up, u)
    x_h = jnp.take(x, jnp.asarray(row_src), axis=2).astype(mm_dtype)   # (N,C_in,Hp,W)

    # W-direction: single 0/1 selection matrix (upsample + reflect); exact in bf16.
    col_src = _reflect_nearest_index(Wp, pad, W_up, u)                 # (Wp,) -> [0,W)
    r_np = (col_src[None, :] == np.arange(W)[:, None]).astype(np.float32)   # (W, Wp)
    r_mat = jnp.asarray(r_np, dtype=mm_dtype)

    # Pack weight (OIHW) -> (C_out, KW, KH, C_in) -> (C_out, KKC), tap order (j,i,c)
    # matching the im2col build; append the bias column and zero-pad to kkc_pad.
    w_flat = jnp.transpose(weight, (0, 3, 2, 1)).reshape(C_out, kkc)
    w_aug = jnp.concatenate(
        [w_flat, bias.reshape(C_out, 1),
         jnp.zeros((C_out, kkc_pad - kkc - 1), w_flat.dtype)], axis=1).astype(mm_dtype)

    params = jnp.stack([gamma, beta]).astype(jnp.float32).reshape(2, C_out, 1)

    # --- chunk sizing (generation-aware VMEM budget) -------------------------
    try:
        info = pltpu.get_tpu_info()
        vmem_cap = int(getattr(info, "vmem_capacity_bytes", 64 * 1024 * 1024))
    except Exception:
        vmem_cap = 64 * 1024 * 1024
    vmem_limit = int(min(0.75 * vmem_cap, 100 * 1024 * 1024))

    mm_sz = mm_dtype.itemsize
    out_sz = jnp.dtype(out_dtype).itemsize

    def _vmem_estimate(rc):
        rows_need = (rc - 1) * stride + kernel
        rpad = min(Hp, _ceil_to(rows_need, 8))
        cols = rc * W_out
        resident = (2 * C_in * Hp * W * mm_sz              # input block, double-buffered
                    + 2 * C_out * hw * out_sz              # output block, double-buffered
                    + kkc_pad * cols * mm_sz)              # persistent im2col scratch
        per_chunk = (C_in * rpad * Wp * (4 + mm_sz)        # selection result + cast
                     + 2 * C_out * cols * 4)               # f32 acc / normalize block
        return resident + per_chunk

    if row_chunk is None:
        # Large, 128-lane-aligned output chunks: unmasked vst, amortized per-matmul cost.
        target_lanes = 32768
        row_chunk = max(1, min(H_out, target_lanes // max(1, W_out)))
        align = 128 // math.gcd(W_out, 128)
        if row_chunk >= align:
            row_chunk = (row_chunk // align) * align
    row_chunk = int(max(1, min(row_chunk, H_out)))
    while row_chunk > 1 and _vmem_estimate(row_chunk) > 0.8 * vmem_limit:
        row_chunk = max(1, row_chunk // 2)

    rows_need = (row_chunk - 1) * stride + kernel
    rows_pad = min(Hp, _ceil_to(rows_need, 8))               # sublane multiple
    n_chunks = -(-H_out // row_chunk)

    kern = functools.partial(
        _upsamp_conv_in_kernel, c_in=C_in, c_out=C_out, kh=kernel, kw=kernel,
        h_out=H_out, w_out=W_out, stride=stride, eps=eps,
        row_chunk=row_chunk, rows_pad=rows_pad, hp=Hp, wp=Wp)

    cost = pl.CostEstimate(
        flops=int(N * (2 * C_out * kkc_pad * hw
                       + 2 * n_chunks * C_in * rows_pad * W * Wp)),
        transcendentals=int(N * C_out),
        bytes_accessed=int(x_h.size * x_h.dtype.itemsize
                           + N * (w_aug.size * w_aug.dtype.itemsize
                                  + r_mat.size * r_mat.dtype.itemsize)
                           + 2 * N * C_out * hw * out_sz))

    out_flat = pl.pallas_call(
        kern,
        out_shape=jax.ShapeDtypeStruct((N, C_out, hw), out_dtype),
        grid=(N,),
        in_specs=[
            pl.BlockSpec((1, C_in, Hp, W), lambda b: (b, 0, 0, 0)),
            pl.BlockSpec((C_out, kkc_pad), lambda b: (0, 0)),
            pl.BlockSpec((W, Wp), lambda b: (0, 0)),
            pl.BlockSpec((2, C_out, 1), lambda b: (0, 0, 0)),
        ],
        out_specs=pl.BlockSpec((1, C_out, hw), lambda b: (b, 0, 0)),
        scratch_shapes=[pltpu.VMEM((kkc_pad, row_chunk * W_out), mm_dtype)],
        compiler_params=pltpu.CompilerParams(
            dimension_semantics=("parallel",),
            vmem_limit_bytes=vmem_limit),
        cost_estimate=cost,
    )(x_h, w_aug, r_mat, params)

    return out_flat.reshape(N, C_out, H_out, W_out)


def _reference(x, weight, bias, gamma, beta, *, kernel, stride, upsample, eps=1e-5):
    """Pure-JAX reference mirroring the PyTorch forward, for validation."""
    if upsample:
        x = jnp.repeat(jnp.repeat(x, upsample, axis=2), upsample, axis=3)
    pad = kernel // 2
    xp = jnp.pad(x, ((0, 0), (0, 0), (pad, pad), (pad, pad)), mode="reflect")
    out = jax.lax.conv_general_dilated(
        xp, weight, window_strides=(stride, stride), padding="VALID",
        dimension_numbers=("NCHW", "OIHW", "NCHW"))
    out = out + bias[None, :, None, None]
    mean = jnp.mean(out, axis=(2, 3), keepdims=True)
    var = jnp.mean((out - mean) ** 2, axis=(2, 3), keepdims=True)
    normed = (out - mean) * jax.lax.rsqrt(var + eps)
    return normed * gamma[None, :, None, None] + beta[None, :, None, None]


if __name__ == "__main__":
    B, C_in, H, W = 2, 4, 16, 16
    C_out, kernel, stride, upsample = 8, 3, 1, 2

    key = jax.random.PRNGKey(0)
    k1, k2, k3, k4, k5 = jax.random.split(key, 5)
    x = jax.random.normal(k1, (B, C_in, H, W), jnp.float32)
    # Deterministic synthetic parameters (shapes from Conv2d / InstanceNorm2d).
    weight = jax.random.normal(k2, (C_out, C_in, kernel, kernel), jnp.float32) * 0.1
    bias = jax.random.normal(k3, (C_out,), jnp.float32) * 0.1
    gamma = 1.0 + jax.random.normal(k4, (C_out,), jnp.float32) * 0.1
    beta = jax.random.normal(k5, (C_out,), jnp.float32) * 0.1

    ref = _reference(x, weight, bias, gamma, beta,
                     kernel=kernel, stride=stride, upsample=upsample)

    # f32 compute path: tight validation (row_chunk=16 -> two chunks, exercises the
    # chunked im2col / streamed-stats / second normalize pass).
    out_f32 = upsamp_conv_layer(x, weight, bias, gamma, beta,
                                kernel=kernel, stride=stride, upsample=upsample,
                                row_chunk=16, compute_dtype=jnp.float32)
    out_f32 = jax.block_until_ready(out_f32)
    assert out_f32.shape == (B, C_out, H * upsample, W * upsample), out_f32.shape
    assert jnp.allclose(out_f32, ref, rtol=1e-4, atol=1e-4), \
        float(jnp.max(jnp.abs(out_f32 - ref)))

    # Default bf16 compute path (perf configuration): looser tolerance.
    out_bf = upsamp_conv_layer(x, weight, bias, gamma, beta,
                               kernel=kernel, stride=stride, upsample=upsample,
                               row_chunk=16)
    out_bf = jax.block_until_ready(out_bf)
    assert out_bf.shape == (B, C_out, H * upsample, W * upsample), out_bf.shape
    assert jnp.allclose(out_bf, ref, rtol=5e-2, atol=5e-2), \
        float(jnp.max(jnp.abs(out_bf - ref)))

    print("KERNEL_OK")
</pallas_src>

<mosaic_0001>
module attributes {stable_mosaic.version = 11 : i64} {
  func.func @_upsamp_conv_in_kernel(%arg0: i32, %arg1: memref<1x4x34x16xf32, #tpu.memory_space<vmem>>, %arg2: memref<8x40xf32, #tpu.memory_space<vmem>>, %arg3: memref<16x34xf32, #tpu.memory_space<vmem>>, %arg4: memref<2x8x1xf32, #tpu.memory_space<vmem>>, %arg5: memref<1x8x1024xf32, #tpu.memory_space<vmem>>, %arg6: memref<40x512xf32, #tpu.memory_space<vmem>>) attributes {dimension_semantics = [#tpu.dimension_semantics<parallel>], iteration_bounds = array<i64: 2>, scalar_prefetch = 0 : i64, scratch_operands = 1 : i64, tpu.core_type = #tpu.core_type<tc>, window_params = [{transform_indices = @transform_0, window_bounds = array<i64: 1, 4, 34, 16>}, {pipeline_mode = #tpu.pipeline_mode<synchronous>, transform_indices = @transform_1, window_bounds = array<i64: 8, 40>}, {pipeline_mode = #tpu.pipeline_mode<synchronous>, transform_indices = @transform_2, window_bounds = array<i64: 16, 34>}, {pipeline_mode = #tpu.pipeline_mode<synchronous>, transform_indices = @transform_3, window_bounds = array<i64: 2, 8, 1>}, {transform_indices = @transform_4, window_bounds = array<i64: 1, 8, 1024>}]} {
    %0 = tpu.iota {dimensions = array<i32: 0>} : vector<4x512xi32>
    %c0_i32 = arith.constant 0 : i32
    %1 = vector.broadcast %c0_i32 : i32 to vector<4x512xi32>
    %2 = arith.cmpi eq, %0, %1 : vector<4x512xi32>
    %cst = arith.constant 1.000000e+00 : f32
    %cst_0 = arith.constant 0.000000e+00 : f32
    %3 = vector.broadcast %cst : f32 to vector<4x512xf32>
    %4 = vector.broadcast %cst_0 : f32 to vector<4x512xf32>
    %5 = arith.select %2, %3, %4 : vector<4x512xi1>, vector<4x512xf32>
    %c36 = arith.constant 36 : index
    %c0 = arith.constant 0 : index
    %6 = vector.load %arg6[%c36, %c0] : memref<40x512xf32, #tpu.memory_space<vmem>>, vector<4x512xf32>
    tpu.vector_store %arg6[%c36, %c0], %5 {strides = array<i32>} : memref<40x512xf32, #tpu.memory_space<vmem>>, vector<4x512xf32>,
    %c0_1 = arith.constant 0 : index
    %c0_2 = arith.constant 0 : index
    %7 = vector.load %arg2[%c0_1, %c0_2] : memref<8x40xf32, #tpu.memory_space<vmem>>, vector<8x40xf32>
    %c0_3 = arith.constant 0 : index
    %c0_4 = arith.constant 0 : index
    %c0_5 = arith.constant 0 : index
    %8 = vector.load %arg4[%c0_3, %c0_4, %c0_5] : memref<2x8x1xf32, #tpu.memory_space<vmem>>, vector<1x8x1xf32>
    %9 = vector.shape_cast %8 : vector<1x8x1xf32> to vector<8x1xf32>
    %c1 = arith.constant 1 : index
    %c0_6 = arith.constant 0 : index
    %c0_7 = arith.constant 0 : index
    %10 = vector.load %arg4[%c1, %c0_6, %c0_7] : memref<2x8x1xf32, #tpu.memory_space<vmem>>, vector<1x8x1xf32>
    %11 = vector.shape_cast %10 : vector<1x8x1xf32> to vector<8x1xf32>
    %cst_8 = arith.constant 0.000000e+00 : f32
    %12 = vector.broadcast %cst_8 : f32 to vector<8x1xf32>
    %cst_9 = arith.constant 0.000000e+00 : f32
    %13 = vector.broadcast %cst_9 : f32 to vector<8x1xf32>
    %c0_10 = arith.constant 0 : index
    %c0_11 = arith.constant 0 : index
    %c0_12 = arith.constant 0 : index
    %c0_13 = arith.constant 0 : index
    %14 = vector.load %arg1[%c0_10, %c0_11, %c0_12, %c0_13] : memref<1x4x34x16xf32, #tpu.memory_space<vmem>>, vector<1x4x24x16xf32>
    %15 = vector.shape_cast %14 : vector<1x4x24x16xf32> to vector<4x24x16xf32>
    %16 = vector.shape_cast %15 : vector<4x24x16xf32> to vector<96x16xf32>
    %c0_14 = arith.constant 0 : index
    %c0_15 = arith.constant 0 : index
    %17 = vector.load %arg3[%c0_14, %c0_15] : memref<16x34xf32, #tpu.memory_space<vmem>>, vector<16x34xf32>
    %cst_16 = arith.constant dense<0.000000e+00> : vector<96x34xf32>
    %18 = tpu.matmul %16, %17, %cst_16 {dimension_numbers = #tpu.dot_dimension_numbers<[1], [0], [0], [1], [0, 0, 1, 1], [], []>} : vector<96x16xf32>, vector<16x34xf32>, vector<96x34xf32> -> vector<96x34xf32>
    %19 = vector.shape_cast %18 : vector<96x34xf32> to vector<4x24x34xf32>
    %20 = vector.extract_strided_slice %19 {offsets = [0, 0, 0], sizes = [4, 16, 32], strides = [1, 1, 1]} : vector<4x24x34xf32> to vector<4x16x32xf32>
    %21 = vector.shape_cast %20 : vector<4x16x32xf32> to vector<4x512xf32>
    %c0_17 = arith.constant 0 : index
    %c0_18 = arith.constant 0 : index
    %22 = vector.load %arg6[%c0_17, %c0_18] : memref<40x512xf32, #tpu.memory_space<vmem>>, vector<4x512xf32>
    tpu.vector_store %arg6[%c0_17, %c0_18], %21 {strides = array<i32>} : memref<40x512xf32, #tpu.memory_space<vmem>>, vector<4x512xf32>,
    %23 = vector.extract_strided_slice %19 {offsets = [0, 1, 0], sizes = [4, 16, 32], strides = [1, 1, 1]} : vector<4x24x34xf32> to vector<4x16x32xf32>
    %24 = vector.shape_cast %23 : vector<4x16x32xf32> to vector<4x512xf32>
    %c4 = arith.constant 4 : index
    %c0_19 = arith.constant 0 : index
    %25 = vector.load %arg6[%c4, %c0_19] : memref<40x512xf32, #tpu.memory_space<vmem>>, vector<4x512xf32>
    tpu.vector_store %arg6[%c4, %c0_19], %24 {strides = array<i32>} : memref<40x512xf32, #tpu.memory_space<vmem>>, vector<4x512xf32>,
    %26 = vector.extract_strided_slice %19 {offsets = [0, 2, 0], sizes = [4, 16, 32], strides = [1, 1, 1]} : vector<4x24x34xf32> to vector<4x16x32xf32>
    %27 = vector.shape_cast %26 : vector<4x16x32xf32> to vector<4x512xf32>
    %c8 = arith.constant 8 : index
    %c0_20 = arith.constant 0 : index
    %28 = vector.load %arg6[%c8, %c0_20] : memref<40x512xf32, #tpu.memory_space<vmem>>, vector<4x512xf32>
    tpu.vector_store %arg6[%c8, %c0_20], %27 {strides = array<i32>} : memref<40x512xf32, #tpu.memory_space<vmem>>, vector<4x512xf32>,
    %29 = vector.extract_strided_slice %19 {offsets = [0, 0, 1], sizes = [4, 16, 32], strides = [1, 1, 1]} : vector<4x24x34xf32> to vector<4x16x32xf32>
    %30 = vector.shape_cast %29 : vector<4x16x32xf32> to vector<4x512xf32>
    %c12 = arith.constant 12 : index
    %c0_21 = arith.constant 0 : index
    %31 = vector.load %arg6[%c12, %c0_21] : memref<40x512xf32, #tpu.memory_space<vmem>>, vector<4x512xf32>
    tpu.vector_store %arg6[%c12, %c0_21], %30 {strides = array<i32>} : memref<40x512xf32, #tpu.memory_space<vmem>>, vector<4x512xf32>,
    %32 = vector.extract_strided_slice %19 {offsets = [0, 1, 1], sizes = [4, 16, 32], strides = [1, 1, 1]} : vector<4x24x34xf32> to vector<4x16x32xf32>
    %33 = vector.shape_cast %32 : vector<4x16x32xf32> to vector<4x512xf32>
    %c16 = arith.constant 16 : index
    %c0_22 = arith.constant 0 : index
    %34 = vector.load %arg6[%c16, %c0_22] : memref<40x512xf32, #tpu.memory_space<vmem>>, vector<4x512xf32>
    tpu.vector_store %arg6[%c16, %c0_22], %33 {strides = array<i32>} : memref<40x512xf32, #tpu.memory_space<vmem>>, vector<4x512xf32>,
    %35 = vector.extract_strided_slice %19 {offsets = [0, 2, 1], sizes = [4, 16, 32], strides = [1, 1, 1]} : vector<4x24x34xf32> to vector<4x16x32xf32>
    %36 = vector.shape_cast %35 : vector<4x16x32xf32> to vector<4x512xf32>
    %c20 = arith.constant 20 : index
    %c0_23 = arith.constant 0 : index
    %37 = vector.load %arg6[%c20, %c0_23] : memref<40x512xf32, #tpu.memory_space<vmem>>, vector<4x512xf32>
    tpu.vector_store %arg6[%c20, %c0_23], %36 {strides = array<i32>} : memref<40x512xf32, #tpu.memory_space<vmem>>, vector<4x512xf32>,
    %38 = vector.extract_strided_slice %19 {offsets = [0, 0, 2], sizes = [4, 16, 32], strides = [1, 1, 1]} : vector<4x24x34xf32> to vector<4x16x32xf32>
    %39 = vector.shape_cast %38 : vector<4x16x32xf32> to vector<4x512xf32>
    %c24 = arith.constant 24 : index
    %c0_24 = arith.constant 0 : index
    %40 = vector.load %arg6[%c24, %c0_24] : memref<40x512xf32, #tpu.memory_space<vmem>>, vector<4x512xf32>
    tpu.vector_store %arg6[%c24, %c0_24], %39 {strides = array<i32>} : memref<40x512xf32, #tpu.memory_space<vmem>>, vector<4x512xf32>,
    %41 = vector.extract_strided_slice %19 {offsets = [0, 1, 2], sizes = [4, 16, 32], strides = [1, 1, 1]} : vector<4x24x34xf32> to vector<4x16x32xf32>
    %42 = vector.shape_cast %41 : vector<4x16x32xf32> to vector<4x512xf32>
    %c28 = arith.constant 28 : index
    %c0_25 = arith.constant 0 : index
    %43 = vector.load %arg6[%c28, %c0_25] : memref<40x512xf32, #tpu.memory_space<vmem>>, vector<4x512xf32>
    tpu.vector_store %arg6[%c28, %c0_25], %42 {strides = array<i32>} : memref<40x512xf32, #tpu.memory_space<vmem>>, vector<4x512xf32>,
    %44 = vector.extract_strided_slice %19 {offsets = [0, 2, 2], sizes = [4, 16, 32], strides = [1, 1, 1]} : vector<4x24x34xf32> to vector<4x16x32xf32>
    %45 = vector.shape_cast %44 : vector<4x16x32xf32> to vector<4x512xf32>
    %c32 = arith.constant 32 : index
    %c0_26 = arith.constant 0 : index
    %46 = vector.load %arg6[%c32, %c0_26] : memref<40x512xf32, #tpu.memory_space<vmem>>, vector<4x512xf32>
    tpu.vector_store %arg6[%c32, %c0_26], %45 {strides = array<i32>} : memref<40x512xf32, #tpu.memory_space<vmem>>, vector<4x512xf32>,
    %c0_27 = arith.constant 0 : index
    %c0_28 = arith.constant 0 : index
    %47 = vector.load %arg6[%c0_27, %c0_28] : memref<40x512xf32, #tpu.memory_space<vmem>>, vector<40x512xf32>
    %cst_29 = arith.constant dense<0.000000e+00> : vector<8x512xf32>
    %48 = tpu.matmul %7, %47, %cst_29 {dimension_numbers = #tpu.dot_dimension_numbers<[1], [0], [0], [1], [0, 0, 1, 1], [], []>} : vector<8x40xf32>, vector<40x512xf32>, vector<8x512xf32> -> vector<8x512xf32>
    %cst_30 = arith.constant dense<0.000000e+00> : vector<8xf32>
    %49 = vector.multi_reduction <add>, %48, %cst_30 [1] : vector<8x512xf32> to vector<8xf32>
    %50 = vector.shape_cast %49 : vector<8xf32> to vector<8x1xf32>
    %51 = arith.addf %12, %50 : vector<8x1xf32>
    %52 = arith.mulf %48, %48 : vector<8x512xf32>
    %cst_31 = arith.constant dense<0.000000e+00> : vector<8xf32>
    %53 = vector.multi_reduction <add>, %52, %cst_31 [1] : vector<8x512xf32> to vector<8xf32>
    %54 = vector.shape_cast %53 : vector<8xf32> to vector<8x1xf32>
    %55 = arith.addf %13, %54 : vector<8x1xf32>
    %c0_32 = arith.constant 0 : index
    %c0_33 = arith.constant 0 : index
    %c0_34 = arith.constant 0 : index
    %56 = vector.load %arg5[%c0_32, %c0_33, %c0_34] : memref<1x8x1024xf32, #tpu.memory_space<vmem>>, vector<1x8x512xf32>
    %57 = vector.shape_cast %56 : vector<1x8x512xf32> to vector<8x512xf32>
    %58 = vector.shape_cast %48 : vector<8x512xf32> to vector<1x8x512xf32>
    tpu.vector_store %arg5[%c0_32, %c0_33, %c0_34], %58 {strides = array<i32>} : memref<1x8x1024xf32, #tpu.memory_space<vmem>>, vector<1x8x512xf32>,
    %c0_35 = arith.constant 0 : index
    %c0_36 = arith.constant 0 : index
    %c10 = arith.constant 10 : index
    %c0_37 = arith.constant 0 : index
    %59 = vector.load %arg1[%c0_35, %c0_36, %c10, %c0_37] : memref<1x4x34x16xf32, #tpu.memory_space<vmem>>, vector<1x4x24x16xf32>
    %60 = vector.shape_cast %59 : vector<1x4x24x16xf32> to vector<4x24x16xf32>
    %61 = vector.shape_cast %60 : vector<4x24x16xf32> to vector<96x16xf32>
    %c0_38 = arith.constant 0 : index
    %c0_39 = arith.constant 0 : index
    %62 = vector.load %arg3[%c0_38, %c0_39] : memref<16x34xf32, #tpu.memory_space<vmem>>, vector<16x34xf32>
    %cst_40 = arith.constant dense<0.000000e+00> : vector<96x34xf32>
    %63 = tpu.matmul %61, %62, %cst_40 {dimension_numbers = #tpu.dot_dimension_numbers<[1], [0], [0], [1], [0, 0, 1, 1], [], []>} : vector<96x16xf32>, vector<16x34xf32>, vector<96x34xf32> -> vector<96x34xf32>
    %64 = vector.shape_cast %63 : vector<96x34xf32> to vector<4x24x34xf32>
    %65 = vector.extract_strided_slice %64 {offsets = [0, 6, 0], sizes = [4, 16, 32], strides = [1, 1, 1]} : vector<4x24x34xf32> to vector<4x16x32xf32>
    %66 = vector.shape_cast %65 : vector<4x16x32xf32> to vector<4x512xf32>
    %c0_41 = arith.constant 0 : index
    %c0_42 = arith.constant 0 : index
    %67 = vector.load %arg6[%c0_41, %c0_42] : memref<40x512xf32, #tpu.memory_space<vmem>>, vector<4x512xf32>
    tpu.vector_store %arg6[%c0_41, %c0_42], %66 {strides = array<i32>} : memref<40x512xf32, #tpu.memory_space<vmem>>, vector<4x512xf32>,
    %68 = vector.extract_strided_slice %64 {offsets = [0, 7, 0], sizes = [4, 16, 32], strides = [1, 1, 1]} : vector<4x24x34xf32> to vector<4x16x32xf32>
    %69 = vector.shape_cast %68 : vector<4x16x32xf32> to vector<4x512xf32>
    %c4_43 = arith.constant 4 : index
    %c0_44 = arith.constant 0 : index
    %70 = vector.load %arg6[%c4_43, %c0_44] : memref<40x512xf32, #tpu.memory_space<vmem>>, vector<4x512xf32>
    tpu.vector_store %arg6[%c4_43, %c0_44], %69 {strides = array<i32>} : memref<40x512xf32, #tpu.memory_space<vmem>>, vector<4x512xf32>,
    %71 = vector.extract_strided_slice %64 {offsets = [0, 8, 0], sizes = [4, 16, 32], strides = [1, 1, 1]} : vector<4x24x34xf32> to vector<4x16x32xf32>
    %72 = vector.shape_cast %71 : vector<4x16x32xf32> to vector<4x512xf32>
    %c8_45 = arith.constant 8 : index
    %c0_46 = arith.constant 0 : index
    %73 = vector.load %arg6[%c8_45, %c0_46] : memref<40x512xf32, #tpu.memory_space<vmem>>, vector<4x512xf32>
    tpu.vector_store %arg6[%c8_45, %c0_46], %72 {strides = array<i32>} : memref<40x512xf32, #tpu.memory_space<vmem>>, vector<4x512xf32>,
    %74 = vector.extract_strided_slice %64 {offsets = [0, 6, 1], sizes = [4, 16, 32], strides = [1, 1, 1]} : vector<4x24x34xf32> to vector<4x16x32xf32>
    %75 = vector.shape_cast %74 : vector<4x16x32xf32> to vector<4x512xf32>
    %c12_47 = arith.constant 12 : index
    %c0_48 = arith.constant 0 : index
    %76 = vector.load %arg6[%c12_47, %c0_48] : memref<40x512xf32, #tpu.memory_space<vmem>>, vector<4x512xf32>
    tpu.vector_store %arg6[%c12_47, %c0_48], %75 {strides = array<i32>} : memref<40x512xf32, #tpu.memory_space<vmem>>, vector<4x512xf32>,
    %77 = vector.extract_strided_slice %64 {offsets = [0, 7, 1], sizes = [4, 16, 32], strides = [1, 1, 1]} : vector<4x24x34xf32> to vector<4x16x32xf32>
    %78 = vector.shape_cast %77 : vector<4x16x32xf32> to vector<4x512xf32>
    %c16_49 = arith.constant 16 : index
    %c0_50 = arith.constant 0 : index
    %79 = vector.load %arg6[%c16_49, %c0_50] : memref<40x512xf32, #tpu.memory_space<vmem>>, vector<4x512xf32>
    tpu.vector_store %arg6[%c16_49, %c0_50], %78 {strides = array<i32>} : memref<40x512xf32, #tpu.memory_space<vmem>>, vector<4x512xf32>,
    %80 = vector.extract_strided_slice %64 {offsets = [0, 8, 1], sizes = [4, 16, 32], strides = [1, 1, 1]} : vector<4x24x34xf32> to vector<4x16x32xf32>
    %81 = vector.shape_cast %80 : vector<4x16x32xf32> to vector<4x512xf32>
    %c20_51 = arith.constant 20 : index
    %c0_52 = arith.constant 0 : index
    %82 = vector.load %arg6[%c20_51, %c0_52] : memref<40x512xf32, #tpu.memory_space<vmem>>, vector<4x512xf32>
    tpu.vector_store %arg6[%c20_51, %c0_52], %81 {strides = array<i32>} : memref<40x512xf32, #tpu.memory_space<vmem>>, vector<4x512xf32>,
    %83 = vector.extract_strided_slice %64 {offsets = [0, 6, 2], sizes = [4, 16, 32], strides = [1, 1, 1]} : vector<4x24x34xf32> to vector<4x16x32xf32>
    %84 = vector.shape_cast %83 : vector<4x16x32xf32> to vector<4x512xf32>
    %c24_53 = arith.constant 24 : index
    %c0_54 = arith.constant 0 : index
    %85 = vector.load %arg6[%c24_53, %c0_54] : memref<40x512xf32, #tpu.memory_space<vmem>>, vector<4x512xf32>
    tpu.vector_store %arg6[%c24_53, %c0_54], %84 {strides = array<i32>} : memref<40x512xf32, #tpu.memory_space<vmem>>, vector<4x512xf32>,
    %86 = vector.extract_strided_slice %64 {offsets = [0, 7, 2], sizes = [4, 16, 32], strides = [1, 1, 1]} : vector<4x24x34xf32> to vector<4x16x32xf32>
    %87 = vector.shape_cast %86 : vector<4x16x32xf32> to vector<4x512xf32>
    %c28_55 = arith.constant 28 : index
    %c0_56 = arith.constant 0 : index
    %88 = vector.load %arg6[%c28_55, %c0_56] : memref<40x512xf32, #tpu.memory_space<vmem>>, vector<4x512xf32>
    tpu.vector_store %arg6[%c28_55, %c0_56], %87 {strides = array<i32>} : memref<40x512xf32, #tpu.memory_space<vmem>>, vector<4x512xf32>,
    %89 = vector.extract_strided_slice %64 {offsets = [0, 8, 2], sizes = [4, 16, 32], strides = [1, 1, 1]} : vector<4x24x34xf32> to vector<4x16x32xf32>
    %90 = vector.shape_cast %89 : vector<4x16x32xf32> to vector<4x512xf32>
    %c32_57 = arith.constant 32 : index
    %c0_58 = arith.constant 0 : index
    %91 = vector.load %arg6[%c32_57, %c0_58] : memref<40x512xf32, #tpu.memory_space<vmem>>, vector<4x512xf32>
    tpu.vector_store %arg6[%c32_57, %c0_58], %90 {strides = array<i32>} : memref<40x512xf32, #tpu.memory_space<vmem>>, vector<4x512xf32>,
    %c0_59 = arith.constant 0 : index
    %c0_60 = arith.constant 0 : index
    %92 = vector.load %arg6[%c0_59, %c0_60] : memref<40x512xf32, #tpu.memory_space<vmem>>, vector<40x512xf32>
    %cst_61 = arith.constant dense<0.000000e+00> : vector<8x512xf32>
    %93 = tpu.matmul %7, %92, %cst_61 {dimension_numbers = #tpu.dot_dimension_numbers<[1], [0], [0], [1], [0, 0, 1, 1], [], []>} : vector<8x40xf32>, vector<40x512xf32>, vector<8x512xf32> -> vector<8x512xf32>
    %cst_62 = arith.constant dense<0.000000e+00> : vector<8xf32>
    %94 = vector.multi_reduction <add>, %93, %cst_62 [1] : vector<8x512xf32> to vector<8xf32>
    %95 = vector.shape_cast %94 : vector<8xf32> to vector<8x1xf32>
    %96 = arith.addf %51, %95 : vector<8x1xf32>
    %97 = arith.mulf %93, %93 : vector<8x512xf32>
    %cst_63 = arith.constant dense<0.000000e+00> : vector<8xf32>
    %98 = vector.multi_reduction <add>, %97, %cst_63 [1] : vector<8x512xf32> to vector<8xf32>
    %99 = vector.shape_cast %98 : vector<8xf32> to vector<8x1xf32>
    %100 = arith.addf %55, %99 : vector<8x1xf32>
    %c0_64 = arith.constant 0 : index
    %c0_65 = arith.constant 0 : index
    %c512 = arith.constant 512 : index
    %101 = vector.load %arg5[%c0_64, %c0_65, %c512] : memref<1x8x1024xf32, #tpu.memory_space<vmem>>, vector<1x8x512xf32>
    %102 = vector.shape_cast %101 : vector<1x8x512xf32> to vector<8x512xf32>
    %103 = vector.shape_cast %93 : vector<8x512xf32> to vector<1x8x512xf32>
    tpu.vector_store %arg5[%c0_64, %c0_65, %c512], %103 {strides = array<i32>} : memref<1x8x1024xf32, #tpu.memory_space<vmem>>, vector<1x8x512xf32>,
    %cst_66 = arith.constant 9.765625E-4 : f32
    %104 = vector.broadcast %cst_66 : f32 to vector<8x1xf32>
    %105 = arith.mulf %96, %104 : vector<8x1xf32>
    %cst_67 = arith.constant 9.765625E-4 : f32
    %106 = vector.broadcast %cst_67 : f32 to vector<8x1xf32>
    %107 = arith.mulf %100, %106 : vector<8x1xf32>
    %108 = arith.mulf %105, %105 : vector<8x1xf32>
    %109 = arith.subf %107, %108 : vector<8x1xf32>
    %cst_68 = arith.constant 0.000000e+00 : f32
    %110 = vector.broadcast %cst_68 : f32 to vector<8x1xf32>
    %111 = arith.maximumf %109, %110 : vector<8x1xf32>
    %cst_69 = arith.constant 9.99999974E-6 : f32
    %112 = vector.broadcast %cst_69 : f32 to vector<8x1xf32>
    %113 = arith.addf %111, %112 : vector<8x1xf32>
    %114 = math.rsqrt %113 : vector<8x1xf32>
    %115 = arith.mulf %9, %114 : vector<8x1xf32>
    %116 = arith.mulf %105, %115 : vector<8x1xf32>
    %117 = arith.subf %11, %116 : vector<8x1xf32>
    %c0_70 = arith.constant 0 : index
    %c0_71 = arith.constant 0 : index
    %c0_72 = arith.constant 0 : index
    %118 = vector.load %arg5[%c0_70, %c0_71, %c0_72] : memref<1x8x1024xf32, #tpu.memory_space<vmem>>, vector<1x8x512xf32>
    %119 = vector.shape_cast %118 : vector<1x8x512xf32> to vector<8x512xf32>
    %120 = vector.broadcast %115 : vector<8x1xf32> to vector<8x512xf32>
    %121 = arith.mulf %119, %120 : vector<8x512xf32>
    %122 = vector.broadcast %117 : vector<8x1xf32> to vector<8x512xf32>
    %123 = arith.addf %121, %122 : vector<8x512xf32>
    %c0_73 = arith.constant 0 : index
    %c0_74 = arith.constant 0 : index
    %c0_75 = arith.constant 0 : index
    %124 = vector.load %arg5[%c0_73, %c0_74, %c0_75] : memref<1x8x1024xf32, #tpu.memory_space<vmem>>, vector<1x8x512xf32>
    %125 = vector.shape_cast %124 : vector<1x8x512xf32> to vector<8x512xf32>
    %126 = vector.shape_cast %123 : vector<8x512xf32> to vector<1x8x512xf32>
    tpu.vector_store %arg5[%c0_73, %c0_74, %c0_75], %126 {strides = array<i32>} : memref<1x8x1024xf32, #tpu.memory_space<vmem>>, vector<1x8x512xf32>,
    %c0_76 = arith.constant 0 : index
    %c0_77 = arith.constant 0 : index
    %c512_78 = arith.constant 512 : index
    %127 = vector.load %arg5[%c0_76, %c0_77, %c512_78] : memref<1x8x1024xf32, #tpu.memory_space<vmem>>, vector<1x8x512xf32>
    %128 = vector.shape_cast %127 : vector<1x8x512xf32> to vector<8x512xf32>
    %129 = vector.broadcast %115 : vector<8x1xf32> to vector<8x512xf32>
    %130 = arith.mulf %128, %129 : vector<8x512xf32>
    %131 = vector.broadcast %117 : vector<8x1xf32> to vector<8x512xf32>
    %132 = arith.addf %130, %131 : vector<8x512xf32>
    %c0_79 = arith.constant 0 : index
    %c0_80 = arith.constant 0 : index
    %c512_81 = arith.constant 512 : index
    %133 = vector.load %arg5[%c0_79, %c0_80, %c512_81] : memref<1x8x1024xf32, #tpu.memory_space<vmem>>, vector<1x8x512xf32>
    %134 = vector.shape_cast %133 : vector<1x8x512xf32> to vector<8x512xf32>
    %135 = vector.shape_cast %132 : vector<8x512xf32> to vector<1x8x512xf32>
    tpu.vector_store %arg5[%c0_79, %c0_80, %c512_81], %135 {strides = array<i32>} : memref<1x8x1024xf32, #tpu.memory_space<vmem>>, vector<1x8x512xf32>,
    return
  }
  func.func @transform_0(%arg0: i32) -> (i32, i32, i32, i32) {
    %c0_i32 = arith.constant 0 : i32
    %c0_i32_0 = arith.constant 0 : i32
    %c0_i32_1 = arith.constant 0 : i32
    %c0_i32_2 = arith.constant 0 : i32
    return %arg0, %c0_i32, %c0_i32_0, %c0_i32_1 : i32, i32, i32, i32
  }
  func.func @transform_1(%arg0: i32) -> (i32, i32) {
    %c0_i32 = arith.constant 0 : i32
    %c0_i32_0 = arith.constant 0 : i32
    %c0_i32_1 = arith.constant 0 : i32
    return %c0_i32, %c0_i32_0 : i32, i32
  }
  func.func @transform_2(%arg0: i32) -> (i32, i32) {
    %c0_i32 = arith.constant 0 : i32
    %c0_i32_0 = arith.constant 0 : i32
    %c0_i32_1 = arith.constant 0 : i32
    return %c0_i32, %c0_i32_0 : i32, i32
  }
  func.func @transform_3(%arg0: i32) -> (i32, i32, i32) {
    %c0_i32 = arith.constant 0 : i32
    %c0_i32_0 = arith.constant 0 : i32
    %c0_i32_1 = arith.constant 0 : i32
    %c0_i32_2 = arith.constant 0 : i32
    return %c0_i32, %c0_i32_0, %c0_i32_1 : i32, i32, i32
  }
  func.func @transform_4(%arg0: i32) -> (i32, i32, i32) {
    %c0_i32 = arith.constant 0 : i32
    %c0_i32_0 = arith.constant 0 : i32
    %c0_i32_1 = arith.constant 0 : i32
    return %arg0, %c0_i32, %c0_i32_0 : i32, i32, i32
  }
}

</mosaic_0001>

<llo_original>
// kernel: tpu_custom_call.1
$region0: #{tpu_custom_call.1}
  #allocation0 [shape = 'u32[]', space=smem, size = 0x4, offset = 0x4, fixed_abs, tag = 'smem constant byte address 0x4 - core index']
  #allocation1 [shape = 'u32[144,128]{1,0:T(1,128)}', space=vmem, size = 0x12000, scoped, tag = 'internal scratch']
  #allocation2 [shape = 'f32[40,512]{1,0:T(8,128)}', space=vmem, size = 0x14000, scoped, tag = 'scratch operand']
  %s0 = inlined_call_operand.vmem [shape: f32[2,4,34,16], index: 0, kind: input, shape index: {}]
  %s1 = inlined_call_operand.vmem [shape: f32[8,40], index: 1, kind: input, shape index: {}]
  %s2 = inlined_call_operand.vmem [shape: f32[16,34], index: 2, kind: input, shape index: {}]
  %s3 = inlined_call_operand.vmem [shape: f32[2,8,1], index: 3, kind: input, shape index: {}]
  %s4 = inlined_call_operand.hbm [shape: f32[2,8,1024], index: 4, kind: output, shape index: {}]
  %s5 = sld [smem:[#allocation0]]
  $region49: #{tpu_custom_call.1} parent=0
    _
  %s7 = ssub.s32 1, %s5
  %s8 = scalar_select 0, %s7, %s5
  $region1: #{tpu_custom_call.1} parent=0
    #allocation3 [shape = 'u8[65536]{0}', space=vmem, size = 0x10000, scoped, tag = 'output window, operand 0']
    #allocation4 [shape = 's32[2]{0}', space=sflag, size = 0x8, scoped, tag = 'scoped memory for tpu_custom_call.1']
    %9 = vsyncpa [#allocation4], 0
    %s10 = scalar_lea.sflag [#allocation4], 1
    %11 = vsyncpa %s10, 0
    loop: start=0, step=1, limit=4
    $region2: #{tpu_custom_call.1} parent=1 // loop_pre_header
      _
    $region3: #{tpu_custom_call.1} parent=1 // loop_header
      %s13 = sphi 0, %s17
      %p14 = scmp.ge.s32.totalorder %s13, 4
      %s23 = sphi 0, %s25
      %s26 = sphi 0, %s23
      %s27 = sphi 0, %s26
      %s43 = sphi 0, %s27
      %s47 = sphi 0, %s47
      %s49 = sphi 0, %s47
      %s50 = sphi 0, %s49
      %s64 = sphi 0, %s50
      %s68 = sphi 0, %s68
      %s70 = sphi 0, %s68
      %s71 = sphi 0, %s70
      %s85 = sphi 0, %s71
      %s89 = sphi 0, %s89
      %s91 = sphi 0, %s89
      %s92 = sphi 0, %s91
      %s106 = sphi 0, %s92
      %s112 = sphi 0, %s114
      %s115 = sphi 0, %s112
      %s116 = sphi 0, %s115
      %s132 = sphi 0, %s116
    $region4: #{tpu_custom_call.1} parent=1 // loop_header_branch
      %16 = sbr.rel (%p14) target = $region8
    $region5: #{tpu_custom_call.1} parent=1 // loop_body
      %s18 = ssub.s32 %s13, 1
      %s19 = ssub.s32 %s13, 2
      %s20 = sadd.s32 %s13, 1
      %s21 = ssub.s32 %s13, %s20
      %p22 = scmp.eq.s32.totalorder %s21, 0
      %s24 = sadd.s32 %s23, 1
      %s25 = scalar_select %p22, %s23, %s24
      %p28 = pneg %p22
      %p29 = scmp.eq.s32.totalorder %s13, 1
      %p30 = por %p28, %p29
      %p31 = scmp.ne.s32.totalorder %s23, %s26
      %p32 = scmp.eq.s32.totalorder %s13, 0
      %p33 = por %p31, %p32
      %p34 = scmp.ne.s32.totalorder %s23, %s26
      %p35 = scmp.eq.s32.totalorder %s18, 1
      %p36 = por %p34, %p35
      %p37 = scmp.ne.s32.totalorder %s26, %s27
      %p38 = scmp.eq.s32.totalorder %s18, 0
      %p39 = por %p37, %p38
      %p40 = scmp.ne.s32.totalorder %s26, %s27
      %p41 = scmp.eq.s32.totalorder %s19, 1
      %p42 = por %p40, %p41
      %p44 = scmp.ne.s32.totalorder %s27, %s43
      %p45 = scmp.eq.s32.totalorder %s19, 0
      %p46 = por %p44, %p45
      %s48 = sadd.s32 %s47, 1
      %p51 = scmp.eq.s32.totalorder %s13, 1
      %p52 = scmp.ne.s32.totalorder %s47, %s49
      %p53 = scmp.eq.s32.totalorder %s13, 0
      %p54 = por %p52, %p53
      %p55 = scmp.ne.s32.totalorder %s47, %s49
      %p56 = scmp.eq.s32.totalorder %s18, 1
      %p57 = por %p55, %p56
      %p58 = scmp.ne.s32.totalorder %s49, %s50
      %p59 = scmp.eq.s32.totalorder %s18, 0
      %p60 = por %p58, %p59
      %p61 = scmp.ne.s32.totalorder %s49, %s50
      %p62 = scmp.eq.s32.totalorder %s19, 1
      %p63 = por %p61, %p62
      %p65 = scmp.ne.s32.totalorder %s50, %s64
      %p66 = scmp.eq.s32.totalorder %s19, 0
      %p67 = por %p65, %p66
      %s69 = sadd.s32 %s68, 1
      %p72 = scmp.eq.s32.totalorder %s13, 1
      %p73 = scmp.ne.s32.totalorder %s68, %s70
      %p74 = scmp.eq.s32.totalorder %s13, 0
      %p75 = por %p73, %p74
      %p76 = scmp.ne.s32.totalorder %s68, %s70
      %p77 = scmp.eq.s32.totalorder %s18, 1
      %p78 = por %p76, %p77
      %p79 = scmp.ne.s32.totalorder %s70, %s71
      %p80 = scmp.eq.s32.totalorder %s18, 0
      %p81 = por %p79, %p80
      %p82 = scmp.ne.s32.totalorder %s70, %s71
      %p83 = scmp.eq.s32.totalorder %s19, 1
      %p84 = por %p82, %p83
      %p86 = scmp.ne.s32.totalorder %s71, %s85
      %p87 = scmp.eq.s32.totalorder %s19, 0
      %p88 = por %p86, %p87
      %s90 = sadd.s32 %s89, 1
      %p93 = scmp.eq.s32.totalorder %s13, 1
      %p94 = scmp.ne.s32.totalorder %s89, %s91
      %p95 = scmp.eq.s32.totalorder %s13, 0
      %p96 = por %p94, %p95
      %p97 = scmp.ne.s32.totalorder %s89, %s91
      %p98 = scmp.eq.s32.totalorder %s18, 1
      %p99 = por %p97, %p98
      %p100 = scmp.ne.s32.totalorder %s91, %s92
      %p101 = scmp.eq.s32.totalorder %s18, 0
      %p102 = por %p100, %p101
      %p103 = scmp.ne.s32.totalorder %s91, %s92
      %p104 = scmp.eq.s32.totalorder %s19, 1
      %p105 = por %p103, %p104
      %p107 = scmp.ne.s32.totalorder %s92, %s106
      %p108 = scmp.eq.s32.totalorder %s19, 0
      %p109 = por %p107, %p108
      %s110 = ssub.s32 %s13, %s20
      %p111 = scmp.eq.s32.totalorder %s110, 0
      %s113 = sadd.s32 %s112, 1
      %s114 = scalar_select %p111, %s112, %s113
      %p117 = pneg %p111
      %p118 = scmp.eq.s32.totalorder %s13, 1
      %p119 = por %p117, %p118
      %p120 = scmp.ne.s32.totalorder %s112, %s115
      %p121 = scmp.eq.s32.totalorder %s13, 0
      %p122 = por %p120, %p121
      %p123 = scmp.ne.s32.totalorder %s112, %s115
      %p124 = scmp.eq.s32.totalorder %s18, 1
      %p125 = por %p123, %p124
      %p126 = scmp.ne.s32.totalorder %s115, %s116
      %p127 = scmp.eq.s32.totalorder %s18, 0
      %p128 = por %p126, %p127
      %p129 = scmp.ne.s32.totalorder %s115, %s116
      %p130 = scmp.eq.s32.totalorder %s19, 1
      %p131 = por %p129, %p130
      %p133 = scmp.ne.s32.totalorder %s116, %s132
      %p134 = scmp.eq.s32.totalorder %s19, 0
      %p135 = por %p133, %p134
      %p136 = scmp.le.s32.totalorder 1, %s13
      %p137 = scmp.lt.s32.totalorder %s13, 3
      %p138 = pnand %p136, %p137
      %p139 = pneg %p138
      // Predicated region
      $region9: #{tpu_custom_call.1} parent=5 // pred_check
        _
      $region10: #{tpu_custom_call.1} parent=5 // pred_check_branch
        %141 = sbr.rel (%p138) target = $region12
      $region11: #{tpu_custom_call.1} parent=5 // pred_region
        %s142 = ssub.s32 %s13, 1
        // Predicated region
        $region13: #{tpu_custom_call.1} parent=11 // pred_check
          %p143 = pneg %p60
        $region14: #{tpu_custom_call.1} parent=11 // pred_check_branch
          %145 = sbr.rel (%p143) target = $region16
        $region15: #{tpu_custom_call.1} parent=11 // pred_region
          _
        $region16: #{tpu_custom_call.1} parent=11 // pred_fallthru
          _
        // Predicated region
        $region17: #{tpu_custom_call.1} parent=11 // pred_check
          %p146 = pneg %p81
        $region18: #{tpu_custom_call.1} parent=11 // pred_check_branch
          %148 = sbr.rel (%p146) target = $region20
        $region19: #{tpu_custom_call.1} parent=11 // pred_region
          _
        $region20: #{tpu_custom_call.1} parent=11 // pred_fallthru
          _
        // Predicated region
        $region21: #{tpu_custom_call.1} parent=11 // pred_check
          %p149 = pneg %p102
        $region22: #{tpu_custom_call.1} parent=11 // pred_check_branch
          %151 = sbr.rel (%p149) target = $region24
        $region23: #{tpu_custom_call.1} parent=11 // pred_region
          _
        $region24: #{tpu_custom_call.1} parent=11 // pred_fallthru
          _
      $region12: #{tpu_custom_call.1} parent=5 // pred_fallthru
        _
      %p152 = scmp.lt.s32.totalorder %s13, 2
      // Predicated region
      $region25: #{tpu_custom_call.1} parent=5 // pred_check
        %p153 = pneg %p152
      $region26: #{tpu_custom_call.1} parent=5 // pred_check_branch
        %155 = sbr.rel (%p153) target = $region28
      $region27: #{tpu_custom_call.1} parent=5 // pred_region
        // Predicated region
        $region29: #{tpu_custom_call.1} parent=27 // pred_check
          %p156 = pneg %p33
        $region30: #{tpu_custom_call.1} parent=27 // pred_check_branch
          %158 = sbr.rel (%p156) target = $region32
        $region31: #{tpu_custom_call.1} parent=27 // pred_region
          %p159 = scmp.lt.s32.totalorder %s13, 1
          %s160 = scalar_select %p159, %s13, 1
          %s161 = smul.addr %s160, 20
          %s162 = smul.addr %s161, 8
          %s163 = scalar_lea.vmem %s0, %s162
        $region32: #{tpu_custom_call.1} parent=27 // pred_fallthru
          _
      $region28: #{tpu_custom_call.1} parent=5 // pred_fallthru
        _
      %p164 = scmp.le.s32.totalorder 1, %s13
      %p165 = scmp.lt.s32.totalorder %s13, 3
      %p166 = pnand %p164, %p165
      %p167 = pneg %p166
      // Predicated region
      $region33: #{tpu_custom_call.1} parent=5 // pred_check
        _
      $region34: #{tpu_custom_call.1} parent=5 // pred_check_branch
        %169 = sbr.rel (%p166) target = $region36
      $region35: #{tpu_custom_call.1} parent=5 // pred_region
        %s170 = ssub.s32 %s13, 1
        %p171 = scmp.lt.s32.totalorder %s18, 1
        %s172 = scalar_select %p171, %s18, 1
        %s173 = smul.addr %s172, 20
        %s174 = smul.addr %s173, 8
        %s175 = scalar_lea.vmem %s0, %s174
        %p176 = pneg %p39
        %p177 = pneg %p36
        %p178 = pneg %p60
        %p179 = pneg %p57
        %p180 = pneg %p81
        %p181 = pneg %p78
        %p182 = pneg %p102
        %p183 = pneg %p99
        %p184 = pneg %p128
        %p185 = pneg %p125
        %s186 = sand.u32 %s115, 1
        %s187 = scalar_lea.sflag [#allocation4], %s186
        %s188 = sand.u32 %s115, 1
        %s189 = smul.addr %s188, 64
        %s190 = scalar_lea.vmem [#allocation3], %s189
        %p191 = scmp.lt.s32.totalorder %s18, 1
        %s192 = scalar_select %p191, %s18, 1
        %s193 = smul.addr %s192, 20
        %s194 = smul.addr %s193, 8
        %s195 = scalar_lea.vmem %s0, %s194
        %v196 = vlaneseq
        %v197 = vshrl.u32 %v196, 7
        %vm198 = vcmp.eq.s32.totalorder %v197, 0
        %v199 = vsel %vm198, 1.0, 0.0
        %v201 = vrot.slane %v199, 4
        %203 = vst [vmem:[#allocation2 + $0x80] sm:$0xf0] %v201
        %204 = vst [vmem:[#allocation2 + $0x88] sm:$0xf0] %v201
        %205 = vst [vmem:[#allocation2 + $0x90] sm:$0xf0] %v201
        %206 = vst [vmem:[#allocation2 + $0x98] sm:$0xf0] %v201
        %v207 = vld [vmem:[%s1] sm:$0xff]
        %v208 = vld [vmem:[%s3] sm:$0xff]
        %s209 = scalar_lea.vmem %s3, 8
        %v210 = vld [vmem:[%s209] sm:$0xff]
        %v211 = vld [vmem:[%s195] sm:$0xff]
        %v212 = vld [vmem:[%s195 + $0x8] sm:$0xff]
        %v213 = vld [vmem:[%s195 + $0x10] sm:$0xff]
        %v214 = vld [vmem:[%s195 + $0x28] sm:$0xff]
        %v215 = vld [vmem:[%s195 + $0x30] sm:$0xff]
        %v216 = vld [vmem:[%s195 + $0x38] sm:$0xff]
        %v217 = vld [vmem:[%s195 + $0x50] sm:$0xff]
        %v218 = vld [vmem:[%s195 + $0x58] sm:$0xff]
        %v219 = vld [vmem:[%s195 + $0x60] sm:$0xff]
        %v220 = vld [vmem:[%s195 + $0x78] sm:$0xff]
        %v221 = vld [vmem:[%s195 + $0x80] sm:$0xff]
        %v222 = vld [vmem:[%s195 + $0x88] sm:$0xff]
        %v223 = vld [vmem:[%s2] sm:$0xff]
        %v224 = vld [vmem:[%s2 + $0x8] sm:$0xff]
        %vm225 = vcmask 130048
        %v227 = vsel %vm225, %v211, 0
        %v230 = vsel %vm225, %v212, 0
        %v233 = vsel %vm225, %v213, 0
        %v236 = vsel %vm225, %v214, 0
        %v239 = vsel %vm225, %v215, 0
        %v242 = vsel %vm225, %v216, 0
        %v245 = vsel %vm225, %v217, 0
        %v248 = vsel %vm225, %v218, 0
        %v251 = vsel %vm225, %v219, 0
        %v254 = vsel %vm225, %v220, 0
        %v257 = vsel %vm225, %v221, 0
        %v260 = vsel %vm225, %v222, 0
        %262 = vmatprep.subr.mxu0 0.0
        %263 = vmatpush1.msra.mxu0 0.0
        %264 = vmatprep.subr.mxu0 0.0
        %265 = vmatpush1.msra.mxu0 0.0
        %266 = vmatprep.subr.mxu0 0.0
        %267 = vmatpush1.msra.mxu0 0.0
        %268 = vmatprep.subr.mxu0 0.0
        %269 = vmatpush1.msra.mxu0 0.0
        %270 = vmatprep.subr.mxu0 0.0
        %271 = vmatpush1.msra.mxu0 0.0
        %272 = vmatprep.subr.mxu0 0.0
        %273 = vmatpush1.msra.mxu0 0.0
        %274 = vmatprep.subr.mxu0 0.0
        %275 = vmatpush1.msra.mxu0 0.0
        %276 = vmatprep.subr.mxu0 0.0
        %277 = vmatpush1.msra.mxu0 0.0
        %278 = vmatprep.subr.mxu0 0.0
        %279 = vmatpush1.msra.mxu0 0.0
        %280 = vmatprep.subr.mxu0 0.0
        %281 = vmatpush1.msra.mxu0 0.0
        %282 = vmatprep.subr.mxu0 0.0
        %283 = vmatpush1.msra.mxu0 0.0
        %284 = vmatprep.subr.mxu0 0.0
        %285 = vmatpush1.msra.mxu0 0.0
        %286 = vmatprep.subr.mxu0 0.0
        %287 = vmatpush1.msra.mxu0 0.0
        %288 = vmatprep.subr.mxu0 0.0
        %289 = vmatpush1.msra.mxu0 0.0
        %290 = vmatprep.subr.mxu0 0.0
        %291 = vmatpush1.msra.mxu0 %v224
        %292 = vmatprep.subr.mxu0 0.0
        %293 = vmatpush1.msra.mxu0 %v223
        %294 = vmatprep.subr.mxu0 0.0
        %295 = vmatpush2.msra.mxu0 0.0
        %296 = vmatprep.subr.mxu0 0.0
        %297 = vmatpush2.msra.mxu0 0.0
        %298 = vmatprep.subr.mxu0 0.0
        %299 = vmatpush2.msra.mxu0 0.0
        %300 = vmatprep.subr.mxu0 0.0
        %301 = vmatpush2.msra.mxu0 0.0
        %302 = vmatprep.subr.mxu0 0.0
        %303 = vmatpush2.msra.mxu0 0.0
        %304 = vmatprep.subr.mxu0 0.0
        %305 = vmatpush2.msra.mxu0 0.0
        %306 = vmatprep.subr.mxu0 0.0
        %307 = vmatpush2.msra.mxu0 0.0
        %308 = vmatprep.subr.mxu0 0.0
        %309 = vmatpush2.msra.mxu0 0.0
        %310 = vmatprep.subr.mxu0 0.0
        %311 = vmatpush2.msra.mxu0 0.0
        %312 = vmatprep.subr.mxu0 0.0
        %313 = vmatpush2.msra.mxu0 0.0
        %314 = vmatprep.subr.mxu0 0.0
        %315 = vmatpush2.msra.mxu0 0.0
        %316 = vmatprep.subr.mxu0 0.0
        %317 = vmatpush2.msra.mxu0 0.0
        %318 = vmatprep.subr.mxu0 0.0
        %319 = vmatpush2.msra.mxu0 0.0
        %320 = vmatprep.subr.mxu0 0.0
        %321 = vmatpush2.msra.mxu0 0.0
        %322 = vmatprep.subr.mxu0 0.0
        %323 = vmatpush2.msra.mxu0 0.0
        %324 = vmatprep.subr.mxu0 0.0
        %325 = vmatpush2.msra.mxu0 0.0
        %326 = vmatprep.mubr.f32.mxu0 0.0
        %327 = vmatmul.mubr.f32.gmra.mxu0 %v227
        %v328 = vpop.f32.mrf.mxu0
        %v329 = vadd.f32 0.0, %v328
        %v330 = vpop.f32.mrf.mxu0
        %331 = vmatprep.mubr.f32.mxu0 0.0
        %332 = vmatmul.mubr.f32.gmra.mxu0 %v230
        %v333 = vpop.f32.mrf.mxu0
        %v334 = vadd.f32 0.0, %v333
        %v335 = vpop.f32.mrf.mxu0
        %336 = vmatprep.mubr.f32.mxu0 0.0
        %337 = vmatmul.mubr.f32.gmra.mxu0 %v233
        %v338 = vpop.f32.mrf.mxu0
        %v339 = vadd.f32 0.0, %v338
        %v340 = vpop.f32.mrf.mxu0
        %341 = vmatprep.mubr.f32.mxu0 0.0
        %342 = vmatmul.mubr.f32.gmra.mxu0 %v236
        %v343 = vpop.f32.mrf.mxu0
        %v344 = vadd.f32 0.0, %v343
        %v345 = vpop.f32.mrf.mxu0
        %346 = vmatprep.mubr.f32.mxu0 0.0
        %347 = vmatmul.mubr.f32.gmra.mxu0 %v239
        %v348 = vpop.f32.mrf.mxu0
        %v349 = vadd.f32 0.0, %v348
        %v350 = vpop.f32.mrf.mxu0
        %351 = vmatprep.mubr.f32.mxu0 0.0
        %352 = vmatmul.mubr.f32.gmra.mxu0 %v242
        %v353 = vpop.f32.mrf.mxu0
        %v354 = vadd.f32 0.0, %v353
        %v355 = vpop.f32.mrf.mxu0
        %356 = vmatprep.mubr.f32.mxu0 0.0
        %357 = vmatmul.mubr.f32.gmra.mxu0 %v245
        %v358 = vpop.f32.mrf.mxu0
        %v359 = vadd.f32 0.0, %v358
        %v360 = vpop.f32.mrf.mxu0
        %361 = vmatprep.mubr.f32.mxu0 0.0
        %362 = vmatmul.mubr.f32.gmra.mxu0 %v248
        %v363 = vpop.f32.mrf.mxu0
        %v364 = vadd.f32 0.0, %v363
        %v365 = vpop.f32.mrf.mxu0
        %366 = vmatprep.mubr.f32.mxu0 0.0
        %367 = vmatmul.mubr.f32.gmra.mxu0 %v251
        %v368 = vpop.f32.mrf.mxu0
        %v369 = vadd.f32 0.0, %v368
        %v370 = vpop.f32.mrf.mxu0
        %371 = vmatprep.mubr.f32.mxu0 0.0
        %372 = vmatmul.mubr.f32.gmra.mxu0 %v254
        %v373 = vpop.f32.mrf.mxu0
        %v374 = vadd.f32 0.0, %v373
        %v375 = vpop.f32.mrf.mxu0
        %376 = vmatprep.mubr.f32.mxu0 0.0
        %377 = vmatmul.mubr.f32.gmra.mxu0 %v257
        %v378 = vpop.f32.mrf.mxu0
        %v379 = vadd.f32 0.0, %v378
        %v380 = vpop.f32.mrf.mxu0
        %381 = vmatprep.mubr.f32.mxu0 0.0
        %382 = vmatmul.mubr.f32.gmra.mxu0 %v260
        %v383 = vpop.f32.mrf.mxu0
        %v384 = vadd.f32 0.0, %v383
        %v385 = vpop.f32.mrf.mxu0
        %386 = vdwg.mxu0
        %v387 = vcombine.low %v329, %v359
        %v388 = vcombine.high %v329, %v359
        %v390 = vunpack.c.l.s4 1983009808
        %v391 = vunpack.c.0.s8 %v390
        %v392 = vlaneseq
        %v393 = vshrl.u32 %v392, 7
        %v394 = vsub.s32 %v391, %v393
        %v395 = vrot.slane %v387, %v394
        %v397 = vunpack.c.l.s4 1983009808
        %v398 = vunpack.c.0.s8 %v397
        %v399 = vlaneseq
        %v400 = vshrl.u32 %v399, 7
        %v401 = vsub.s32 %v398, %v400
        %v402 = vrot.slane %v388, %v401
        %v403 = vcombine.low %v344, %v374
        %v404 = vcombine.high %v344, %v374
        %v406 = vunpack.c.l.s4 1983009808
        %v407 = vunpack.c.0.s8 %v406
        %v408 = vlaneseq
        %v409 = vshrl.u32 %v408, 7
        %v410 = vsub.s32 %v407, %v409
        %v411 = vrot.slane %v403, %v410
        %v413 = vunpack.c.l.s4 1983009808
        %v414 = vunpack.c.0.s8 %v413
        %v415 = vlaneseq
        %v416 = vshrl.u32 %v415, 7
        %v417 = vsub.s32 %v414, %v416
        %v418 = vrot.slane %v404, %v417
        %v419 = vcombine.low %v395, %v411
        %v420 = vcombine.high %v395, %v411
        %v422 = vunpack.c.l.s4 1934713408
        %v423 = vunpack.c.0.s8 %v422
        %v424 = vlaneseq
        %v425 = vshrl.u32 %v424, 7
        %v426 = vsub.s32 %v423, %v425
        %v427 = vrot.slane %v419, %v426
        %v429 = vunpack.c.l.s4 1934713408
        %v430 = vunpack.c.0.s8 %v429
        %v431 = vlaneseq
        %v432 = vshrl.u32 %v431, 7
        %v433 = vsub.s32 %v430, %v432
        %v434 = vrot.slane %v420, %v433
        %v435 = vcombine.low %v402, %v418
        %v436 = vcombine.high %v402, %v418
        %v438 = vunpack.c.l.s4 1934713408
        %v439 = vunpack.c.0.s8 %v438
        %v440 = vlaneseq
        %v441 = vshrl.u32 %v440, 7
        %v442 = vsub.s32 %v439, %v441
        %v443 = vrot.slane %v435, %v442
        %v445 = vunpack.c.l.s4 1934713408
        %v446 = vunpack.c.0.s8 %v445
        %v447 = vlaneseq
        %v448 = vshrl.u32 %v447, 7
        %v449 = vsub.s32 %v446, %v448
        %v450 = vrot.slane %v436, %v449
        %v451 = vcombine.high %v427, 0.0
        %v452 = vcombine.high %v434, 0.0
        %v453 = vcombine.high %v443, 0.0
        %v454 = vcombine.high %v450, 0.0
        %v455 = vcombine.low %v334, %v364
        %v456 = vcombine.high %v334, %v364
        %v458 = vunpack.c.l.s4 1983009808
        %v459 = vunpack.c.0.s8 %v458
        %v460 = vlaneseq
        %v461 = vshrl.u32 %v460, 7
        %v462 = vsub.s32 %v459, %v461
        %v463 = vrot.slane %v455, %v462
        %v465 = vunpack.c.l.s4 1983009808
        %v466 = vunpack.c.0.s8 %v465
        %v467 = vlaneseq
        %v468 = vshrl.u32 %v467, 7
        %v469 = vsub.s32 %v466, %v468
        %v470 = vrot.slane %v456, %v469
        %v471 = vcombine.low %v349, %v379
        %v472 = vcombine.high %v349, %v379
        %v474 = vunpack.c.l.s4 1983009808
        %v475 = vunpack.c.0.s8 %v474
        %v476 = vlaneseq
        %v477 = vshrl.u32 %v476, 7
        %v478 = vsub.s32 %v475, %v477
        %v479 = vrot.slane %v471, %v478
        %v481 = vunpack.c.l.s4 1983009808
        %v482 = vunpack.c.0.s8 %v481
        %v483 = vlaneseq
        %v484 = vshrl.u32 %v483, 7
        %v485 = vsub.s32 %v482, %v484
        %v486 = vrot.slane %v472, %v485
        %v487 = vcombine.low %v463, %v479
        %v488 = vcombine.high %v463, %v479
        %v490 = vunpack.c.l.s4 1934713408
        %v491 = vunpack.c.0.s8 %v490
        %v492 = vlaneseq
        %v493 = vshrl.u32 %v492, 7
        %v494 = vsub.s32 %v491, %v493
        %v495 = vrot.slane %v487, %v494
        %v497 = vunpack.c.l.s4 1934713408
        %v498 = vunpack.c.0.s8 %v497
        %v499 = vlaneseq
        %v500 = vshrl.u32 %v499, 7
        %v501 = vsub.s32 %v498, %v500
        %v502 = vrot.slane %v488, %v501
        %v503 = vcombine.low %v470, %v486
        %v504 = vcombine.high %v470, %v486
        %v506 = vunpack.c.l.s4 1934713408
        %v507 = vunpack.c.0.s8 %v506
        %v508 = vlaneseq
        %v509 = vshrl.u32 %v508, 7
        %v510 = vsub.s32 %v507, %v509
        %v511 = vrot.slane %v503, %v510
        %v513 = vunpack.c.l.s4 1934713408
        %v514 = vunpack.c.0.s8 %v513
        %v515 = vlaneseq
        %v516 = vshrl.u32 %v515, 7
        %v517 = vsub.s32 %v514, %v516
        %v518 = vrot.slane %v504, %v517
        %v519 = vcombine.high %v495, 0.0
        %v520 = vcombine.high %v502, 0.0
        %v521 = vcombine.high %v511, 0.0
        %v522 = vcombine.high %v518, 0.0
        %524 = vrot.lane.b32.xlu0 %v451, 32
        %v525 = vpop.permute.xlu0 %524
        %528 = vrot.lane.b32.xlu0 %v434, 64
        %v529 = vpop.permute.xlu0 %528
        %532 = vrot.lane.b32.xlu0 %v452, 96
        %v533 = vpop.permute.xlu0 %532
        %536 = vrot.lane.b32.xlu0 %v453, 32
        %v537 = vpop.permute.xlu0 %536
        %540 = vrot.lane.b32.xlu0 %v450, 64
        %v541 = vpop.permute.xlu0 %540
        %544 = vrot.lane.b32.xlu0 %v454, 96
        %v545 = vpop.permute.xlu0 %544
        %548 = vrot.lane.b32.xlu0 %v519, 32
        %v549 = vpop.permute.xlu0 %548
        %552 = vrot.lane.b32.xlu0 %v502, 64
        %v553 = vpop.permute.xlu0 %552
        %556 = vrot.lane.b32.xlu0 %v520, 96
        %v557 = vpop.permute.xlu0 %556
        %560 = vrot.lane.b32.xlu0 %v521, 32
        %v561 = vpop.permute.xlu0 %560
        %564 = vrot.lane.b32.xlu0 %v518, 64
        %v565 = vpop.permute.xlu0 %564
        %568 = vrot.lane.b32.xlu0 %v522, 96
        %v569 = vpop.permute.xlu0 %568
        %vm571 = vcmask 261120
        %v572 = vsel %vm571, %v427, %v525
        %vm573 = vcmask 523264
        %v574 = vsel %vm573, %v572, %v529
        %vm575 = vcmask 785408
        %v576 = vsel %vm575, %v574, %v533
        %v577 = vsel %vm571, %v443, %v537
        %v578 = vsel %vm573, %v577, %v541
        %v579 = vsel %vm575, %v578, %v545
        %v580 = vsel %vm571, %v495, %v549
        %v581 = vsel %vm573, %v580, %v553
        %v582 = vsel %vm575, %v581, %v557
        %v583 = vsel %vm571, %v511, %v561
        %v584 = vsel %vm573, %v583, %v565
        %v585 = vsel %vm575, %v584, %v569
        %586 = vst [vmem:[#allocation2] sm:$0xf] %v576
        %587 = vst [vmem:[#allocation2 + $0x8] sm:$0xf] %v579
        %588 = vst [vmem:[#allocation2 + $0x10] sm:$0xf] %v582
        %589 = vst [vmem:[#allocation2 + $0x18] sm:$0xf] %v585
        %vm602 = vcmask 1046528
        %v603 = vrot.slane %v329, 1
        %v604 = vrot.slane %v334, 1
        %v605 = vsel %vm602, %v603, %v604
        %v606 = vrot.slane %v339, 1
        %v607 = vsel %vm602, %v604, %v606
        %v608 = vrot.slane %v344, 1
        %v609 = vrot.slane %v349, 1
        %v610 = vsel %vm602, %v608, %v609
        %v611 = vrot.slane %v354, 1
        %v612 = vsel %vm602, %v609, %v611
        %v613 = vrot.slane %v359, 1
        %v614 = vrot.slane %v364, 1
        %v615 = vsel %vm602, %v613, %v614
        %v616 = vrot.slane %v369, 1
        %v617 = vsel %vm602, %v614, %v616
        %v618 = vrot.slane %v374, 1
        %v619 = vrot.slane %v379, 1
        %v620 = vsel %vm602, %v618, %v619
        %v621 = vrot.slane %v384, 1
        %v622 = vsel %vm602, %v619, %v621
        %v631 = vcombine.low %v605, %v615
        %v632 = vcombine.high %v605, %v615
        %v634 = vunpack.c.l.s4 1983009808
        %v635 = vunpack.c.0.s8 %v634
        %v636 = vlaneseq
        %v637 = vshrl.u32 %v636, 7
        %v638 = vsub.s32 %v635, %v637
        %v639 = vrot.slane %v631, %v638
        %v641 = vunpack.c.l.s4 1983009808
        %v642 = vunpack.c.0.s8 %v641
        %v643 = vlaneseq
        %v644 = vshrl.u32 %v643, 7
        %v645 = vsub.s32 %v642, %v644
        %v646 = vrot.slane %v632, %v645
        %v647 = vcombine.low %v610, %v620
        %v648 = vcombine.high %v610, %v620
        %v650 = vunpack.c.l.s4 1983009808
        %v651 = vunpack.c.0.s8 %v650
        %v652 = vlaneseq
        %v653 = vshrl.u32 %v652, 7
        %v654 = vsub.s32 %v651, %v653
        %v655 = vrot.slane %v647, %v654
        %v657 = vunpack.c.l.s4 1983009808
        %v658 = vunpack.c.0.s8 %v657
        %v659 = vlaneseq
        %v660 = vshrl.u32 %v659, 7
        %v661 = vsub.s32 %v658, %v660
        %v662 = vrot.slane %v648, %v661
        %v663 = vcombine.low %v639, %v655
        %v664 = vcombine.high %v639, %v655
        %v666 = vunpack.c.l.s4 1934713408
        %v667 = vunpack.c.0.s8 %v666
        %v668 = vlaneseq
        %v669 = vshrl.u32 %v668, 7
        %v670 = vsub.s32 %v667, %v669
        %v671 = vrot.slane %v663, %v670
        %v673 = vunpack.c.l.s4 1934713408
        %v674 = vunpack.c.0.s8 %v673
        %v675 = vlaneseq
        %v676 = vshrl.u32 %v675, 7
        %v677 = vsub.s32 %v674, %v676
        %v678 = vrot.slane %v664, %v677
        %v679 = vcombine.low %v646, %v662
        %v680 = vcombine.high %v646, %v662
        %v682 = vunpack.c.l.s4 1934713408
        %v683 = vunpack.c.0.s8 %v682
        %v684 = vlaneseq
        %v685 = vshrl.u32 %v684, 7
        %v686 = vsub.s32 %v683, %v685
        %v687 = vrot.slane %v679, %v686
        %v689 = vunpack.c.l.s4 1934713408
        %v690 = vunpack.c.0.s8 %v689
        %v691 = vlaneseq
        %v692 = vshrl.u32 %v691, 7
        %v693 = vsub.s32 %v690, %v692
        %v694 = vrot.slane %v680, %v693
        %v695 = vcombine.high %v671, 0.0
        %v696 = vcombine.high %v678, 0.0
        %v697 = vcombine.high %v687, 0.0
        %v698 = vcombine.high %v694, 0.0
        %v699 = vcombine.low %v607, %v617
        %v700 = vcombine.high %v607, %v617
        %v702 = vunpack.c.l.s4 1983009808
        %v703 = vunpack.c.0.s8 %v702
        %v704 = vlaneseq
        %v705 = vshrl.u32 %v704, 7
        %v706 = vsub.s32 %v703, %v705
        %v707 = vrot.slane %v699, %v706
        %v709 = vunpack.c.l.s4 1983009808
        %v710 = vunpack.c.0.s8 %v709
        %v711 = vlaneseq
        %v712 = vshrl.u32 %v711, 7
        %v713 = vsub.s32 %v710, %v712
        %v714 = vrot.slane %v700, %v713
        %v715 = vcombine.low %v612, %v622
        %v716 = vcombine.high %v612, %v622
        %v718 = vunpack.c.l.s4 1983009808
        %v719 = vunpack.c.0.s8 %v718
        %v720 = vlaneseq
        %v721 = vshrl.u32 %v720, 7
        %v722 = vsub.s32 %v719, %v721
        %v723 = vrot.slane %v715, %v722
        %v725 = vunpack.c.l.s4 1983009808
        %v726 = vunpack.c.0.s8 %v725
        %v727 = vlaneseq
        %v728 = vshrl.u32 %v727, 7
        %v729 = vsub.s32 %v726, %v728
        %v730 = vrot.slane %v716, %v729
        %v731 = vcombine.low %v707, %v723
        %v732 = vcombine.high %v707, %v723
        %v734 = vunpack.c.l.s4 1934713408
        %v735 = vunpack.c.0.s8 %v734
        %v736 = vlaneseq
        %v737 = vshrl.u32 %v736, 7
        %v738 = vsub.s32 %v735, %v737
        %v739 = vrot.slane %v731, %v738
        %v741 = vunpack.c.l.s4 1934713408
        %v742 = vunpack.c.0.s8 %v741
        %v743 = vlaneseq
        %v744 = vshrl.u32 %v743, 7
        %v745 = vsub.s32 %v742, %v744
        %v746 = vrot.slane %v732, %v745
        %v747 = vcombine.low %v714, %v730
        %v748 = vcombine.high %v714, %v730
        %v750 = vunpack.c.l.s4 1934713408
        %v751 = vunpack.c.0.s8 %v750
        %v752 = vlaneseq
        %v753 = vshrl.u32 %v752, 7
        %v754 = vsub.s32 %v751, %v753
        %v755 = vrot.slane %v747, %v754
        %v757 = vunpack.c.l.s4 1934713408
        %v758 = vunpack.c.0.s8 %v757
        %v759 = vlaneseq
        %v760 = vshrl.u32 %v759, 7
        %v761 = vsub.s32 %v758, %v760
        %v762 = vrot.slane %v748, %v761
        %v763 = vcombine.high %v739, 0.0
        %v764 = vcombine.high %v746, 0.0
        %v765 = vcombine.high %v755, 0.0
        %v766 = vcombine.high %v762, 0.0
        %768 = vrot.lane.b32.xlu0 %v695, 32
        %v769 = vpop.permute.xlu0 %768
        %772 = vrot.lane.b32.xlu0 %v678, 64
        %v773 = vpop.permute.xlu0 %772
        %776 = vrot.lane.b32.xlu0 %v696, 96
        %v777 = vpop.permute.xlu0 %776
        %780 = vrot.lane.b32.xlu0 %v697, 32
        %v781 = vpop.permute.xlu0 %780
        %784 = vrot.lane.b32.xlu0 %v694, 64
        %v785 = vpop.permute.xlu0 %784
        %788 = vrot.lane.b32.xlu0 %v698, 96
        %v789 = vpop.permute.xlu0 %788
        %792 = vrot.lane.b32.xlu0 %v763, 32
        %v793 = vpop.permute.xlu0 %792
        %796 = vrot.lane.b32.xlu0 %v746, 64
        %v797 = vpop.permute.xlu0 %796
        %800 = vrot.lane.b32.xlu0 %v764, 96
        %v801 = vpop.permute.xlu0 %800
        %804 = vrot.lane.b32.xlu0 %v765, 32
        %v805 = vpop.permute.xlu0 %804
        %808 = vrot.lane.b32.xlu0 %v762, 64
        %v809 = vpop.permute.xlu0 %808
        %812 = vrot.lane.b32.xlu0 %v766, 96
        %v813 = vpop.permute.xlu0 %812
        %v815 = vsel %vm571, %v671, %v769
        %v816 = vsel %vm573, %v815, %v773
        %v817 = vsel %vm575, %v816, %v777
        %v818 = vsel %vm571, %v687, %v781
        %v819 = vsel %vm573, %v818, %v785
        %v820 = vsel %vm575, %v819, %v789
        %v821 = vsel %vm571, %v739, %v793
        %v822 = vsel %vm573, %v821, %v797
        %v823 = vsel %vm575, %v822, %v801
        %v824 = vsel %vm571, %v755, %v805
        %v825 = vsel %vm573, %v824, %v809
        %v826 = vsel %vm575, %v825, %v813
        %v831 = vrot.slane %v817, 4
        %v832 = vrot.slane %v820, 4
        %v833 = vrot.slane %v823, 4
        %v834 = vrot.slane %v826, 4
        %839 = vst [vmem:[#allocation2] sm:$0xf0] %v831
        %840 = vst [vmem:[#allocation2 + $0x8] sm:$0xf0] %v832
        %841 = vst [vmem:[#allocation2 + $0x10] sm:$0xf0] %v833
        %842 = vst [vmem:[#allocation2 + $0x18] sm:$0xf0] %v834
        %vm843 = vcmask 1045504
        %v844 = vrot.slane %v329, 2
        %v845 = vrot.slane %v334, 2
        %v846 = vsel %vm843, %v844, %v845
        %v847 = vrot.slane %v339, 2
        %v848 = vsel %vm843, %v845, %v847
        %v849 = vrot.slane %v344, 2
        %v850 = vrot.slane %v349, 2
        %v851 = vsel %vm843, %v849, %v850
        %v852 = vrot.slane %v354, 2
        %v853 = vsel %vm843, %v850, %v852
        %v854 = vrot.slane %v359, 2
        %v855 = vrot.slane %v364, 2
        %v856 = vsel %vm843, %v854, %v855
        %v857 = vrot.slane %v369, 2
        %v858 = vsel %vm843, %v855, %v857
        %v859 = vrot.slane %v374, 2
        %v860 = vrot.slane %v379, 2
        %v861 = vsel %vm843, %v859, %v860
        %v862 = vrot.slane %v384, 2
        %v863 = vsel %vm843, %v860, %v862
        %v872 = vcombine.low %v846, %v856
        %v873 = vcombine.high %v846, %v856
        %v875 = vunpack.c.l.s4 1983009808
        %v876 = vunpack.c.0.s8 %v875
        %v877 = vlaneseq
        %v878 = vshrl.u32 %v877, 7
        %v879 = vsub.s32 %v876, %v878
        %v880 = vrot.slane %v872, %v879
        %v882 = vunpack.c.l.s4 1983009808
        %v883 = vunpack.c.0.s8 %v882
        %v884 = vlaneseq
        %v885 = vshrl.u32 %v884, 7
        %v886 = vsub.s32 %v883, %v885
        %v887 = vrot.slane %v873, %v886
        %v888 = vcombine.low %v851, %v861
        %v889 = vcombine.high %v851, %v861
        %v891 = vunpack.c.l.s4 1983009808
        %v892 = vunpack.c.0.s8 %v891
        %v893 = vlaneseq
        %v894 = vshrl.u32 %v893, 7
        %v895 = vsub.s32 %v892, %v894
        %v896 = vrot.slane %v888, %v895
        %v898 = vunpack.c.l.s4 1983009808
        %v899 = vunpack.c.0.s8 %v898
        %v900 = vlaneseq
        %v901 = vshrl.u32 %v900, 7
        %v902 = vsub.s32 %v899, %v901
        %v903 = vrot.slane %v889, %v902
        %v904 = vcombine.low %v880, %v896
        %v905 = vcombine.high %v880, %v896
        %v907 = vunpack.c.l.s4 1934713408
        %v908 = vunpack.c.0.s8 %v907
        %v909 = vlaneseq
        %v910 = vshrl.u32 %v909, 7
        %v911 = vsub.s32 %v908, %v910
        %v912 = vrot.slane %v904, %v911
        %v914 = vunpack.c.l.s4 1934713408
        %v915 = vunpack.c.0.s8 %v914
        %v916 = vlaneseq
        %v917 = vshrl.u32 %v916, 7
        %v918 = vsub.s32 %v915, %v917
        %v919 = vrot.slane %v905, %v918
        %v920 = vcombine.low %v887, %v903
        %v921 = vcombine.high %v887, %v903
        %v923 = vunpack.c.l.s4 1934713408
        %v924 = vunpack.c.0.s8 %v923
        %v925 = vlaneseq
        %v926 = vshrl.u32 %v925, 7
        %v927 = vsub.s32 %v924, %v926
        %v928 = vrot.slane %v920, %v927
        %v930 = vunpack.c.l.s4 1934713408
        %v931 = vunpack.c.0.s8 %v930
        %v932 = vlaneseq
        %v933 = vshrl.u32 %v932, 7
        %v934 = vsub.s32 %v931, %v933
        %v935 = vrot.slane %v921, %v934
        %v936 = vcombine.high %v912, 0.0
        %v937 = vcombine.high %v919, 0.0
        %v938 = vcombine.high %v928, 0.0
        %v939 = vcombine.high %v935, 0.0
        %v940 = vcombine.low %v848, %v858
        %v941 = vcombine.high %v848, %v858
        %v943 = vunpack.c.l.s4 1983009808
        %v944 = vunpack.c.0.s8 %v943
        %v945 = vlaneseq
        %v946 = vshrl.u32 %v945, 7
        %v947 = vsub.s32 %v944, %v946
        %v948 = vrot.slane %v940, %v947
        %v950 = vunpack.c.l.s4 1983009808
        %v951 = vunpack.c.0.s8 %v950
        %v952 = vlaneseq
        %v953 = vshrl.u32 %v952, 7
        %v954 = vsub.s32 %v951, %v953
        %v955 = vrot.slane %v941, %v954
        %v956 = vcombine.low %v853, %v863
        %v957 = vcombine.high %v853, %v863
        %v959 = vunpack.c.l.s4 1983009808
        %v960 = vunpack.c.0.s8 %v959
        %v961 = vlaneseq
        %v962 = vshrl.u32 %v961, 7
        %v963 = vsub.s32 %v960, %v962
        %v964 = vrot.slane %v956, %v963
        %v966 = vunpack.c.l.s4 1983009808
        %v967 = vunpack.c.0.s8 %v966
        %v968 = vlaneseq
        %v969 = vshrl.u32 %v968, 7
        %v970 = vsub.s32 %v967, %v969
        %v971 = vrot.slane %v957, %v970
        %v972 = vcombine.low %v948, %v964
        %v973 = vcombine.high %v948, %v964
        %v975 = vunpack.c.l.s4 1934713408
        %v976 = vunpack.c.0.s8 %v975
        %v977 = vlaneseq
        %v978 = vshrl.u32 %v977, 7
        %v979 = vsub.s32 %v976, %v978
        %v980 = vrot.slane %v972, %v979
        %v982 = vunpack.c.l.s4 1934713408
        %v983 = vunpack.c.0.s8 %v982
        %v984 = vlaneseq
        %v985 = vshrl.u32 %v984, 7
        %v986 = vsub.s32 %v983, %v985
        %v987 = vrot.slane %v973, %v986
        %v988 = vcombine.low %v955, %v971
        %v989 = vcombine.high %v955, %v971
        %v991 = vunpack.c.l.s4 1934713408
        %v992 = vunpack.c.0.s8 %v991
        %v993 = vlaneseq
        %v994 = vshrl.u32 %v993, 7
        %v995 = vsub.s32 %v992, %v994
        %v996 = vrot.slane %v988, %v995
        %v998 = vunpack.c.l.s4 1934713408
        %v999 = vunpack.c.0.s8 %v998
        %v1000 = vlaneseq
        %v1001 = vshrl.u32 %v1000, 7
        %v1002 = vsub.s32 %v999, %v1001
        %v1003 = vrot.slane %v989, %v1002
        %v1004 = vcombine.high %v980, 0.0
        %v1005 = vcombine.high %v987, 0.0
        %v1006 = vcombine.high %v996, 0.0
        %v1007 = vcombine.high %v1003, 0.0
        %1009 = vrot.lane.b32.xlu0 %v936, 32
        %v1010 = vpop.permute.xlu0 %1009
        %1013 = vrot.lane.b32.xlu0 %v919, 64
        %v1014 = vpop.permute.xlu0 %1013
        %1017 = vrot.lane.b32.xlu0 %v937, 96
        %v1018 = vpop.permute.xlu0 %1017
        %1021 = vrot.lane.b32.xlu0 %v938, 32
        %v1022 = vpop.permute.xlu0 %1021
        %1025 = vrot.lane.b32.xlu0 %v935, 64
        %v1026 = vpop.permute.xlu0 %1025
        %1029 = vrot.lane.b32.xlu0 %v939, 96
        %v1030 = vpop.permute.xlu0 %1029
        %1033 = vrot.lane.b32.xlu0 %v1004, 32
        %v1034 = vpop.permute.xlu0 %1033
        %1037 = vrot.lane.b32.xlu0 %v987, 64
        %v1038 = vpop.permute.xlu0 %1037
        %1041 = vrot.lane.b32.xlu0 %v1005, 96
        %v1042 = vpop.permute.xlu0 %1041
        %1045 = vrot.lane.b32.xlu0 %v1006, 32
        %v1046 = vpop.permute.xlu0 %1045
        %1049 = vrot.lane.b32.xlu0 %v1003, 64
        %v1050 = vpop.permute.xlu0 %1049
        %1053 = vrot.lane.b32.xlu0 %v1007, 96
        %v1054 = vpop.permute.xlu0 %1053
        %v1056 = vsel %vm571, %v912, %v1010
        %v1057 = vsel %vm573, %v1056, %v1014
        %v1058 = vsel %vm575, %v1057, %v1018
        %v1059 = vsel %vm571, %v928, %v1022
        %v1060 = vsel %vm573, %v1059, %v1026
        %v1061 = vsel %vm575, %v1060, %v1030
        %v1062 = vsel %vm571, %v980, %v1034
        %v1063 = vsel %vm573, %v1062, %v1038
        %v1064 = vsel %vm575, %v1063, %v1042
        %v1065 = vsel %vm571, %v996, %v1046
        %v1066 = vsel %vm573, %v1065, %v1050
        %v1067 = vsel %vm575, %v1066, %v1054
        %1068 = vst [vmem:[#allocation2 + $0x20] sm:$0xf] %v1058
        %1069 = vst [vmem:[#allocation2 + $0x28] sm:$0xf] %v1061
        %1070 = vst [vmem:[#allocation2 + $0x30] sm:$0xf] %v1064
        %1071 = vst [vmem:[#allocation2 + $0x38] sm:$0xf] %v1067
        %1072 = vrot.lane.b32.xlu0 %v329, 127
        %v1073 = vpop.permute.xlu0 %1072
        %1074 = vrot.lane.b32.xlu0 %v334, 127
        %v1075 = vpop.permute.xlu0 %1074
        %1076 = vrot.lane.b32.xlu0 %v344, 127
        %v1077 = vpop.permute.xlu0 %1076
        %1078 = vrot.lane.b32.xlu0 %v349, 127
        %v1079 = vpop.permute.xlu0 %1078
        %1080 = vrot.lane.b32.xlu0 %v359, 127
        %v1081 = vpop.permute.xlu0 %1080
        %1082 = vrot.lane.b32.xlu0 %v364, 127
        %v1083 = vpop.permute.xlu0 %1082
        %1084 = vrot.lane.b32.xlu0 %v374, 127
        %v1085 = vpop.permute.xlu0 %1084
        %1086 = vrot.lane.b32.xlu0 %v379, 127
        %v1087 = vpop.permute.xlu0 %1086
        %v1096 = vcombine.low %v1073, %v1081
        %v1097 = vcombine.high %v1073, %v1081
        %v1099 = vunpack.c.l.s4 1983009808
        %v1100 = vunpack.c.0.s8 %v1099
        %v1101 = vlaneseq
        %v1102 = vshrl.u32 %v1101, 7
        %v1103 = vsub.s32 %v1100, %v1102
        %v1104 = vrot.slane %v1096, %v1103
        %v1106 = vunpack.c.l.s4 1983009808
        %v1107 = vunpack.c.0.s8 %v1106
        %v1108 = vlaneseq
        %v1109 = vshrl.u32 %v1108, 7
        %v1110 = vsub.s32 %v1107, %v1109
        %v1111 = vrot.slane %v1097, %v1110
        %v1112 = vcombine.low %v1077, %v1085
        %v1113 = vcombine.high %v1077, %v1085
        %v1115 = vunpack.c.l.s4 1983009808
        %v1116 = vunpack.c.0.s8 %v1115
        %v1117 = vlaneseq
        %v1118 = vshrl.u32 %v1117, 7
        %v1119 = vsub.s32 %v1116, %v1118
        %v1120 = vrot.slane %v1112, %v1119
        %v1122 = vunpack.c.l.s4 1983009808
        %v1123 = vunpack.c.0.s8 %v1122
        %v1124 = vlaneseq
        %v1125 = vshrl.u32 %v1124, 7
        %v1126 = vsub.s32 %v1123, %v1125
        %v1127 = vrot.slane %v1113, %v1126
        %v1128 = vcombine.low %v1104, %v1120
        %v1129 = vcombine.high %v1104, %v1120
        %v1131 = vunpack.c.l.s4 1934713408
        %v1132 = vunpack.c.0.s8 %v1131
        %v1133 = vlaneseq
        %v1134 = vshrl.u32 %v1133, 7
        %v1135 = vsub.s32 %v1132, %v1134
        %v1136 = vrot.slane %v1128, %v1135
        %v1138 = vunpack.c.l.s4 1934713408
        %v1139 = vunpack.c.0.s8 %v1138
        %v1140 = vlaneseq
        %v1141 = vshrl.u32 %v1140, 7
        %v1142 = vsub.s32 %v1139, %v1141
        %v1143 = vrot.slane %v1129, %v1142
        %v1144 = vcombine.low %v1111, %v1127
        %v1145 = vcombine.high %v1111, %v1127
        %v1147 = vunpack.c.l.s4 1934713408
        %v1148 = vunpack.c.0.s8 %v1147
        %v1149 = vlaneseq
        %v1150 = vshrl.u32 %v1149, 7
        %v1151 = vsub.s32 %v1148, %v1150
        %v1152 = vrot.slane %v1144, %v1151
        %v1154 = vunpack.c.l.s4 1934713408
        %v1155 = vunpack.c.0.s8 %v1154
        %v1156 = vlaneseq
        %v1157 = vshrl.u32 %v1156, 7
        %v1158 = vsub.s32 %v1155, %v1157
        %v1159 = vrot.slane %v1145, %v1158
        %v1160 = vcombine.high %v1136, 0.0
        %v1161 = vcombine.high %v1143, 0.0
        %v1162 = vcombine.high %v1152, 0.0
        %v1163 = vcombine.high %v1159, 0.0
        %v1164 = vcombine.low %v1075, %v1083
        %v1165 = vcombine.high %v1075, %v1083
        %v1167 = vunpack.c.l.s4 1983009808
        %v1168 = vunpack.c.0.s8 %v1167
        %v1169 = vlaneseq
        %v1170 = vshrl.u32 %v1169, 7
        %v1171 = vsub.s32 %v1168, %v1170
        %v1172 = vrot.slane %v1164, %v1171
        %v1174 = vunpack.c.l.s4 1983009808
        %v1175 = vunpack.c.0.s8 %v1174
        %v1176 = vlaneseq
        %v1177 = vshrl.u32 %v1176, 7
        %v1178 = vsub.s32 %v1175, %v1177
        %v1179 = vrot.slane %v1165, %v1178
        %v1180 = vcombine.low %v1079, %v1087
        %v1181 = vcombine.high %v1079, %v1087
        %v1183 = vunpack.c.l.s4 1983009808
        %v1184 = vunpack.c.0.s8 %v1183
        %v1185 = vlaneseq
        %v1186 = vshrl.u32 %v1185, 7
        %v1187 = vsub.s32 %v1184, %v1186
        %v1188 = vrot.slane %v1180, %v1187
        %v1190 = vunpack.c.l.s4 1983009808
        %v1191 = vunpack.c.0.s8 %v1190
        %v1192 = vlaneseq
        %v1193 = vshrl.u32 %v1192, 7
        %v1194 = vsub.s32 %v1191, %v1193
        %v1195 = vrot.slane %v1181, %v1194
        %v1196 = vcombine.low %v1172, %v1188
        %v1197 = vcombine.high %v1172, %v1188
        %v1199 = vunpack.c.l.s4 1934713408
        %v1200 = vunpack.c.0.s8 %v1199
        %v1201 = vlaneseq
        %v1202 = vshrl.u32 %v1201, 7
        %v1203 = vsub.s32 %v1200, %v1202
        %v1204 = vrot.slane %v1196, %v1203
        %v1206 = vunpack.c.l.s4 1934713408
        %v1207 = vunpack.c.0.s8 %v1206
        %v1208 = vlaneseq
        %v1209 = vshrl.u32 %v1208, 7
        %v1210 = vsub.s32 %v1207, %v1209
        %v1211 = vrot.slane %v1197, %v1210
        %v1212 = vcombine.low %v1179, %v1195
        %v1213 = vcombine.high %v1179, %v1195
        %v1215 = vunpack.c.l.s4 1934713408
        %v1216 = vunpack.c.0.s8 %v1215
        %v1217 = vlaneseq
        %v1218 = vshrl.u32 %v1217, 7
        %v1219 = vsub.s32 %v1216, %v1218
        %v1220 = vrot.slane %v1212, %v1219
        %v1222 = vunpack.c.l.s4 1934713408
        %v1223 = vunpack.c.0.s8 %v1222
        %v1224 = vlaneseq
        %v1225 = vshrl.u32 %v1224, 7
        %v1226 = vsub.s32 %v1223, %v1225
        %v1227 = vrot.slane %v1213, %v1226
        %v1228 = vcombine.high %v1204, 0.0
        %v1229 = vcombine.high %v1211, 0.0
        %v1230 = vcombine.high %v1220, 0.0
        %v1231 = vcombine.high %v1227, 0.0
        %1233 = vrot.lane.b32.xlu0 %v1160, 32
        %v1234 = vpop.permute.xlu0 %1233
        %1237 = vrot.lane.b32.xlu0 %v1143, 64
        %v1238 = vpop.permute.xlu0 %1237
        %1241 = vrot.lane.b32.xlu0 %v1161, 96
        %v1242 = vpop.permute.xlu0 %1241
        %1245 = vrot.lane.b32.xlu0 %v1162, 32
        %v1246 = vpop.permute.xlu0 %1245
        %1249 = vrot.lane.b32.xlu0 %v1159, 64
        %v1250 = vpop.permute.xlu0 %1249
        %1253 = vrot.lane.b32.xlu0 %v1163, 96
        %v1254 = vpop.permute.xlu0 %1253
        %1257 = vrot.lane.b32.xlu0 %v1228, 32
        %v1258 = vpop.permute.xlu0 %1257
        %1261 = vrot.lane.b32.xlu0 %v1211, 64
        %v1262 = vpop.permute.xlu0 %1261
        %1265 = vrot.lane.b32.xlu0 %v1229, 96
        %v1266 = vpop.permute.xlu0 %1265
        %1269 = vrot.lane.b32.xlu0 %v1230, 32
        %v1270 = vpop.permute.xlu0 %1269
        %1273 = vrot.lane.b32.xlu0 %v1227, 64
        %v1274 = vpop.permute.xlu0 %1273
        %1277 = vrot.lane.b32.xlu0 %v1231, 96
        %v1278 = vpop.permute.xlu0 %1277
        %v1280 = vsel %vm571, %v1136, %v1234
        %v1281 = vsel %vm573, %v1280, %v1238
        %v1282 = vsel %vm575, %v1281, %v1242
        %v1283 = vsel %vm571, %v1152, %v1246
        %v1284 = vsel %vm573, %v1283, %v1250
        %v1285 = vsel %vm575, %v1284, %v1254
        %v1286 = vsel %vm571, %v1204, %v1258
        %v1287 = vsel %vm573, %v1286, %v1262
        %v1288 = vsel %vm575, %v1287, %v1266
        %v1289 = vsel %vm571, %v1220, %v1270
        %v1290 = vsel %vm573, %v1289, %v1274
        %v1291 = vsel %vm575, %v1290, %v1278
        %v1296 = vrot.slane %v1282, 4
        %v1297 = vrot.slane %v1285, 4
        %v1298 = vrot.slane %v1288, 4
        %v1299 = vrot.slane %v1291, 4
        %1304 = vst [vmem:[#allocation2 + $0x20] sm:$0xf0] %v1296
        %1305 = vst [vmem:[#allocation2 + $0x28] sm:$0xf0] %v1297
        %1306 = vst [vmem:[#allocation2 + $0x30] sm:$0xf0] %v1298
        %1307 = vst [vmem:[#allocation2 + $0x38] sm:$0xf0] %v1299
        %1308 = vrot.lane.b32.xlu0 %v605, 127
        %v1309 = vpop.permute.xlu0 %1308
        %1310 = vrot.lane.b32.xlu0 %v607, 127
        %v1311 = vpop.permute.xlu0 %1310
        %1312 = vrot.lane.b32.xlu0 %v610, 127
        %v1313 = vpop.permute.xlu0 %1312
        %1314 = vrot.lane.b32.xlu0 %v612, 127
        %v1315 = vpop.permute.xlu0 %1314
        %1316 = vrot.lane.b32.xlu0 %v615, 127
        %v1317 = vpop.permute.xlu0 %1316
        %1318 = vrot.lane.b32.xlu0 %v617, 127
        %v1319 = vpop.permute.xlu0 %1318
        %1320 = vrot.lane.b32.xlu0 %v620, 127
        %v1321 = vpop.permute.xlu0 %1320
        %1322 = vrot.lane.b32.xlu0 %v622, 127
        %v1323 = vpop.permute.xlu0 %1322
        %v1332 = vcombine.low %v1309, %v1317
        %v1333 = vcombine.high %v1309, %v1317
        %v1335 = vunpack.c.l.s4 1983009808
        %v1336 = vunpack.c.0.s8 %v1335
        %v1337 = vlaneseq
        %v1338 = vshrl.u32 %v1337, 7
        %v1339 = vsub.s32 %v1336, %v1338
        %v1340 = vrot.slane %v1332, %v1339
        %v1342 = vunpack.c.l.s4 1983009808
        %v1343 = vunpack.c.0.s8 %v1342
        %v1344 = vlaneseq
        %v1345 = vshrl.u32 %v1344, 7
        %v1346 = vsub.s32 %v1343, %v1345
        %v1347 = vrot.slane %v1333, %v1346
        %v1348 = vcombine.low %v1313, %v1321
        %v1349 = vcombine.high %v1313, %v1321
        %v1351 = vunpack.c.l.s4 1983009808
        %v1352 = vunpack.c.0.s8 %v1351
        %v1353 = vlaneseq
        %v1354 = vshrl.u32 %v1353, 7
        %v1355 = vsub.s32 %v1352, %v1354
        %v1356 = vrot.slane %v1348, %v1355
        %v1358 = vunpack.c.l.s4 1983009808
        %v1359 = vunpack.c.0.s8 %v1358
        %v1360 = vlaneseq
        %v1361 = vshrl.u32 %v1360, 7
        %v1362 = vsub.s32 %v1359, %v1361
        %v1363 = vrot.slane %v1349, %v1362
        %v1364 = vcombine.low %v1340, %v1356
        %v1365 = vcombine.high %v1340, %v1356
        %v1367 = vunpack.c.l.s4 1934713408
        %v1368 = vunpack.c.0.s8 %v1367
        %v1369 = vlaneseq
        %v1370 = vshrl.u32 %v1369, 7
        %v1371 = vsub.s32 %v1368, %v1370
        %v1372 = vrot.slane %v1364, %v1371
        %v1374 = vunpack.c.l.s4 1934713408
        %v1375 = vunpack.c.0.s8 %v1374
        %v1376 = vlaneseq
        %v1377 = vshrl.u32 %v1376, 7
        %v1378 = vsub.s32 %v1375, %v1377
        %v1379 = vrot.slane %v1365, %v1378
        %v1380 = vcombine.low %v1347, %v1363
        %v1381 = vcombine.high %v1347, %v1363
        %v1383 = vunpack.c.l.s4 1934713408
        %v1384 = vunpack.c.0.s8 %v1383
        %v1385 = vlaneseq
        %v1386 = vshrl.u32 %v1385, 7
        %v1387 = vsub.s32 %v1384, %v1386
        %v1388 = vrot.slane %v1380, %v1387
        %v1390 = vunpack.c.l.s4 1934713408
        %v1391 = vunpack.c.0.s8 %v1390
        %v1392 = vlaneseq
        %v1393 = vshrl.u32 %v1392, 7
        %v1394 = vsub.s32 %v1391, %v1393
        %v1395 = vrot.slane %v1381, %v1394
        %v1396 = vcombine.high %v1372, 0.0
        %v1397 = vcombine.high %v1379, 0.0
        %v1398 = vcombine.high %v1388, 0.0
        %v1399 = vcombine.high %v1395, 0.0
        %v1400 = vcombine.low %v1311, %v1319
        %v1401 = vcombine.high %v1311, %v1319
        %v1403 = vunpack.c.l.s4 1983009808
        %v1404 = vunpack.c.0.s8 %v1403
        %v1405 = vlaneseq
        %v1406 = vshrl.u32 %v1405, 7
        %v1407 = vsub.s32 %v1404, %v1406
        %v1408 = vrot.slane %v1400, %v1407
        %v1410 = vunpack.c.l.s4 1983009808
        %v1411 = vunpack.c.0.s8 %v1410
        %v1412 = vlaneseq
        %v1413 = vshrl.u32 %v1412, 7
        %v1414 = vsub.s32 %v1411, %v1413
        %v1415 = vrot.slane %v1401, %v1414
        %v1416 = vcombine.low %v1315, %v1323
        %v1417 = vcombine.high %v1315, %v1323
        %v1419 = vunpack.c.l.s4 1983009808
        %v1420 = vunpack.c.0.s8 %v1419
        %v1421 = vlaneseq
        %v1422 = vshrl.u32 %v1421, 7
        %v1423 = vsub.s32 %v1420, %v1422
        %v1424 = vrot.slane %v1416, %v1423
        %v1426 = vunpack.c.l.s4 1983009808
        %v1427 = vunpack.c.0.s8 %v1426
        %v1428 = vlaneseq
        %v1429 = vshrl.u32 %v1428, 7
        %v1430 = vsub.s32 %v1427, %v1429
        %v1431 = vrot.slane %v1417, %v1430
        %v1432 = vcombine.low %v1408, %v1424
        %v1433 = vcombine.high %v1408, %v1424
        %v1435 = vunpack.c.l.s4 1934713408
        %v1436 = vunpack.c.0.s8 %v1435
        %v1437 = vlaneseq
        %v1438 = vshrl.u32 %v1437, 7
        %v1439 = vsub.s32 %v1436, %v1438
        %v1440 = vrot.slane %v1432, %v1439
        %v1442 = vunpack.c.l.s4 1934713408
        %v1443 = vunpack.c.0.s8 %v1442
        %v1444 = vlaneseq
        %v1445 = vshrl.u32 %v1444, 7
        %v1446 = vsub.s32 %v1443, %v1445
        %v1447 = vrot.slane %v1433, %v1446
        %v1448 = vcombine.low %v1415, %v1431
        %v1449 = vcombine.high %v1415, %v1431
        %v1451 = vunpack.c.l.s4 1934713408
        %v1452 = vunpack.c.0.s8 %v1451
        %v1453 = vlaneseq
        %v1454 = vshrl.u32 %v1453, 7
        %v1455 = vsub.s32 %v1452, %v1454
        %v1456 = vrot.slane %v1448, %v1455
        %v1458 = vunpack.c.l.s4 1934713408
        %v1459 = vunpack.c.0.s8 %v1458
        %v1460 = vlaneseq
        %v1461 = vshrl.u32 %v1460, 7
        %v1462 = vsub.s32 %v1459, %v1461
        %v1463 = vrot.slane %v1449, %v1462
        %v1464 = vcombine.high %v1440, 0.0
        %v1465 = vcombine.high %v1447, 0.0
        %v1466 = vcombine.high %v1456, 0.0
        %v1467 = vcombine.high %v1463, 0.0
        %1469 = vrot.lane.b32.xlu0 %v1396, 32
        %v1470 = vpop.permute.xlu0 %1469
        %1473 = vrot.lane.b32.xlu0 %v1379, 64
        %v1474 = vpop.permute.xlu0 %1473
        %1477 = vrot.lane.b32.xlu0 %v1397, 96
        %v1478 = vpop.permute.xlu0 %1477
        %1481 = vrot.lane.b32.xlu0 %v1398, 32
        %v1482 = vpop.permute.xlu0 %1481
        %1485 = vrot.lane.b32.xlu0 %v1395, 64
        %v1486 = vpop.permute.xlu0 %1485
        %1489 = vrot.lane.b32.xlu0 %v1399, 96
        %v1490 = vpop.permute.xlu0 %1489
        %1493 = vrot.lane.b32.xlu0 %v1464, 32
        %v1494 = vpop.permute.xlu0 %1493
        %1497 = vrot.lane.b32.xlu0 %v1447, 64
        %v1498 = vpop.permute.xlu0 %1497
        %1501 = vrot.lane.b32.xlu0 %v1465, 96
        %v1502 = vpop.permute.xlu0 %1501
        %1505 = vrot.lane.b32.xlu0 %v1466, 32
        %v1506 = vpop.permute.xlu0 %1505
        %1509 = vrot.lane.b32.xlu0 %v1463, 64
        %v1510 = vpop.permute.xlu0 %1509
        %1513 = vrot.lane.b32.xlu0 %v1467, 96
        %v1514 = vpop.permute.xlu0 %1513
        %v1516 = vsel %vm571, %v1372, %v1470
        %v1517 = vsel %vm573, %v1516, %v1474
        %v1518 = vsel %vm575, %v1517, %v1478
        %v1519 = vsel %vm571, %v1388, %v1482
        %v1520 = vsel %vm573, %v1519, %v1486
        %v1521 = vsel %vm575, %v1520, %v1490
        %v1522 = vsel %vm571, %v1440, %v1494
        %v1523 = vsel %vm573, %v1522, %v1498
        %v1524 = vsel %vm575, %v1523, %v1502
        %v1525 = vsel %vm571, %v1456, %v1506
        %v1526 = vsel %vm573, %v1525, %v1510
        %v1527 = vsel %vm575, %v1526, %v1514
        %1528 = vst [vmem:[#allocation2 + $0x40] sm:$0xf] %v1518
        %1529 = vst [vmem:[#allocation2 + $0x48] sm:$0xf] %v1521
        %1530 = vst [vmem:[#allocation2 + $0x50] sm:$0xf] %v1524
        %1531 = vst [vmem:[#allocation2 + $0x58] sm:$0xf] %v1527
        %1532 = vrot.lane.b32.xlu0 %v846, 127
        %v1533 = vpop.permute.xlu0 %1532
        %1534 = vrot.lane.b32.xlu0 %v848, 127
        %v1535 = vpop.permute.xlu0 %1534
        %1536 = vrot.lane.b32.xlu0 %v851, 127
        %v1537 = vpop.permute.xlu0 %1536
        %1538 = vrot.lane.b32.xlu0 %v853, 127
        %v1539 = vpop.permute.xlu0 %1538
        %1540 = vrot.lane.b32.xlu0 %v856, 127
        %v1541 = vpop.permute.xlu0 %1540
        %1542 = vrot.lane.b32.xlu0 %v858, 127
        %v1543 = vpop.permute.xlu0 %1542
        %1544 = vrot.lane.b32.xlu0 %v861, 127
        %v1545 = vpop.permute.xlu0 %1544
        %1546 = vrot.lane.b32.xlu0 %v863, 127
        %v1547 = vpop.permute.xlu0 %1546
        %v1556 = vcombine.low %v1533, %v1541
        %v1557 = vcombine.high %v1533, %v1541
        %v1559 = vunpack.c.l.s4 1983009808
        %v1560 = vunpack.c.0.s8 %v1559
        %v1561 = vlaneseq
        %v1562 = vshrl.u32 %v1561, 7
        %v1563 = vsub.s32 %v1560, %v1562
        %v1564 = vrot.slane %v1556, %v1563
        %v1566 = vunpack.c.l.s4 1983009808
        %v1567 = vunpack.c.0.s8 %v1566
        %v1568 = vlaneseq
        %v1569 = vshrl.u32 %v1568, 7
        %v1570 = vsub.s32 %v1567, %v1569
        %v1571 = vrot.slane %v1557, %v1570
        %v1572 = vcombine.low %v1537, %v1545
        %v1573 = vcombine.high %v1537, %v1545
        %v1575 = vunpack.c.l.s4 1983009808
        %v1576 = vunpack.c.0.s8 %v1575
        %v1577 = vlaneseq
        %v1578 = vshrl.u32 %v1577, 7
        %v1579 = vsub.s32 %v1576, %v1578
        %v1580 = vrot.slane %v1572, %v1579
        %v1582 = vunpack.c.l.s4 1983009808
        %v1583 = vunpack.c.0.s8 %v1582
        %v1584 = vlaneseq
        %v1585 = vshrl.u32 %v1584, 7
        %v1586 = vsub.s32 %v1583, %v1585
        %v1587 = vrot.slane %v1573, %v1586
        %v1588 = vcombine.low %v1564, %v1580
        %v1589 = vcombine.high %v1564, %v1580
        %v1591 = vunpack.c.l.s4 1934713408
        %v1592 = vunpack.c.0.s8 %v1591
        %v1593 = vlaneseq
        %v1594 = vshrl.u32 %v1593, 7
        %v1595 = vsub.s32 %v1592, %v1594
        %v1596 = vrot.slane %v1588, %v1595
        %v1598 = vunpack.c.l.s4 1934713408
        %v1599 = vunpack.c.0.s8 %v1598
        %v1600 = vlaneseq
        %v1601 = vshrl.u32 %v1600, 7
        %v1602 = vsub.s32 %v1599, %v1601
        %v1603 = vrot.slane %v1589, %v1602
        %v1604 = vcombine.low %v1571, %v1587
        %v1605 = vcombine.high %v1571, %v1587
        %v1607 = vunpack.c.l.s4 1934713408
        %v1608 = vunpack.c.0.s8 %v1607
        %v1609 = vlaneseq
        %v1610 = vshrl.u32 %v1609, 7
        %v1611 = vsub.s32 %v1608, %v1610
        %v1612 = vrot.slane %v1604, %v1611
        %v1614 = vunpack.c.l.s4 1934713408
        %v1615 = vunpack.c.0.s8 %v1614
        %v1616 = vlaneseq
        %v1617 = vshrl.u32 %v1616, 7
        %v1618 = vsub.s32 %v1615, %v1617
        %v1619 = vrot.slane %v1605, %v1618
        %v1620 = vcombine.high %v1596, 0.0
        %v1621 = vcombine.high %v1603, 0.0
        %v1622 = vcombine.high %v1612, 0.0
        %v1623 = vcombine.high %v1619, 0.0
        %v1624 = vcombine.low %v1535, %v1543
        %v1625 = vcombine.high %v1535, %v1543
        %v1627 = vunpack.c.l.s4 1983009808
        %v1628 = vunpack.c.0.s8 %v1627
        %v1629 = vlaneseq
        %v1630 = vshrl.u32 %v1629, 7
        %v1631 = vsub.s32 %v1628, %v1630
        %v1632 = vrot.slane %v1624, %v1631
        %v1634 = vunpack.c.l.s4 1983009808
        %v1635 = vunpack.c.0.s8 %v1634
        %v1636 = vlaneseq
        %v1637 = vshrl.u32 %v1636, 7
        %v1638 = vsub.s32 %v1635, %v1637
        %v1639 = vrot.slane %v1625, %v1638
        %v1640 = vcombine.low %v1539, %v1547
        %v1641 = vcombine.high %v1539, %v1547
        %v1643 = vunpack.c.l.s4 1983009808
        %v1644 = vunpack.c.0.s8 %v1643
        %v1645 = vlaneseq
        %v1646 = vshrl.u32 %v1645, 7
        %v1647 = vsub.s32 %v1644, %v1646
        %v1648 = vrot.slane %v1640, %v1647
        %v1650 = vunpack.c.l.s4 1983009808
        %v1651 = vunpack.c.0.s8 %v1650
        %v1652 = vlaneseq
        %v1653 = vshrl.u32 %v1652, 7
        %v1654 = vsub.s32 %v1651, %v1653
        %v1655 = vrot.slane %v1641, %v1654
        %v1656 = vcombine.low %v1632, %v1648
        %v1657 = vcombine.high %v1632, %v1648
        %v1659 = vunpack.c.l.s4 1934713408
        %v1660 = vunpack.c.0.s8 %v1659
        %v1661 = vlaneseq
        %v1662 = vshrl.u32 %v1661, 7
        %v1663 = vsub.s32 %v1660, %v1662
        %v1664 = vrot.slane %v1656, %v1663
        %v1666 = vunpack.c.l.s4 1934713408
        %v1667 = vunpack.c.0.s8 %v1666
        %v1668 = vlaneseq
        %v1669 = vshrl.u32 %v1668, 7
        %v1670 = vsub.s32 %v1667, %v1669
        %v1671 = vrot.slane %v1657, %v1670
        %v1672 = vcombine.low %v1639, %v1655
        %v1673 = vcombine.high %v1639, %v1655
        %v1675 = vunpack.c.l.s4 1934713408
        %v1676 = vunpack.c.0.s8 %v1675
        %v1677 = vlaneseq
        %v1678 = vshrl.u32 %v1677, 7
        %v1679 = vsub.s32 %v1676, %v1678
        %v1680 = vrot.slane %v1672, %v1679
        %v1682 = vunpack.c.l.s4 1934713408
        %v1683 = vunpack.c.0.s8 %v1682
        %v1684 = vlaneseq
        %v1685 = vshrl.u32 %v1684, 7
        %v1686 = vsub.s32 %v1683, %v1685
        %v1687 = vrot.slane %v1673, %v1686
        %v1688 = vcombine.high %v1664, 0.0
        %v1689 = vcombine.high %v1671, 0.0
        %v1690 = vcombine.high %v1680, 0.0
        %v1691 = vcombine.high %v1687, 0.0
        %1693 = vrot.lane.b32.xlu0 %v1620, 32
        %v1694 = vpop.permute.xlu0 %1693
        %1697 = vrot.lane.b32.xlu0 %v1603, 64
        %v1698 = vpop.permute.xlu0 %1697
        %1701 = vrot.lane.b32.xlu0 %v1621, 96
        %v1702 = vpop.permute.xlu0 %1701
        %1705 = vrot.lane.b32.xlu0 %v1622, 32
        %v1706 = vpop.permute.xlu0 %1705
        %1709 = vrot.lane.b32.xlu0 %v1619, 64
        %v1710 = vpop.permute.xlu0 %1709
        %1713 = vrot.lane.b32.xlu0 %v1623, 96
        %v1714 = vpop.permute.xlu0 %1713
        %1717 = vrot.lane.b32.xlu0 %v1688, 32
        %v1718 = vpop.permute.xlu0 %1717
        %1721 = vrot.lane.b32.xlu0 %v1671, 64
        %v1722 = vpop.permute.xlu0 %1721
        %1725 = vrot.lane.b32.xlu0 %v1689, 96
        %v1726 = vpop.permute.xlu0 %1725
        %1729 = vrot.lane.b32.xlu0 %v1690, 32
        %v1730 = vpop.permute.xlu0 %1729
        %1733 = vrot.lane.b32.xlu0 %v1687, 64
        %v1734 = vpop.permute.xlu0 %1733
        %1737 = vrot.lane.b32.xlu0 %v1691, 96
        %v1738 = vpop.permute.xlu0 %1737
        %v1740 = vsel %vm571, %v1596, %v1694
        %v1741 = vsel %vm573, %v1740, %v1698
        %v1742 = vsel %vm575, %v1741, %v1702
        %v1743 = vsel %vm571, %v1612, %v1706
        %v1744 = vsel %vm573, %v1743, %v1710
        %v1745 = vsel %vm575, %v1744, %v1714
        %v1746 = vsel %vm571, %v1664, %v1718
        %v1747 = vsel %vm573, %v1746, %v1722
        %v1748 = vsel %vm575, %v1747, %v1726
        %v1749 = vsel %vm571, %v1680, %v1730
        %v1750 = vsel %vm573, %v1749, %v1734
        %v1751 = vsel %vm575, %v1750, %v1738
        %v1756 = vrot.slane %v1742, 4
        %v1757 = vrot.slane %v1745, 4
        %v1758 = vrot.slane %v1748, 4
        %v1759 = vrot.slane %v1751, 4
        %1764 = vst [vmem:[#allocation2 + $0x40] sm:$0xf0] %v1756
        %1765 = vst [vmem:[#allocation2 + $0x48] sm:$0xf0] %v1757
        %1766 = vst [vmem:[#allocation2 + $0x50] sm:$0xf0] %v1758
        %1767 = vst [vmem:[#allocation2 + $0x58] sm:$0xf0] %v1759
        %1768 = vrot.lane.b32.xlu0 %v329, 126
        %v1769 = vpop.permute.xlu0 %1768
        %1770 = vrot.lane.b32.xlu0 %v334, 126
        %v1771 = vpop.permute.xlu0 %1770
        %1772 = vrot.lane.b32.xlu0 %v344, 126
        %v1773 = vpop.permute.xlu0 %1772
        %1774 = vrot.lane.b32.xlu0 %v349, 126
        %v1775 = vpop.permute.xlu0 %1774
        %1776 = vrot.lane.b32.xlu0 %v359, 126
        %v1777 = vpop.permute.xlu0 %1776
        %1778 = vrot.lane.b32.xlu0 %v364, 126
        %v1779 = vpop.permute.xlu0 %1778
        %1780 = vrot.lane.b32.xlu0 %v374, 126
        %v1781 = vpop.permute.xlu0 %1780
        %1782 = vrot.lane.b32.xlu0 %v379, 126
        %v1783 = vpop.permute.xlu0 %1782
        %v1792 = vcombine.low %v1769, %v1777
        %v1793 = vcombine.high %v1769, %v1777
        %v1795 = vunpack.c.l.s4 1983009808
        %v1796 = vunpack.c.0.s8 %v1795
        %v1797 = vlaneseq
        %v1798 = vshrl.u32 %v1797, 7
        %v1799 = vsub.s32 %v1796, %v1798
        %v1800 = vrot.slane %v1792, %v1799
        %v1802 = vunpack.c.l.s4 1983009808
        %v1803 = vunpack.c.0.s8 %v1802
        %v1804 = vlaneseq
        %v1805 = vshrl.u32 %v1804, 7
        %v1806 = vsub.s32 %v1803, %v1805
        %v1807 = vrot.slane %v1793, %v1806
        %v1808 = vcombine.low %v1773, %v1781
        %v1809 = vcombine.high %v1773, %v1781
        %v1811 = vunpack.c.l.s4 1983009808
        %v1812 = vunpack.c.0.s8 %v1811
        %v1813 = vlaneseq
        %v1814 = vshrl.u32 %v1813, 7
        %v1815 = vsub.s32 %v1812, %v1814
        %v1816 = vrot.slane %v1808, %v1815
        %v1818 = vunpack.c.l.s4 1983009808
        %v1819 = vunpack.c.0.s8 %v1818
        %v1820 = vlaneseq
        %v1821 = vshrl.u32 %v1820, 7
        %v1822 = vsub.s32 %v1819, %v1821
        %v1823 = vrot.slane %v1809, %v1822
        %v1824 = vcombine.low %v1800, %v1816
        %v1825 = vcombine.high %v1800, %v1816
        %v1827 = vunpack.c.l.s4 1934713408
        %v1828 = vunpack.c.0.s8 %v1827
        %v1829 = vlaneseq
        %v1830 = vshrl.u32 %v1829, 7
        %v1831 = vsub.s32 %v1828, %v1830
        %v1832 = vrot.slane %v1824, %v1831
        %v1834 = vunpack.c.l.s4 1934713408
        %v1835 = vunpack.c.0.s8 %v1834
        %v1836 = vlaneseq
        %v1837 = vshrl.u32 %v1836, 7
        %v1838 = vsub.s32 %v1835, %v1837
        %v1839 = vrot.slane %v1825, %v1838
        %v1840 = vcombine.low %v1807, %v1823
        %v1841 = vcombine.high %v1807, %v1823
        %v1843 = vunpack.c.l.s4 1934713408
        %v1844 = vunpack.c.0.s8 %v1843
        %v1845 = vlaneseq
        %v1846 = vshrl.u32 %v1845, 7
        %v1847 = vsub.s32 %v1844, %v1846
        %v1848 = vrot.slane %v1840, %v1847
        %v1850 = vunpack.c.l.s4 1934713408
        %v1851 = vunpack.c.0.s8 %v1850
        %v1852 = vlaneseq
        %v1853 = vshrl.u32 %v1852, 7
        %v1854 = vsub.s32 %v1851, %v1853
        %v1855 = vrot.slane %v1841, %v1854
        %v1856 = vcombine.high %v1832, 0.0
        %v1857 = vcombine.high %v1839, 0.0
        %v1858 = vcombine.high %v1848, 0.0
        %v1859 = vcombine.high %v1855, 0.0
        %v1860 = vcombine.low %v1771, %v1779
        %v1861 = vcombine.high %v1771, %v1779
        %v1863 = vunpack.c.l.s4 1983009808
        %v1864 = vunpack.c.0.s8 %v1863
        %v1865 = vlaneseq
        %v1866 = vshrl.u32 %v1865, 7
        %v1867 = vsub.s32 %v1864, %v1866
        %v1868 = vrot.slane %v1860, %v1867
        %v1870 = vunpack.c.l.s4 1983009808
        %v1871 = vunpack.c.0.s8 %v1870
        %v1872 = vlaneseq
        %v1873 = vshrl.u32 %v1872, 7
        %v1874 = vsub.s32 %v1871, %v1873
        %v1875 = vrot.slane %v1861, %v1874
        %v1876 = vcombine.low %v1775, %v1783
        %v1877 = vcombine.high %v1775, %v1783
        %v1879 = vunpack.c.l.s4 1983009808
        %v1880 = vunpack.c.0.s8 %v1879
        %v1881 = vlaneseq
        %v1882 = vshrl.u32 %v1881, 7
        %v1883 = vsub.s32 %v1880, %v1882
        %v1884 = vrot.slane %v1876, %v1883
        %v1886 = vunpack.c.l.s4 1983009808
        %v1887 = vunpack.c.0.s8 %v1886
        %v1888 = vlaneseq
        %v1889 = vshrl.u32 %v1888, 7
        %v1890 = vsub.s32 %v1887, %v1889
        %v1891 = vrot.slane %v1877, %v1890
        %v1892 = vcombine.low %v1868, %v1884
        %v1893 = vcombine.high %v1868, %v1884
        %v1895 = vunpack.c.l.s4 1934713408
        %v1896 = vunpack.c.0.s8 %v1895
        %v1897 = vlaneseq
        %v1898 = vshrl.u32 %v1897, 7
        %v1899 = vsub.s32 %v1896, %v1898
        %v1900 = vrot.slane %v1892, %v1899
        %v1902 = vunpack.c.l.s4 1934713408
        %v1903 = vunpack.c.0.s8 %v1902
        %v1904 = vlaneseq
        %v1905 = vshrl.u32 %v1904, 7
        %v1906 = vsub.s32 %v1903, %v1905
        %v1907 = vrot.slane %v1893, %v1906
        %v1908 = vcombine.low %v1875, %v1891
        %v1909 = vcombine.high %v1875, %v1891
        %v1911 = vunpack.c.l.s4 1934713408
        %v1912 = vunpack.c.0.s8 %v1911
        %v1913 = vlaneseq
        %v1914 = vshrl.u32 %v1913, 7
        %v1915 = vsub.s32 %v1912, %v1914
        %v1916 = vrot.slane %v1908, %v1915
        %v1918 = vunpack.c.l.s4 1934713408
        %v1919 = vunpack.c.0.s8 %v1918
        %v1920 = vlaneseq
        %v1921 = vshrl.u32 %v1920, 7
        %v1922 = vsub.s32 %v1919, %v1921
        %v1923 = vrot.slane %v1909, %v1922
        %v1924 = vcombine.high %v1900, 0.0
        %v1925 = vcombine.high %v1907, 0.0
        %v1926 = vcombine.high %v1916, 0.0
        %v1927 = vcombine.high %v1923, 0.0
        %1929 = vrot.lane.b32.xlu0 %v1856, 32
        %v1930 = vpop.permute.xlu0 %1929
        %1933 = vrot.lane.b32.xlu0 %v1839, 64
        %v1934 = vpop.permute.xlu0 %1933
        %1937 = vrot.lane.b32.xlu0 %v1857, 96
        %v1938 = vpop.permute.xlu0 %1937
        %1941 = vrot.lane.b32.xlu0 %v1858, 32
        %v1942 = vpop.permute.xlu0 %1941
        %1945 = vrot.lane.b32.xlu0 %v1855, 64
        %v1946 = vpop.permute.xlu0 %1945
        %1949 = vrot.lane.b32.xlu0 %v1859, 96
        %v1950 = vpop.permute.xlu0 %1949
        %1953 = vrot.lane.b32.xlu0 %v1924, 32
        %v1954 = vpop.permute.xlu0 %1953
        %1957 = vrot.lane.b32.xlu0 %v1907, 64
        %v1958 = vpop.permute.xlu0 %1957
        %1961 = vrot.lane.b32.xlu0 %v1925, 96
        %v1962 = vpop.permute.xlu0 %1961
        %1965 = vrot.lane.b32.xlu0 %v1926, 32
        %v1966 = vpop.permute.xlu0 %1965
        %1969 = vrot.lane.b32.xlu0 %v1923, 64
        %v1970 = vpop.permute.xlu0 %1969
        %1973 = vrot.lane.b32.xlu0 %v1927, 96
        %v1974 = vpop.permute.xlu0 %1973
        %v1976 = vsel %vm571, %v1832, %v1930
        %v1977 = vsel %vm573, %v1976, %v1934
        %v1978 = vsel %vm575, %v1977, %v1938
        %v1979 = vsel %vm571, %v1848, %v1942
        %v1980 = vsel %vm573, %v1979, %v1946
        %v1981 = vsel %vm575, %v1980, %v1950
        %v1982 = vsel %vm571, %v1900, %v1954
        %v1983 = vsel %vm573, %v1982, %v1958
        %v1984 = vsel %vm575, %v1983, %v1962
        %v1985 = vsel %vm571, %v1916, %v1966
        %v1986 = vsel %vm573, %v1985, %v1970
        %v1987 = vsel %vm575, %v1986, %v1974
        %1988 = vst [vmem:[#allocation2 + $0x60] sm:$0xf] %v1978
        %1989 = vst [vmem:[#allocation2 + $0x68] sm:$0xf] %v1981
        %1990 = vst [vmem:[#allocation2 + $0x70] sm:$0xf] %v1984
        %1991 = vst [vmem:[#allocation2 + $0x78] sm:$0xf] %v1987
        %1992 = vrot.lane.b32.xlu0 %v605, 126
        %v1993 = vpop.permute.xlu0 %1992
        %1994 = vrot.lane.b32.xlu0 %v607, 126
        %v1995 = vpop.permute.xlu0 %1994
        %1996 = vrot.lane.b32.xlu0 %v610, 126
        %v1997 = vpop.permute.xlu0 %1996
        %1998 = vrot.lane.b32.xlu0 %v612, 126
        %v1999 = vpop.permute.xlu0 %1998
        %2000 = vrot.lane.b32.xlu0 %v615, 126
        %v2001 = vpop.permute.xlu0 %2000
        %2002 = vrot.lane.b32.xlu0 %v617, 126
        %v2003 = vpop.permute.xlu0 %2002
        %2004 = vrot.lane.b32.xlu0 %v620, 126
        %v2005 = vpop.permute.xlu0 %2004
        %2006 = vrot.lane.b32.xlu0 %v622, 126
        %v2007 = vpop.permute.xlu0 %2006
        %v2016 = vcombine.low %v1993, %v2001
        %v2017 = vcombine.high %v1993, %v2001
        %v2019 = vunpack.c.l.s4 1983009808
        %v2020 = vunpack.c.0.s8 %v2019
        %v2021 = vlaneseq
        %v2022 = vshrl.u32 %v2021, 7
        %v2023 = vsub.s32 %v2020, %v2022
        %v2024 = vrot.slane %v2016, %v2023
        %v2026 = vunpack.c.l.s4 1983009808
        %v2027 = vunpack.c.0.s8 %v2026
        %v2028 = vlaneseq
        %v2029 = vshrl.u32 %v2028, 7
        %v2030 = vsub.s32 %v2027, %v2029
        %v2031 = vrot.slane %v2017, %v2030
        %v2032 = vcombine.low %v1997, %v2005
        %v2033 = vcombine.high %v1997, %v2005
        %v2035 = vunpack.c.l.s4 1983009808
        %v2036 = vunpack.c.0.s8 %v2035
        %v2037 = vlaneseq
        %v2038 = vshrl.u32 %v2037, 7
        %v2039 = vsub.s32 %v2036, %v2038
        %v2040 = vrot.slane %v2032, %v2039
        %v2042 = vunpack.c.l.s4 1983009808
        %v2043 = vunpack.c.0.s8 %v2042
        %v2044 = vlaneseq
        %v2045 = vshrl.u32 %v2044, 7
        %v2046 = vsub.s32 %v2043, %v2045
        %v2047 = vrot.slane %v2033, %v2046
        %v2048 = vcombine.low %v2024, %v2040
        %v2049 = vcombine.high %v2024, %v2040
        %v2051 = vunpack.c.l.s4 1934713408
        %v2052 = vunpack.c.0.s8 %v2051
        %v2053 = vlaneseq
        %v2054 = vshrl.u32 %v2053, 7
        %v2055 = vsub.s32 %v2052, %v2054
        %v2056 = vrot.slane %v2048, %v2055
        %v2058 = vunpack.c.l.s4 1934713408
        %v2059 = vunpack.c.0.s8 %v2058
        %v2060 = vlaneseq
        %v2061 = vshrl.u32 %v2060, 7
        %v2062 = vsub.s32 %v2059, %v2061
        %v2063 = vrot.slane %v2049, %v2062
        %v2064 = vcombine.low %v2031, %v2047
        %v2065 = vcombine.high %v2031, %v2047
        %v2067 = vunpack.c.l.s4 1934713408
        %v2068 = vunpack.c.0.s8 %v2067
        %v2069 = vlaneseq
        %v2070 = vshrl.u32 %v2069, 7
        %v2071 = vsub.s32 %v2068, %v2070
        %v2072 = vrot.slane %v2064, %v2071
        %v2074 = vunpack.c.l.s4 1934713408
        %v2075 = vunpack.c.0.s8 %v2074
        %v2076 = vlaneseq
        %v2077 = vshrl.u32 %v2076, 7
        %v2078 = vsub.s32 %v2075, %v2077
        %v2079 = vrot.slane %v2065, %v2078
        %v2080 = vcombine.high %v2056, 0.0
        %v2081 = vcombine.high %v2063, 0.0
        %v2082 = vcombine.high %v2072, 0.0
        %v2083 = vcombine.high %v2079, 0.0
        %v2084 = vcombine.low %v1995, %v2003
        %v2085 = vcombine.high %v1995, %v2003
        %v2087 = vunpack.c.l.s4 1983009808
        %v2088 = vunpack.c.0.s8 %v2087
        %v2089 = vlaneseq
        %v2090 = vshrl.u32 %v2089, 7
        %v2091 = vsub.s32 %v2088, %v2090
        %v2092 = vrot.slane %v2084, %v2091
        %v2094 = vunpack.c.l.s4 1983009808
        %v2095 = vunpack.c.0.s8 %v2094
        %v2096 = vlaneseq
        %v2097 = vshrl.u32 %v2096, 7
        %v2098 = vsub.s32 %v2095, %v2097
        %v2099 = vrot.slane %v2085, %v2098
        %v2100 = vcombine.low %v1999, %v2007
        %v2101 = vcombine.high %v1999, %v2007
        %v2103 = vunpack.c.l.s4 1983009808
        %v2104 = vunpack.c.0.s8 %v2103
        %v2105 = vlaneseq
        %v2106 = vshrl.u32 %v2105, 7
        %v2107 = vsub.s32 %v2104, %v2106
        %v2108 = vrot.slane %v2100, %v2107
        %v2110 = vunpack.c.l.s4 1983009808
        %v2111 = vunpack.c.0.s8 %v2110
        %v2112 = vlaneseq
        %v2113 = vshrl.u32 %v2112, 7
        %v2114 = vsub.s32 %v2111, %v2113
        %v2115 = vrot.slane %v2101, %v2114
        %v2116 = vcombine.low %v2092, %v2108
        %v2117 = vcombine.high %v2092, %v2108
        %v2119 = vunpack.c.l.s4 1934713408
        %v2120 = vunpack.c.0.s8 %v2119
        %v2121 = vlaneseq
        %v2122 = vshrl.u32 %v2121, 7
        %v2123 = vsub.s32 %v2120, %v2122
        %v2124 = vrot.slane %v2116, %v2123
        %v2126 = vunpack.c.l.s4 1934713408
        %v2127 = vunpack.c.0.s8 %v2126
        %v2128 = vlaneseq
        %v2129 = vshrl.u32 %v2128, 7
        %v2130 = vsub.s32 %v2127, %v2129
        %v2131 = vrot.slane %v2117, %v2130
        %v2132 = vcombine.low %v2099, %v2115
        %v2133 = vcombine.high %v2099, %v2115
        %v2135 = vunpack.c.l.s4 1934713408
        %v2136 = vunpack.c.0.s8 %v2135
        %v2137 = vlaneseq
        %v2138 = vshrl.u32 %v2137, 7
        %v2139 = vsub.s32 %v2136, %v2138
        %v2140 = vrot.slane %v2132, %v2139
        %v2142 = vunpack.c.l.s4 1934713408
        %v2143 = vunpack.c.0.s8 %v2142
        %v2144 = vlaneseq
        %v2145 = vshrl.u32 %v2144, 7
        %v2146 = vsub.s32 %v2143, %v2145
        %v2147 = vrot.slane %v2133, %v2146
        %v2148 = vcombine.high %v2124, 0.0
        %v2149 = vcombine.high %v2131, 0.0
        %v2150 = vcombine.high %v2140, 0.0
        %v2151 = vcombine.high %v2147, 0.0
        %2153 = vrot.lane.b32.xlu0 %v2080, 32
        %v2154 = vpop.permute.xlu0 %2153
        %2157 = vrot.lane.b32.xlu0 %v2063, 64
        %v2158 = vpop.permute.xlu0 %2157
        %2161 = vrot.lane.b32.xlu0 %v2081, 96
        %v2162 = vpop.permute.xlu0 %2161
        %2165 = vrot.lane.b32.xlu0 %v2082, 32
        %v2166 = vpop.permute.xlu0 %2165
        %2169 = vrot.lane.b32.xlu0 %v2079, 64
        %v2170 = vpop.permute.xlu0 %2169
        %2173 = vrot.lane.b32.xlu0 %v2083, 96
        %v2174 = vpop.permute.xlu0 %2173
        %2177 = vrot.lane.b32.xlu0 %v2148, 32
        %v2178 = vpop.permute.xlu0 %2177
        %2181 = vrot.lane.b32.xlu0 %v2131, 64
        %v2182 = vpop.permute.xlu0 %2181
        %2185 = vrot.lane.b32.xlu0 %v2149, 96
        %v2186 = vpop.permute.xlu0 %2185
        %2189 = vrot.lane.b32.xlu0 %v2150, 32
        %v2190 = vpop.permute.xlu0 %2189
        %2193 = vrot.lane.b32.xlu0 %v2147, 64
        %v2194 = vpop.permute.xlu0 %2193
        %2197 = vrot.lane.b32.xlu0 %v2151, 96
        %v2198 = vpop.permute.xlu0 %2197
        %v2200 = vsel %vm571, %v2056, %v2154
        %v2201 = vsel %vm573, %v2200, %v2158
        %v2202 = vsel %vm575, %v2201, %v2162
        %v2203 = vsel %vm571, %v2072, %v2166
        %v2204 = vsel %vm573, %v2203, %v2170
        %v2205 = vsel %vm575, %v2204, %v2174
        %v2206 = vsel %vm571, %v2124, %v2178
        %v2207 = vsel %vm573, %v2206, %v2182
        %v2208 = vsel %vm575, %v2207, %v2186
        %v2209 = vsel %vm571, %v2140, %v2190
        %v2210 = vsel %vm573, %v2209, %v2194
        %v2211 = vsel %vm575, %v2210, %v2198
        %v2216 = vrot.slane %v2202, 4
        %v2217 = vrot.slane %v2205, 4
        %v2218 = vrot.slane %v2208, 4
        %v2219 = vrot.slane %v2211, 4
        %2224 = vst [vmem:[#allocation2 + $0x60] sm:$0xf0] %v2216
        %2225 = vst [vmem:[#allocation2 + $0x68] sm:$0xf0] %v2217
        %2226 = vst [vmem:[#allocation2 + $0x70] sm:$0xf0] %v2218
        %2227 = vst [vmem:[#allocation2 + $0x78] sm:$0xf0] %v2219
        %2228 = vrot.lane.b32.xlu0 %v846, 126
        %v2229 = vpop.permute.xlu0 %2228
        %2230 = vrot.lane.b32.xlu0 %v848, 126
        %v2231 = vpop.permute.xlu0 %2230
        %2232 = vrot.lane.b32.xlu0 %v851, 126
        %v2233 = vpop.permute.xlu0 %2232
        %2234 = vrot.lane.b32.xlu0 %v853, 126
        %v2235 = vpop.permute.xlu0 %2234
        %2236 = vrot.lane.b32.xlu0 %v856, 126
        %v2237 = vpop.permute.xlu0 %2236
        %2238 = vrot.lane.b32.xlu0 %v858, 126
        %v2239 = vpop.permute.xlu0 %2238
        %2240 = vrot.lane.b32.xlu0 %v861, 126
        %v2241 = vpop.permute.xlu0 %2240
        %2242 = vrot.lane.b32.xlu0 %v863, 126
        %v2243 = vpop.permute.xlu0 %2242
        %v2252 = vcombine.low %v2229, %v2237
        %v2253 = vcombine.high %v2229, %v2237
        %v2255 = vunpack.c.l.s4 1983009808
        %v2256 = vunpack.c.0.s8 %v2255
        %v2257 = vlaneseq
        %v2258 = vshrl.u32 %v2257, 7
        %v2259 = vsub.s32 %v2256, %v2258
        %v2260 = vrot.slane %v2252, %v2259
        %v2262 = vunpack.c.l.s4 1983009808
        %v2263 = vunpack.c.0.s8 %v2262
        %v2264 = vlaneseq
        %v2265 = vshrl.u32 %v2264, 7
        %v2266 = vsub.s32 %v2263, %v2265
        %v2267 = vrot.slane %v2253, %v2266
        %v2268 = vcombine.low %v2233, %v2241
        %v2269 = vcombine.high %v2233, %v2241
        %v2271 = vunpack.c.l.s4 1983009808
        %v2272 = vunpack.c.0.s8 %v2271
        %v2273 = vlaneseq
        %v2274 = vshrl.u32 %v2273, 7
        %v2275 = vsub.s32 %v2272, %v2274
        %v2276 = vrot.slane %v2268, %v2275
        %v2278 = vunpack.c.l.s4 1983009808
        %v2279 = vunpack.c.0.s8 %v2278
        %v2280 = vlaneseq
        %v2281 = vshrl.u32 %v2280, 7
        %v2282 = vsub.s32 %v2279, %v2281
        %v2283 = vrot.slane %v2269, %v2282
        %v2284 = vcombine.low %v2260, %v2276
        %v2285 = vcombine.high %v2260, %v2276
        %v2287 = vunpack.c.l.s4 1934713408
        %v2288 = vunpack.c.0.s8 %v2287
        %v2289 = vlaneseq
        %v2290 = vshrl.u32 %v2289, 7
        %v2291 = vsub.s32 %v2288, %v2290
        %v2292 = vrot.slane %v2284, %v2291
        %v2294 = vunpack.c.l.s4 1934713408
        %v2295 = vunpack.c.0.s8 %v2294
        %v2296 = vlaneseq
        %v2297 = vshrl.u32 %v2296, 7
        %v2298 = vsub.s32 %v2295, %v2297
        %v2299 = vrot.slane %v2285, %v2298
        %v2300 = vcombine.low %v2267, %v2283
        %v2301 = vcombine.high %v2267, %v2283
        %v2303 = vunpack.c.l.s4 1934713408
        %v2304 = vunpack.c.0.s8 %v2303
        %v2305 = vlaneseq
        %v2306 = vshrl.u32 %v2305, 7
        %v2307 = vsub.s32 %v2304, %v2306
        %v2308 = vrot.slane %v2300, %v2307
        %v2310 = vunpack.c.l.s4 1934713408
        %v2311 = vunpack.c.0.s8 %v2310
        %v2312 = vlaneseq
        %v2313 = vshrl.u32 %v2312, 7
        %v2314 = vsub.s32 %v2311, %v2313
        %v2315 = vrot.slane %v2301, %v2314
        %v2316 = vcombine.high %v2292, 0.0
        %v2317 = vcombine.high %v2299, 0.0
        %v2318 = vcombine.high %v2308, 0.0
        %v2319 = vcombine.high %v2315, 0.0
        %v2320 = vcombine.low %v2231, %v2239
        %v2321 = vcombine.high %v2231, %v2239
        %v2323 = vunpack.c.l.s4 1983009808
        %v2324 = vunpack.c.0.s8 %v2323
        %v2325 = vlaneseq
        %v2326 = vshrl.u32 %v2325, 7
        %v2327 = vsub.s32 %v2324, %v2326
        %v2328 = vrot.slane %v2320, %v2327
        %v2330 = vunpack.c.l.s4 1983009808
        %v2331 = vunpack.c.0.s8 %v2330
        %v2332 = vlaneseq
        %v2333 = vshrl.u32 %v2332, 7
        %v2334 = vsub.s32 %v2331, %v2333
        %v2335 = vrot.slane %v2321, %v2334
        %v2336 = vcombine.low %v2235, %v2243
        %v2337 = vcombine.high %v2235, %v2243
        %v2339 = vunpack.c.l.s4 1983009808
        %v2340 = vunpack.c.0.s8 %v2339
        %v2341 = vlaneseq
        %v2342 = vshrl.u32 %v2341, 7
        %v2343 = vsub.s32 %v2340, %v2342
        %v2344 = vrot.slane %v2336, %v2343
        %v2346 = vunpack.c.l.s4 1983009808
        %v2347 = vunpack.c.0.s8 %v2346
        %v2348 = vlaneseq
        %v2349 = vshrl.u32 %v2348, 7
        %v2350 = vsub.s32 %v2347, %v2349
        %v2351 = vrot.slane %v2337, %v2350
        %v2352 = vcombine.low %v2328, %v2344
        %v2353 = vcombine.high %v2328, %v2344
        %v2355 = vunpack.c.l.s4 1934713408
        %v2356 = vunpack.c.0.s8 %v2355
        %v2357 = vlaneseq
        %v2358 = vshrl.u32 %v2357, 7
        %v2359 = vsub.s32 %v2356, %v2358
        %v2360 = vrot.slane %v2352, %v2359
        %v2362 = vunpack.c.l.s4 1934713408
        %v2363 = vunpack.c.0.s8 %v2362
        %v2364 = vlaneseq
        %v2365 = vshrl.u32 %v2364, 7
        %v2366 = vsub.s32 %v2363, %v2365
        %v2367 = vrot.slane %v2353, %v2366
        %v2368 = vcombine.low %v2335, %v2351
        %v2369 = vcombine.high %v2335, %v2351
        %v2371 = vunpack.c.l.s4 1934713408
        %v2372 = vunpack.c.0.s8 %v2371
        %v2373 = vlaneseq
        %v2374 = vshrl.u32 %v2373, 7
        %v2375 = vsub.s32 %v2372, %v2374
        %v2376 = vrot.slane %v2368, %v2375
        %v2378 = vunpack.c.l.s4 1934713408
        %v2379 = vunpack.c.0.s8 %v2378
        %v2380 = vlaneseq
        %v2381 = vshrl.u32 %v2380, 7
        %v2382 = vsub.s32 %v2379, %v2381
        %v2383 = vrot.slane %v2369, %v2382
        %v2384 = vcombine.high %v2360, 0.0
        %v2385 = vcombine.high %v2367, 0.0
        %v2386 = vcombine.high %v2376, 0.0
        %v2387 = vcombine.high %v2383, 0.0
        %2389 = vrot.lane.b32.xlu0 %v2316, 32
        %v2390 = vpop.permute.xlu0 %2389
        %2393 = vrot.lane.b32.xlu0 %v2299, 64
        %v2394 = vpop.permute.xlu0 %2393
        %2397 = vrot.lane.b32.xlu0 %v2317, 96
        %v2398 = vpop.permute.xlu0 %2397
        %2401 = vrot.lane.b32.xlu0 %v2318, 32
        %v2402 = vpop.permute.xlu0 %2401
        %2405 = vrot.lane.b32.xlu0 %v2315, 64
        %v2406 = vpop.permute.xlu0 %2405
        %2409 = vrot.lane.b32.xlu0 %v2319, 96
        %v2410 = vpop.permute.xlu0 %2409
        %2413 = vrot.lane.b32.xlu0 %v2384, 32
        %v2414 = vpop.permute.xlu0 %2413
        %2417 = vrot.lane.b32.xlu0 %v2367, 64
        %v2418 = vpop.permute.xlu0 %2417
        %2421 = vrot.lane.b32.xlu0 %v2385, 96
        %v2422 = vpop.permute.xlu0 %2421
        %2425 = vrot.lane.b32.xlu0 %v2386, 32
        %v2426 = vpop.permute.xlu0 %2425
        %2429 = vrot.lane.b32.xlu0 %v2383, 64
        %v2430 = vpop.permute.xlu0 %2429
        %2433 = vrot.lane.b32.xlu0 %v2387, 96
        %v2434 = vpop.permute.xlu0 %2433
        %v2436 = vsel %vm571, %v2292, %v2390
        %v2437 = vsel %vm573, %v2436, %v2394
        %v2438 = vsel %vm575, %v2437, %v2398
        %v2439 = vsel %vm571, %v2308, %v2402
        %v2440 = vsel %vm573, %v2439, %v2406
        %v2441 = vsel %vm575, %v2440, %v2410
        %v2442 = vsel %vm571, %v2360, %v2414
        %v2443 = vsel %vm573, %v2442, %v2418
        %v2444 = vsel %vm575, %v2443, %v2422
        %v2445 = vsel %vm571, %v2376, %v2426
        %v2446 = vsel %vm573, %v2445, %v2430
        %v2447 = vsel %vm575, %v2446, %v2434
        %2448 = vst [vmem:[#allocation2 + $0x80] sm:$0xf] %v2438
        %2449 = vst [vmem:[#allocation2 + $0x88] sm:$0xf] %v2441
        %2450 = vst [vmem:[#allocation2 + $0x90] sm:$0xf] %v2444
        %2451 = vst [vmem:[#allocation2 + $0x98] sm:$0xf] %v2447
        %v2452 = vld [vmem:[#allocation2] sm:$0xff]
        %v2453 = vld [vmem:[#allocation2 + $0x8] sm:$0xff]
        %v2454 = vld [vmem:[#allocation2 + $0x10] sm:$0xff]
        %v2455 = vld [vmem:[#allocation2 + $0x18] sm:$0xff]
        %v2456 = vld [vmem:[#allocation2 + $0x20] sm:$0xff]
        %v2457 = vld [vmem:[#allocation2 + $0x28] sm:$0xff]
        %v2458 = vld [vmem:[#allocation2 + $0x30] sm:$0xff]
        %v2459 = vld [vmem:[#allocation2 + $0x38] sm:$0xff]
        %v2460 = vld [vmem:[#allocation2 + $0x40] sm:$0xff]
        %v2461 = vld [vmem:[#allocation2 + $0x48] sm:$0xff]
        %v2462 = vld [vmem:[#allocation2 + $0x50] sm:$0xff]
        %v2463 = vld [vmem:[#allocation2 + $0x58] sm:$0xff]
        %v2464 = vld [vmem:[#allocation2 + $0x60] sm:$0xff]
        %v2465 = vld [vmem:[#allocation2 + $0x68] sm:$0xff]
        %v2466 = vld [vmem:[#allocation2 + $0x70] sm:$0xff]
        %v2467 = vld [vmem:[#allocation2 + $0x78] sm:$0xff]
        %v2468 = vld [vmem:[#allocation2 + $0x80] sm:$0xff]
        %v2469 = vld [vmem:[#allocation2 + $0x88] sm:$0xff]
        %v2470 = vld [vmem:[#allocation2 + $0x90] sm:$0xff]
        %v2471 = vld [vmem:[#allocation2 + $0x98] sm:$0xff]
        %vm2472 = vcmask 326656
        %v2474 = vsel %vm2472, %v207, 0
        %2476 = vmatprep.subr.mxu0 0.0
        %2477 = vmatpush1.msra.mxu0 0.0
        %2478 = vmatprep.subr.mxu0 0.0
        %2479 = vmatpush1.msra.mxu0 0.0
        %2480 = vmatprep.subr.mxu0 0.0
        %2481 = vmatpush1.msra.mxu0 0.0
        %2482 = vmatprep.subr.mxu0 0.0
        %2483 = vmatpush1.msra.mxu0 0.0
        %2484 = vmatprep.subr.mxu0 0.0
        %2485 = vmatpush1.msra.mxu0 0.0
        %2486 = vmatprep.subr.mxu0 0.0
        %2487 = vmatpush1.msra.mxu0 0.0
        %2488 = vmatprep.subr.mxu0 0.0
        %2489 = vmatpush1.msra.mxu0 0.0
        %2490 = vmatprep.subr.mxu0 0.0
        %2491 = vmatpush1.msra.mxu0 0.0
        %2492 = vmatprep.subr.mxu0 0.0
        %2493 = vmatpush1.msra.mxu0 0.0
        %2494 = vmatprep.subr.mxu0 0.0
        %2495 = vmatpush1.msra.mxu0 0.0
        %2496 = vmatprep.subr.mxu0 0.0
        %2497 = vmatpush1.msra.mxu0 0.0
        %2498 = vmatprep.subr.mxu0 %v2469
        %2499 = vmatpush1.msra.mxu0 %v2468
        %2500 = vmatprep.subr.mxu0 %v2465
        %2501 = vmatpush1.msra.mxu0 %v2464
        %2502 = vmatprep.subr.mxu0 %v2461
        %2503 = vmatpush1.msra.mxu0 %v2460
        %2504 = vmatprep.subr.mxu0 %v2457
        %2505 = vmatpush1.msra.mxu0 %v2456
        %2506 = vmatprep.subr.mxu0 %v2453
        %2507 = vmatpush1.msra.mxu0 %v2452
        %2508 = vmatprep.subr.mxu0 0.0
        %2509 = vmatpush2.msra.mxu0 0.0
        %2510 = vmatprep.subr.mxu0 0.0
        %2511 = vmatpush2.msra.mxu0 0.0
        %2512 = vmatprep.subr.mxu0 0.0
        %2513 = vmatpush2.msra.mxu0 0.0
        %2514 = vmatprep.subr.mxu0 0.0
        %2515 = vmatpush2.msra.mxu0 0.0
        %2516 = vmatprep.subr.mxu0 0.0
        %2517 = vmatpush2.msra.mxu0 0.0
        %2518 = vmatprep.subr.mxu0 0.0
        %2519 = vmatpush2.msra.mxu0 0.0
        %2520 = vmatprep.subr.mxu0 0.0
        %2521 = vmatpush2.msra.mxu0 0.0
        %2522 = vmatprep.subr.mxu0 0.0
        %2523 = vmatpush2.msra.mxu0 0.0
        %2524 = vmatprep.subr.mxu0 0.0
        %2525 = vmatpush2.msra.mxu0 0.0
        %2526 = vmatprep.subr.mxu0 0.0
        %2527 = vmatpush2.msra.mxu0 0.0
        %2528 = vmatprep.subr.mxu0 0.0
        %2529 = vmatpush2.msra.mxu0 0.0
        %2530 = vmatprep.subr.mxu0 0.0
        %2531 = vmatpush2.msra.mxu0 0.0
        %2532 = vmatprep.subr.mxu0 0.0
        %2533 = vmatpush2.msra.mxu0 0.0
        %2534 = vmatprep.subr.mxu0 0.0
        %2535 = vmatpush2.msra.mxu0 0.0
        %2536 = vmatprep.subr.mxu0 0.0
        %2537 = vmatpush2.msra.mxu0 0.0
        %2538 = vmatprep.subr.mxu0 0.0
        %2539 = vmatpush2.msra.mxu0 0.0
        %2540 = vmatprep.mubr.f32.mxu0 0.0
        %2541 = vmatmul.mubr.f32.gmra.mxu0 %v2474
        %v2542 = vpop.f32.mrf.mxu0
        %v2543 = vadd.f32 0.0, %v2542
        %v2544 = vpop.f32.mrf.mxu0
        %v2545 = vadd.f32 0.0, %v2544
        %2546 = vdwg.mxu0
        %2547 = vmatprep.subr.mxu0 0.0
        %2548 = vmatpush1.msra.mxu0 0.0
        %2549 = vmatprep.subr.mxu0 0.0
        %2550 = vmatpush1.msra.mxu0 0.0
        %2551 = vmatprep.subr.mxu0 0.0
        %2552 = vmatpush1.msra.mxu0 0.0
        %2553 = vmatprep.subr.mxu0 0.0
        %2554 = vmatpush1.msra.mxu0 0.0
        %2555 = vmatprep.subr.mxu0 0.0
        %2556 = vmatpush1.msra.mxu0 0.0
        %2557 = vmatprep.subr.mxu0 0.0
        %2558 = vmatpush1.msra.mxu0 0.0
        %2559 = vmatprep.subr.mxu0 0.0
        %2560 = vmatpush1.msra.mxu0 0.0
        %2561 = vmatprep.subr.mxu0 0.0
        %2562 = vmatpush1.msra.mxu0 0.0
        %2563 = vmatprep.subr.mxu0 0.0
        %2564 = vmatpush1.msra.mxu0 0.0
        %2565 = vmatprep.subr.mxu0 0.0
        %2566 = vmatpush1.msra.mxu0 0.0
        %2567 = vmatprep.subr.mxu0 0.0
        %2568 = vmatpush1.msra.mxu0 0.0
        %2569 = vmatprep.subr.mxu0 %v2471
        %2570 = vmatpush1.msra.mxu0 %v2470
        %2571 = vmatprep.subr.mxu0 %v2467
        %2572 = vmatpush1.msra.mxu0 %v2466
        %2573 = vmatprep.subr.mxu0 %v2463
        %2574 = vmatpush1.msra.mxu0 %v2462
        %2575 = vmatprep.subr.mxu0 %v2459
        %2576 = vmatpush1.msra.mxu0 %v2458
        %2577 = vmatprep.subr.mxu0 %v2455
        %2578 = vmatpush1.msra.mxu0 %v2454
        %2579 = vmatprep.subr.mxu0 0.0
        %2580 = vmatpush2.msra.mxu0 0.0
        %2581 = vmatprep.subr.mxu0 0.0
        %2582 = vmatpush2.msra.mxu0 0.0
        %2583 = vmatprep.subr.mxu0 0.0
        %2584 = vmatpush2.msra.mxu0 0.0
        %2585 = vmatprep.subr.mxu0 0.0
        %2586 = vmatpush2.msra.mxu0 0.0
        %2587 = vmatprep.subr.mxu0 0.0
        %2588 = vmatpush2.msra.mxu0 0.0
        %2589 = vmatprep.subr.mxu0 0.0
        %2590 = vmatpush2.msra.mxu0 0.0
        %2591 = vmatprep.subr.mxu0 0.0
        %2592 = vmatpush2.msra.mxu0 0.0
        %2593 = vmatprep.subr.mxu0 0.0
        %2594 = vmatpush2.msra.mxu0 0.0
        %2595 = vmatprep.subr.mxu0 0.0
        %2596 = vmatpush2.msra.mxu0 0.0
        %2597 = vmatprep.subr.mxu0 0.0
        %2598 = vmatpush2.msra.mxu0 0.0
        %2599 = vmatprep.subr.mxu0 0.0
        %2600 = vmatpush2.msra.mxu0 0.0
        %2601 = vmatprep.subr.mxu0 0.0
        %2602 = vmatpush2.msra.mxu0 0.0
        %2603 = vmatprep.subr.mxu0 0.0
        %2604 = vmatpush2.msra.mxu0 0.0
        %2605 = vmatprep.subr.mxu0 0.0
        %2606 = vmatpush2.msra.mxu0 0.0
        %2607 = vmatprep.subr.mxu0 0.0
        %2608 = vmatpush2.msra.mxu0 0.0
        %2609 = vmatprep.subr.mxu0 0.0
        %2610 = vmatpush2.msra.mxu0 0.0
        %2611 = vmatprep.mubr.f32.mxu0 0.0
        %2612 = vmatmul.mubr.f32.gmra.mxu0 %v2474
        %v2613 = vpop.f32.mrf.mxu0
        %v2614 = vadd.f32 0.0, %v2613
        %v2615 = vpop.f32.mrf.mxu0
        %v2616 = vadd.f32 0.0, %v2615
        %2617 = vdwg.mxu0
        %v2618 = vadd.f32 %v2543, %v2545
        %v2619 = vadd.f32 %v2618, %v2614
        %v2620 = vadd.f32 %v2619, %v2616
        %2621 = vadd.xlane.f32.xlu0 %v2620
        %v2622 = vpop.xlane.xlu0 %2621
        %v2623 = vadd.f32 %v2622, 0.0
        %v2624 = vmul.f32 %v2543, %v2543
        %v2625 = vmul.f32 %v2545, %v2545
        %v2626 = vmul.f32 %v2614, %v2614
        %v2627 = vmul.f32 %v2616, %v2616
        %v2628 = vadd.f32 %v2624, %v2625
        %v2629 = vadd.f32 %v2628, %v2626
        %v2630 = vadd.f32 %v2629, %v2627
        %2631 = vadd.xlane.f32.xlu0 %v2630
        %v2632 = vpop.xlane.xlu0 %2631
        %v2633 = vadd.f32 %v2632, 0.0
        %2634 = vst [vmem:[%s190] sm:$0xff] %v2543
        %2635 = vst [vmem:[%s190 + $0x8] sm:$0xff] %v2545
        %2636 = vst [vmem:[%s190 + $0x10] sm:$0xff] %v2614
        %2637 = vst [vmem:[%s190 + $0x18] sm:$0xff] %v2616
        %v2638 = vld [vmem:[%s195 + $0xa] sm:$0xff]
        %v2639 = vld [vmem:[%s195 + $0x12] sm:$0xff]
        %v2640 = vld [vmem:[%s195 + $0x1a] sm:$0xff]
        %v2641 = vld [vmem:[%s195 + $0x32] sm:$0xff]
        %v2642 = vld [vmem:[%s195 + $0x3a] sm:$0xff]
        %v2643 = vld [vmem:[%s195 + $0x42] sm:$0xff]
        %v2644 = vld [vmem:[%s195 + $0x5a] sm:$0xff]
        %v2645 = vld [vmem:[%s195 + $0x62] sm:$0xff]
        %v2646 = vld [vmem:[%s195 + $0x6a] sm:$0xff]
        %v2647 = vld [vmem:[%s195 + $0x82] sm:$0xff]
        %v2648 = vld [vmem:[%s195 + $0x8a] sm:$0xff]
        %v2649 = vld [vmem:[%s195 + $0x92] sm:$0xff]
        %v2650 = vld [vmem:[%s2] sm:$0xff]
        %v2651 = vld [vmem:[%s2 + $0x8] sm:$0xff]
        %v2653 = vsel %vm225, %v2638, 0
        %v2656 = vsel %vm225, %v2639, 0
        %v2659 = vsel %vm225, %v2640, 0
        %v2662 = vsel %vm225, %v2641, 0
        %v2665 = vsel %vm225, %v2642, 0
        %v2668 = vsel %vm225, %v2643, 0
        %v2671 = vsel %vm225, %v2644, 0
        %v2674 = vsel %vm225, %v2645, 0
        %v2677 = vsel %vm225, %v2646, 0
        %v2680 = vsel %vm225, %v2647, 0
        %v2683 = vsel %vm225, %v2648, 0
        %v2686 = vsel %vm225, %v2649, 0
        %2688 = vmatprep.subr.mxu0 0.0
        %2689 = vmatpush1.msra.mxu0 0.0
        %2690 = vmatprep.subr.mxu0 0.0
        %2691 = vmatpush1.msra.mxu0 0.0
        %2692 = vmatprep.subr.mxu0 0.0
        %2693 = vmatpush1.msra.mxu0 0.0
        %2694 = vmatprep.subr.mxu0 0.0
        %2695 = vmatpush1.msra.mxu0 0.0
        %2696 = vmatprep.subr.mxu0 0.0
        %2697 = vmatpush1.msra.mxu0 0.0
        %2698 = vmatprep.subr.mxu0 0.0
        %2699 = vmatpush1.msra.mxu0 0.0
        %2700 = vmatprep.subr.mxu0 0.0
        %2701 = vmatpush1.msra.mxu0 0.0
        %2702 = vmatprep.subr.mxu0 0.0
        %2703 = vmatpush1.msra.mxu0 0.0
        %2704 = vmatprep.subr.mxu0 0.0
        %2705 = vmatpush1.msra.mxu0 0.0
        %2706 = vmatprep.subr.mxu0 0.0
        %2707 = vmatpush1.msra.mxu0 0.0
        %2708 = vmatprep.subr.mxu0 0.0
        %2709 = vmatpush1.msra.mxu0 0.0
        %2710 = vmatprep.subr.mxu0 0.0
        %2711 = vmatpush1.msra.mxu0 0.0
        %2712 = vmatprep.subr.mxu0 0.0
        %2713 = vmatpush1.msra.mxu0 0.0
        %2714 = vmatprep.subr.mxu0 0.0
        %2715 = vmatpush1.msra.mxu0 0.0
        %2716 = vmatprep.subr.mxu0 0.0
        %2717 = vmatpush1.msra.mxu0 %v2651
        %2718 = vmatprep.subr.mxu0 0.0
        %2719 = vmatpush1.msra.mxu0 %v2650
        %2720 = vmatprep.subr.mxu0 0.0
        %2721 = vmatpush2.msra.mxu0 0.0
        %2722 = vmatprep.subr.mxu0 0.0
        %2723 = vmatpush2.msra.mxu0 0.0
        %2724 = vmatprep.subr.mxu0 0.0
        %2725 = vmatpush2.msra.mxu0 0.0
        %2726 = vmatprep.subr.mxu0 0.0
        %2727 = vmatpush2.msra.mxu0 0.0
        %2728 = vmatprep.subr.mxu0 0.0
        %2729 = vmatpush2.msra.mxu0 0.0
        %2730 = vmatprep.subr.mxu0 0.0
        %2731 = vmatpush2.msra.mxu0 0.0
        %2732 = vmatprep.subr.mxu0 0.0
        %2733 = vmatpush2.msra.mxu0 0.0
        %2734 = vmatprep.subr.mxu0 0.0
        %2735 = vmatpush2.msra.mxu0 0.0
        %2736 = vmatprep.subr.mxu0 0.0
        %2737 = vmatpush2.msra.mxu0 0.0
        %2738 = vmatprep.subr.mxu0 0.0
        %2739 = vmatpush2.msra.mxu0 0.0
        %2740 = vmatprep.subr.mxu0 0.0
        %2741 = vmatpush2.msra.mxu0 0.0
        %2742 = vmatprep.subr.mxu0 0.0
        %2743 = vmatpush2.msra.mxu0 0.0
        %2744 = vmatprep.subr.mxu0 0.0
        %2745 = vmatpush2.msra.mxu0 0.0
        %2746 = vmatprep.subr.mxu0 0.0
        %2747 = vmatpush2.msra.mxu0 0.0
        %2748 = vmatprep.subr.mxu0 0.0
        %2749 = vmatpush2.msra.mxu0 0.0
        %2750 = vmatprep.subr.mxu0 0.0
        %2751 = vmatpush2.msra.mxu0 0.0
        %2752 = vmatprep.mubr.f32.mxu0 0.0
        %2753 = vmatmul.mubr.f32.gmra.mxu0 %v2653
        %v2754 = vpop.f32.mrf.mxu0
        %v2755 = vadd.f32 0.0, %v2754
        %v2756 = vpop.f32.mrf.mxu0
        %2757 = vmatprep.mubr.f32.mxu0 0.0
        %2758 = vmatmul.mubr.f32.gmra.mxu0 %v2656
        %v2759 = vpop.f32.mrf.mxu0
        %v2760 = vadd.f32 0.0, %v2759
        %v2761 = vpop.f32.mrf.mxu0
        %2762 = vmatprep.mubr.f32.mxu0 0.0
        %2763 = vmatmul.mubr.f32.gmra.mxu0 %v2659
        %v2764 = vpop.f32.mrf.mxu0
        %v2765 = vadd.f32 0.0, %v2764
        %v2766 = vpop.f32.mrf.mxu0
        %2767 = vmatprep.mubr.f32.mxu0 0.0
        %2768 = vmatmul.mubr.f32.gmra.mxu0 %v2662
        %v2769 = vpop.f32.mrf.mxu0
        %v2770 = vadd.f32 0.0, %v2769
        %v2771 = vpop.f32.mrf.mxu0
        %2772 = vmatprep.mubr.f32.mxu0 0.0
        %2773 = vmatmul.mubr.f32.gmra.mxu0 %v2665
        %v2774 = vpop.f32.mrf.mxu0
        %v2775 = vadd.f32 0.0, %v2774
        %v2776 = vpop.f32.mrf.mxu0
        %2777 = vmatprep.mubr.f32.mxu0 0.0
        %2778 = vmatmul.mubr.f32.gmra.mxu0 %v2668
        %v2779 = vpop.f32.mrf.mxu0
        %v2780 = vadd.f32 0.0, %v2779
        %v2781 = vpop.f32.mrf.mxu0
        %2782 = vmatprep.mubr.f32.mxu0 0.0
        %2783 = vmatmul.mubr.f32.gmra.mxu0 %v2671
        %v2784 = vpop.f32.mrf.mxu0
        %v2785 = vadd.f32 0.0, %v2784
        %v2786 = vpop.f32.mrf.mxu0
        %2787 = vmatprep.mubr.f32.mxu0 0.0
        %2788 = vmatmul.mubr.f32.gmra.mxu0 %v2674
        %v2789 = vpop.f32.mrf.mxu0
        %v2790 = vadd.f32 0.0, %v2789
        %v2791 = vpop.f32.mrf.mxu0
        %2792 = vmatprep.mubr.f32.mxu0 0.0
        %2793 = vmatmul.mubr.f32.gmra.mxu0 %v2677
        %v2794 = vpop.f32.mrf.mxu0
        %v2795 = vadd.f32 0.0, %v2794
        %v2796 = vpop.f32.mrf.mxu0
        %2797 = vmatprep.mubr.f32.mxu0 0.0
        %2798 = vmatmul.mubr.f32.gmra.mxu0 %v2680
        %v2799 = vpop.f32.mrf.mxu0
        %v2800 = vadd.f32 0.0, %v2799
        %v2801 = vpop.f32.mrf.mxu0
        %2802 = vmatprep.mubr.f32.mxu0 0.0
        %2803 = vmatmul.mubr.f32.gmra.mxu0 %v2683
        %v2804 = vpop.f32.mrf.mxu0
        %v2805 = vadd.f32 0.0, %v2804
        %v2806 = vpop.f32.mrf.mxu0
        %2807 = vmatprep.mubr.f32.mxu0 0.0
        %2808 = vmatmul.mubr.f32.gmra.mxu0 %v2686
        %v2809 = vpop.f32.mrf.mxu0
        %v2810 = vadd.f32 0.0, %v2809
        %v2811 = vpop.f32.mrf.mxu0
        %2812 = vdwg.mxu0
        %vm2825 = vcmask 1041408
        %v2826 = vrot.slane %v2755, 6
        %v2827 = vrot.slane %v2760, 6
        %v2828 = vsel %vm2825, %v2826, %v2827
        %v2829 = vrot.slane %v2765, 6
        %v2830 = vsel %vm2825, %v2827, %v2829
        %v2831 = vrot.slane %v2770, 6
        %v2832 = vrot.slane %v2775, 6
        %v2833 = vsel %vm2825, %v2831, %v2832
        %v2834 = vrot.slane %v2780, 6
        %v2835 = vsel %vm2825, %v2832, %v2834
        %v2836 = vrot.slane %v2785, 6
        %v2837 = vrot.slane %v2790, 6
        %v2838 = vsel %vm2825, %v2836, %v2837
        %v2839 = vrot.slane %v2795, 6
        %v2840 = vsel %vm2825, %v2837, %v2839
        %v2841 = vrot.slane %v2800, 6
        %v2842 = vrot.slane %v2805, 6
        %v2843 = vsel %vm2825, %v2841, %v2842
        %v2844 = vrot.slane %v2810, 6
        %v2845 = vsel %vm2825, %v2842, %v2844
        %v2854 = vcombine.low %v2828, %v2838
        %v2855 = vcombine.high %v2828, %v2838
        %v2857 = vunpack.c.l.s4 1983009808
        %v2858 = vunpack.c.0.s8 %v2857
        %v2859 = vlaneseq
        %v2860 = vshrl.u32 %v2859, 7
        %v2861 = vsub.s32 %v2858, %v2860
        %v2862 = vrot.slane %v2854, %v2861
        %v2864 = vunpack.c.l.s4 1983009808
        %v2865 = vunpack.c.0.s8 %v2864
        %v2866 = vlaneseq
        %v2867 = vshrl.u32 %v2866, 7
        %v2868 = vsub.s32 %v2865, %v2867
        %v2869 = vrot.slane %v2855, %v2868
        %v2870 = vcombine.low %v2833, %v2843
        %v2871 = vcombine.high %v2833, %v2843
        %v2873 = vunpack.c.l.s4 1983009808
        %v2874 = vunpack.c.0.s8 %v2873
        %v2875 = vlaneseq
        %v2876 = vshrl.u32 %v2875, 7
        %v2877 = vsub.s32 %v2874, %v2876
        %v2878 = vrot.slane %v2870, %v2877
        %v2880 = vunpack.c.l.s4 1983009808
        %v2881 = vunpack.c.0.s8 %v2880
        %v2882 = vlaneseq
        %v2883 = vshrl.u32 %v2882, 7
        %v2884 = vsub.s32 %v2881, %v2883
        %v2885 = vrot.slane %v2871, %v2884
        %v2886 = vcombine.low %v2862, %v2878
        %v2887 = vcombine.high %v2862, %v2878
        %v2889 = vunpack.c.l.s4 1934713408
        %v2890 = vunpack.c.0.s8 %v2889
        %v2891 = vlaneseq
        %v2892 = vshrl.u32 %v2891, 7
        %v2893 = vsub.s32 %v2890, %v2892
        %v2894 = vrot.slane %v2886, %v2893
        %v2896 = vunpack.c.l.s4 1934713408
        %v2897 = vunpack.c.0.s8 %v2896
        %v2898 = vlaneseq
        %v2899 = vshrl.u32 %v2898, 7
        %v2900 = vsub.s32 %v2897, %v2899
        %v2901 = vrot.slane %v2887, %v2900
        %v2902 = vcombine.low %v2869, %v2885
        %v2903 = vcombine.high %v2869, %v2885
        %v2905 = vunpack.c.l.s4 1934713408
        %v2906 = vunpack.c.0.s8 %v2905
        %v2907 = vlaneseq
        %v2908 = vshrl.u32 %v2907, 7
        %v2909 = vsub.s32 %v2906, %v2908
        %v2910 = vrot.slane %v2902, %v2909
        %v2912 = vunpack.c.l.s4 1934713408
        %v2913 = vunpack.c.0.s8 %v2912
        %v2914 = vlaneseq
        %v2915 = vshrl.u32 %v2914, 7
        %v2916 = vsub.s32 %v2913, %v2915
        %v2917 = vrot.slane %v2903, %v2916
        %v2918 = vcombine.high %v2894, 0.0
        %v2919 = vcombine.high %v2901, 0.0
        %v2920 = vcombine.high %v2910, 0.0
        %v2921 = vcombine.high %v2917, 0.0
        %v2922 = vcombine.low %v2830, %v2840
        %v2923 = vcombine.high %v2830, %v2840
        %v2925 = vunpack.c.l.s4 1983009808
        %v2926 = vunpack.c.0.s8 %v2925
        %v2927 = vlaneseq
        %v2928 = vshrl.u32 %v2927, 7
        %v2929 = vsub.s32 %v2926, %v2928
        %v2930 = vrot.slane %v2922, %v2929
        %v2932 = vunpack.c.l.s4 1983009808
        %v2933 = vunpack.c.0.s8 %v2932
        %v2934 = vlaneseq
        %v2935 = vshrl.u32 %v2934, 7
        %v2936 = vsub.s32 %v2933, %v2935
        %v2937 = vrot.slane %v2923, %v2936
        %v2938 = vcombine.low %v2835, %v2845
        %v2939 = vcombine.high %v2835, %v2845
        %v2941 = vunpack.c.l.s4 1983009808
        %v2942 = vunpack.c.0.s8 %v2941
        %v2943 = vlaneseq
        %v2944 = vshrl.u32 %v2943, 7
        %v2945 = vsub.s32 %v2942, %v2944
        %v2946 = vrot.slane %v2938, %v2945
        %v2948 = vunpack.c.l.s4 1983009808
        %v2949 = vunpack.c.0.s8 %v2948
        %v2950 = vlaneseq
        %v2951 = vshrl.u32 %v2950, 7
        %v2952 = vsub.s32 %v2949, %v2951
        %v2953 = vrot.slane %v2939, %v2952
        %v2954 = vcombine.low %v2930, %v2946
        %v2955 = vcombine.high %v2930, %v2946
        %v2957 = vunpack.c.l.s4 1934713408
        %v2958 = vunpack.c.0.s8 %v2957
        %v2959 = vlaneseq
        %v2960 = vshrl.u32 %v2959, 7
        %v2961 = vsub.s32 %v2958, %v2960
        %v2962 = vrot.slane %v2954, %v2961
        %v2964 = vunpack.c.l.s4 1934713408
        %v2965 = vunpack.c.0.s8 %v2964
        %v2966 = vlaneseq
        %v2967 = vshrl.u32 %v2966, 7
        %v2968 = vsub.s32 %v2965, %v2967
        %v2969 = vrot.slane %v2955, %v2968
        %v2970 = vcombine.low %v2937, %v2953
        %v2971 = vcombine.high %v2937, %v2953
        %v2973 = vunpack.c.l.s4 1934713408
        %v2974 = vunpack.c.0.s8 %v2973
        %v2975 = vlaneseq
        %v2976 = vshrl.u32 %v2975, 7
        %v2977 = vsub.s32 %v2974, %v2976
        %v2978 = vrot.slane %v2970, %v2977
        %v2980 = vunpack.c.l.s4 1934713408
        %v2981 = vunpack.c.0.s8 %v2980
        %v2982 = vlaneseq
        %v2983 = vshrl.u32 %v2982, 7
        %v2984 = vsub.s32 %v2981, %v2983
        %v2985 = vrot.slane %v2971, %v2984
        %v2986 = vcombine.high %v2962, 0.0
        %v2987 = vcombine.high %v2969, 0.0
        %v2988 = vcombine.high %v2978, 0.0
        %v2989 = vcombine.high %v2985, 0.0
        %2991 = vrot.lane.b32.xlu0 %v2918, 32
        %v2992 = vpop.permute.xlu0 %2991
        %2995 = vrot.lane.b32.xlu0 %v2901, 64
        %v2996 = vpop.permute.xlu0 %2995
        %2999 = vrot.lane.b32.xlu0 %v2919, 96
        %v3000 = vpop.permute.xlu0 %2999
        %3003 = vrot.lane.b32.xlu0 %v2920, 32
        %v3004 = vpop.permute.xlu0 %3003
        %3007 = vrot.lane.b32.xlu0 %v2917, 64
        %v3008 = vpop.permute.xlu0 %3007
        %3011 = vrot.lane.b32.xlu0 %v2921, 96
        %v3012 = vpop.permute.xlu0 %3011
        %3015 = vrot.lane.b32.xlu0 %v2986, 32
        %v3016 = vpop.permute.xlu0 %3015
        %3019 = vrot.lane.b32.xlu0 %v2969, 64
        %v3020 = vpop.permute.xlu0 %3019
        %3023 = vrot.lane.b32.xlu0 %v2987, 96
        %v3024 = vpop.permute.xlu0 %3023
        %3027 = vrot.lane.b32.xlu0 %v2988, 32
        %v3028 = vpop.permute.xlu0 %3027
        %3031 = vrot.lane.b32.xlu0 %v2985, 64
        %v3032 = vpop.permute.xlu0 %3031
        %3035 = vrot.lane.b32.xlu0 %v2989, 96
        %v3036 = vpop.permute.xlu0 %3035
        %v3038 = vsel %vm571, %v2894, %v2992
        %v3039 = vsel %vm573, %v3038, %v2996
        %v3040 = vsel %vm575, %v3039, %v3000
        %v3041 = vsel %vm571, %v2910, %v3004
        %v3042 = vsel %vm573, %v3041, %v3008
        %v3043 = vsel %vm575, %v3042, %v3012
        %v3044 = vsel %vm571, %v2962, %v3016
        %v3045 = vsel %vm573, %v3044, %v3020
        %v3046 = vsel %vm575, %v3045, %v3024
        %v3047 = vsel %vm571, %v2978, %v3028
        %v3048 = vsel %vm573, %v3047, %v3032
        %v3049 = vsel %vm575, %v3048, %v3036
        %3050 = vst [vmem:[#allocation2] sm:$0xf] %v3040
        %3051 = vst [vmem:[#allocation2 + $0x8] sm:$0xf] %v3043
        %3052 = vst [vmem:[#allocation2 + $0x10] sm:$0xf] %v3046
        %3053 = vst [vmem:[#allocation2 + $0x18] sm:$0xf] %v3049
        %vm3054 = vcmask 1040384
        %v3055 = vrot.slane %v2755, 7
        %v3056 = vrot.slane %v2760, 7
        %v3057 = vsel %vm3054, %v3055, %v3056
        %v3058 = vrot.slane %v2765, 7
        %v3059 = vsel %vm3054, %v3056, %v3058
        %v3060 = vrot.slane %v2770, 7
        %v3061 = vrot.slane %v2775, 7
        %v3062 = vsel %vm3054, %v3060, %v3061
        %v3063 = vrot.slane %v2780, 7
        %v3064 = vsel %vm3054, %v3061, %v3063
        %v3065 = vrot.slane %v2785, 7
        %v3066 = vrot.slane %v2790, 7
        %v3067 = vsel %vm3054, %v3065, %v3066
        %v3068 = vrot.slane %v2795, 7
        %v3069 = vsel %vm3054, %v3066, %v3068
        %v3070 = vrot.slane %v2800, 7
        %v3071 = vrot.slane %v2805, 7
        %v3072 = vsel %vm3054, %v3070, %v3071
        %v3073 = vrot.slane %v2810, 7
        %v3074 = vsel %vm3054, %v3071, %v3073
        %v3083 = vcombine.low %v3057, %v3067
        %v3084 = vcombine.high %v3057, %v3067
        %v3086 = vunpack.c.l.s4 1983009808
        %v3087 = vunpack.c.0.s8 %v3086
        %v3088 = vlaneseq
        %v3089 = vshrl.u32 %v3088, 7
        %v3090 = vsub.s32 %v3087, %v3089
        %v3091 = vrot.slane %v3083, %v3090
        %v3093 = vunpack.c.l.s4 1983009808
        %v3094 = vunpack.c.0.s8 %v3093
        %v3095 = vlaneseq
        %v3096 = vshrl.u32 %v3095, 7
        %v3097 = vsub.s32 %v3094, %v3096
        %v3098 = vrot.slane %v3084, %v3097
        %v3099 = vcombine.low %v3062, %v3072
        %v3100 = vcombine.high %v3062, %v3072
        %v3102 = vunpack.c.l.s4 1983009808
        %v3103 = vunpack.c.0.s8 %v3102
        %v3104 = vlaneseq
        %v3105 = vshrl.u32 %v3104, 7
        %v3106 = vsub.s32 %v3103, %v3105
        %v3107 = vrot.slane %v3099, %v3106
        %v3109 = vunpack.c.l.s4 1983009808
        %v3110 = vunpack.c.0.s8 %v3109
        %v3111 = vlaneseq
        %v3112 = vshrl.u32 %v3111, 7
        %v3113 = vsub.s32 %v3110, %v3112
        %v3114 = vrot.slane %v3100, %v3113
        %v3115 = vcombine.low %v3091, %v3107
        %v3116 = vcombine.high %v3091, %v3107
        %v3118 = vunpack.c.l.s4 1934713408
        %v3119 = vunpack.c.0.s8 %v3118
        %v3120 = vlaneseq
        %v3121 = vshrl.u32 %v3120, 7
        %v3122 = vsub.s32 %v3119, %v3121
        %v3123 = vrot.slane %v3115, %v3122
        %v3125 = vunpack.c.l.s4 1934713408
        %v3126 = vunpack.c.0.s8 %v3125
        %v3127 = vlaneseq
        %v3128 = vshrl.u32 %v3127, 7
        %v3129 = vsub.s32 %v3126, %v3128
        %v3130 = vrot.slane %v3116, %v3129
        %v3131 = vcombine.low %v3098, %v3114
        %v3132 = vcombine.high %v3098, %v3114
        %v3134 = vunpack.c.l.s4 1934713408
        %v3135 = vunpack.c.0.s8 %v3134
        %v3136 = vlaneseq
        %v3137 = vshrl.u32 %v3136, 7
        %v3138 = vsub.s32 %v3135, %v3137
        %v3139 = vrot.slane %v3131, %v3138
        %v3141 = vunpack.c.l.s4 1934713408
        %v3142 = vunpack.c.0.s8 %v3141
        %v3143 = vlaneseq
        %v3144 = vshrl.u32 %v3143, 7
        %v3145 = vsub.s32 %v3142, %v3144
        %v3146 = vrot.slane %v3132, %v3145
        %v3147 = vcombine.high %v3123, 0.0
        %v3148 = vcombine.high %v3130, 0.0
        %v3149 = vcombine.high %v3139, 0.0
        %v3150 = vcombine.high %v3146, 0.0
        %v3151 = vcombine.low %v3059, %v3069
        %v3152 = vcombine.high %v3059, %v3069
        %v3154 = vunpack.c.l.s4 1983009808
        %v3155 = vunpack.c.0.s8 %v3154
        %v3156 = vlaneseq
        %v3157 = vshrl.u32 %v3156, 7
        %v3158 = vsub.s32 %v3155, %v3157
        %v3159 = vrot.slane %v3151, %v3158
        %v3161 = vunpack.c.l.s4 1983009808
        %v3162 = vunpack.c.0.s8 %v3161
        %v3163 = vlaneseq
        %v3164 = vshrl.u32 %v3163, 7
        %v3165 = vsub.s32 %v3162, %v3164
        %v3166 = vrot.slane %v3152, %v3165
        %v3167 = vcombine.low %v3064, %v3074
        %v3168 = vcombine.high %v3064, %v3074
        %v3170 = vunpack.c.l.s4 1983009808
        %v3171 = vunpack.c.0.s8 %v3170
        %v3172 = vlaneseq
        %v3173 = vshrl.u32 %v3172, 7
        %v3174 = vsub.s32 %v3171, %v3173
        %v3175 = vrot.slane %v3167, %v3174
        %v3177 = vunpack.c.l.s4 1983009808
        %v3178 = vunpack.c.0.s8 %v3177
        %v3179 = vlaneseq
        %v3180 = vshrl.u32 %v3179, 7
        %v3181 = vsub.s32 %v3178, %v3180
        %v3182 = vrot.slane %v3168, %v3181
        %v3183 = vcombine.low %v3159, %v3175
        %v3184 = vcombine.high %v3159, %v3175
        %v3186 = vunpack.c.l.s4 1934713408
        %v3187 = vunpack.c.0.s8 %v3186
        %v3188 = vlaneseq
        %v3189 = vshrl.u32 %v3188, 7
        %v3190 = vsub.s32 %v3187, %v3189
        %v3191 = vrot.slane %v3183, %v3190
        %v3193 = vunpack.c.l.s4 1934713408
        %v3194 = vunpack.c.0.s8 %v3193
        %v3195 = vlaneseq
        %v3196 = vshrl.u32 %v3195, 7
        %v3197 = vsub.s32 %v3194, %v3196
        %v3198 = vrot.slane %v3184, %v3197
        %v3199 = vcombine.low %v3166, %v3182
        %v3200 = vcombine.high %v3166, %v3182
        %v3202 = vunpack.c.l.s4 1934713408
        %v3203 = vunpack.c.0.s8 %v3202
        %v3204 = vlaneseq
        %v3205 = vshrl.u32 %v3204, 7
        %v3206 = vsub.s32 %v3203, %v3205
        %v3207 = vrot.slane %v3199, %v3206
        %v3209 = vunpack.c.l.s4 1934713408
        %v3210 = vunpack.c.0.s8 %v3209
        %v3211 = vlaneseq
        %v3212 = vshrl.u32 %v3211, 7
        %v3213 = vsub.s32 %v3210, %v3212
        %v3214 = vrot.slane %v3200, %v3213
        %v3215 = vcombine.high %v3191, 0.0
        %v3216 = vcombine.high %v3198, 0.0
        %v3217 = vcombine.high %v3207, 0.0
        %v3218 = vcombine.high %v3214, 0.0
        %3220 = vrot.lane.b32.xlu0 %v3147, 32
        %v3221 = vpop.permute.xlu0 %3220
        %3224 = vrot.lane.b32.xlu0 %v3130, 64
        %v3225 = vpop.permute.xlu0 %3224
        %3228 = vrot.lane.b32.xlu0 %v3148, 96
        %v3229 = vpop.permute.xlu0 %3228
        %3232 = vrot.lane.b32.xlu0 %v3149, 32
        %v3233 = vpop.permute.xlu0 %3232
        %3236 = vrot.lane.b32.xlu0 %v3146, 64
        %v3237 = vpop.permute.xlu0 %3236
        %3240 = vrot.lane.b32.xlu0 %v3150, 96
        %v3241 = vpop.permute.xlu0 %3240
        %3244 = vrot.lane.b32.xlu0 %v3215, 32
        %v3245 = vpop.permute.xlu0 %3244
        %3248 = vrot.lane.b32.xlu0 %v3198, 64
        %v3249 = vpop.permute.xlu0 %3248
        %3252 = vrot.lane.b32.xlu0 %v3216, 96
        %v3253 = vpop.permute.xlu0 %3252
        %3256 = vrot.lane.b32.xlu0 %v3217, 32
        %v3257 = vpop.permute.xlu0 %3256
        %3260 = vrot.lane.b32.xlu0 %v3214, 64
        %v3261 = vpop.permute.xlu0 %3260
        %3264 = vrot.lane.b32.xlu0 %v3218, 96
        %v3265 = vpop.permute.xlu0 %3264
        %v3267 = vsel %vm571, %v3123, %v3221
        %v3268 = vsel %vm573, %v3267, %v3225
        %v3269 = vsel %vm575, %v3268, %v3229
        %v3270 = vsel %vm571, %v3139, %v3233
        %v3271 = vsel %vm573, %v3270, %v3237
        %v3272 = vsel %vm575, %v3271, %v3241
        %v3273 = vsel %vm571, %v3191, %v3245
        %v3274 = vsel %vm573, %v3273, %v3249
        %v3275 = vsel %vm575, %v3274, %v3253
        %v3276 = vsel %vm571, %v3207, %v3257
        %v3277 = vsel %vm573, %v3276, %v3261
        %v3278 = vsel %vm575, %v3277, %v3265
        %v3283 = vrot.slane %v3269, 4
        %v3284 = vrot.slane %v3272, 4
        %v3285 = vrot.slane %v3275, 4
        %v3286 = vrot.slane %v3278, 4
        %3291 = vst [vmem:[#allocation2] sm:$0xf0] %v3283
        %3292 = vst [vmem:[#allocation2 + $0x8] sm:$0xf0] %v3284
        %3293 = vst [vmem:[#allocation2 + $0x10] sm:$0xf0] %v3285
        %3294 = vst [vmem:[#allocation2 + $0x18] sm:$0xf0] %v3286
        %v3295 = vcombine.low %v2760, %v2790
        %v3296 = vcombine.high %v2760, %v2790
        %v3298 = vunpack.c.l.s4 1983009808
        %v3299 = vunpack.c.0.s8 %v3298
        %v3300 = vlaneseq
        %v3301 = vshrl.u32 %v3300, 7
        %v3302 = vsub.s32 %v3299, %v3301
        %v3303 = vrot.slane %v3295, %v3302
        %v3305 = vunpack.c.l.s4 1983009808
        %v3306 = vunpack.c.0.s8 %v3305
        %v3307 = vlaneseq
        %v3308 = vshrl.u32 %v3307, 7
        %v3309 = vsub.s32 %v3306, %v3308
        %v3310 = vrot.slane %v3296, %v3309
        %v3311 = vcombine.low %v2775, %v2805
        %v3312 = vcombine.high %v2775, %v2805
        %v3314 = vunpack.c.l.s4 1983009808
        %v3315 = vunpack.c.0.s8 %v3314
        %v3316 = vlaneseq
        %v3317 = vshrl.u32 %v3316, 7
        %v3318 = vsub.s32 %v3315, %v3317
        %v3319 = vrot.slane %v3311, %v3318
        %v3321 = vunpack.c.l.s4 1983009808
        %v3322 = vunpack.c.0.s8 %v3321
        %v3323 = vlaneseq
        %v3324 = vshrl.u32 %v3323, 7
        %v3325 = vsub.s32 %v3322, %v3324
        %v3326 = vrot.slane %v3312, %v3325
        %v3327 = vcombine.low %v3303, %v3319
        %v3328 = vcombine.high %v3303, %v3319
        %v3330 = vunpack.c.l.s4 1934713408
        %v3331 = vunpack.c.0.s8 %v3330
        %v3332 = vlaneseq
        %v3333 = vshrl.u32 %v3332, 7
        %v3334 = vsub.s32 %v3331, %v3333
        %v3335 = vrot.slane %v3327, %v3334
        %v3337 = vunpack.c.l.s4 1934713408
        %v3338 = vunpack.c.0.s8 %v3337
        %v3339 = vlaneseq
        %v3340 = vshrl.u32 %v3339, 7
        %v3341 = vsub.s32 %v3338, %v3340
        %v3342 = vrot.slane %v3328, %v3341
        %v3343 = vcombine.low %v3310, %v3326
        %v3344 = vcombine.high %v3310, %v3326
        %v3346 = vunpack.c.l.s4 1934713408
        %v3347 = vunpack.c.0.s8 %v3346
        %v3348 = vlaneseq
        %v3349 = vshrl.u32 %v3348, 7
        %v3350 = vsub.s32 %v3347, %v3349
        %v3351 = vrot.slane %v3343, %v3350
        %v3353 = vunpack.c.l.s4 1934713408
        %v3354 = vunpack.c.0.s8 %v3353
        %v3355 = vlaneseq
        %v3356 = vshrl.u32 %v3355, 7
        %v3357 = vsub.s32 %v3354, %v3356
        %v3358 = vrot.slane %v3344, %v3357
        %v3359 = vcombine.high %v3335, 0.0
        %v3360 = vcombine.high %v3342, 0.0
        %v3361 = vcombine.high %v3351, 0.0
        %v3362 = vcombine.high %v3358, 0.0
        %v3363 = vcombine.low %v2765, %v2795
        %v3364 = vcombine.high %v2765, %v2795
        %v3366 = vunpack.c.l.s4 1983009808
        %v3367 = vunpack.c.0.s8 %v3366
        %v3368 = vlaneseq
        %v3369 = vshrl.u32 %v3368, 7
        %v3370 = vsub.s32 %v3367, %v3369
        %v3371 = vrot.slane %v3363, %v3370
        %v3373 = vunpack.c.l.s4 1983009808
        %v3374 = vunpack.c.0.s8 %v3373
        %v3375 = vlaneseq
        %v3376 = vshrl.u32 %v3375, 7
        %v3377 = vsub.s32 %v3374, %v3376
        %v3378 = vrot.slane %v3364, %v3377
        %v3379 = vcombine.low %v2780, %v2810
        %v3380 = vcombine.high %v2780, %v2810
        %v3382 = vunpack.c.l.s4 1983009808
        %v3383 = vunpack.c.0.s8 %v3382
        %v3384 = vlaneseq
        %v3385 = vshrl.u32 %v3384, 7
        %v3386 = vsub.s32 %v3383, %v3385
        %v3387 = vrot.slane %v3379, %v3386
        %v3389 = vunpack.c.l.s4 1983009808
        %v3390 = vunpack.c.0.s8 %v3389
        %v3391 = vlaneseq
        %v3392 = vshrl.u32 %v3391, 7
        %v3393 = vsub.s32 %v3390, %v3392
        %v3394 = vrot.slane %v3380, %v3393
        %v3395 = vcombine.low %v3371, %v3387
        %v3396 = vcombine.high %v3371, %v3387
        %v3398 = vunpack.c.l.s4 1934713408
        %v3399 = vunpack.c.0.s8 %v3398
        %v3400 = vlaneseq
        %v3401 = vshrl.u32 %v3400, 7
        %v3402 = vsub.s32 %v3399, %v3401
        %v3403 = vrot.slane %v3395, %v3402
        %v3405 = vunpack.c.l.s4 1934713408
        %v3406 = vunpack.c.0.s8 %v3405
        %v3407 = vlaneseq
        %v3408 = vshrl.u32 %v3407, 7
        %v3409 = vsub.s32 %v3406, %v3408
        %v3410 = vrot.slane %v3396, %v3409
        %v3411 = vcombine.low %v3378, %v3394
        %v3412 = vcombine.high %v3378, %v3394
        %v3414 = vunpack.c.l.s4 1934713408
        %v3415 = vunpack.c.0.s8 %v3414
        %v3416 = vlaneseq
        %v3417 = vshrl.u32 %v3416, 7
        %v3418 = vsub.s32 %v3415, %v3417
        %v3419 = vrot.slane %v3411, %v3418
        %v3421 = vunpack.c.l.s4 1934713408
        %v3422 = vunpack.c.0.s8 %v3421
        %v3423 = vlaneseq
        %v3424 = vshrl.u32 %v3423, 7
        %v3425 = vsub.s32 %v3422, %v3424
        %v3426 = vrot.slane %v3412, %v3425
        %v3427 = vcombine.high %v3403, 0.0
        %v3428 = vcombine.high %v3410, 0.0
        %v3429 = vcombine.high %v3419, 0.0
        %v3430 = vcombine.high %v3426, 0.0
        %3432 = vrot.lane.b32.xlu0 %v3359, 32
        %v3433 = vpop.permute.xlu0 %3432
        %3436 = vrot.lane.b32.xlu0 %v3342, 64
        %v3437 = vpop.permute.xlu0 %3436
        %3440 = vrot.lane.b32.xlu0 %v3360, 96
        %v3441 = vpop.permute.xlu0 %3440
        %3444 = vrot.lane.b32.xlu0 %v3361, 32
        %v3445 = vpop.permute.xlu0 %3444
        %3448 = vrot.lane.b32.xlu0 %v3358, 64
        %v3449 = vpop.permute.xlu0 %3448
        %3452 = vrot.lane.b32.xlu0 %v3362, 96
        %v3453 = vpop.permute.xlu0 %3452
        %3456 = vrot.lane.b32.xlu0 %v3427, 32
        %v3457 = vpop.permute.xlu0 %3456
        %3460 = vrot.lane.b32.xlu0 %v3410, 64
        %v3461 = vpop.permute.xlu0 %3460
        %3464 = vrot.lane.b32.xlu0 %v3428, 96
        %v3465 = vpop.permute.xlu0 %3464
        %3468 = vrot.lane.b32.xlu0 %v3429, 32
        %v3469 = vpop.permute.xlu0 %3468
        %3472 = vrot.lane.b32.xlu0 %v3426, 64
        %v3473 = vpop.permute.xlu0 %3472
        %3476 = vrot.lane.b32.xlu0 %v3430, 96
        %v3477 = vpop.permute.xlu0 %3476
        %v3479 = vsel %vm571, %v3335, %v3433
        %v3480 = vsel %vm573, %v3479, %v3437
        %v3481 = vsel %vm575, %v3480, %v3441
        %v3482 = vsel %vm571, %v3351, %v3445
        %v3483 = vsel %vm573, %v3482, %v3449
        %v3484 = vsel %vm575, %v3483, %v3453
        %v3485 = vsel %vm571, %v3403, %v3457
        %v3486 = vsel %vm573, %v3485, %v3461
        %v3487 = vsel %vm575, %v3486, %v3465
        %v3488 = vsel %vm571, %v3419, %v3469
        %v3489 = vsel %vm573, %v3488, %v3473
        %v3490 = vsel %vm575, %v3489, %v3477
        %3491 = vst [vmem:[#allocation2 + $0x20] sm:$0xf] %v3481
        %3492 = vst [vmem:[#allocation2 + $0x28] sm:$0xf] %v3484
        %3493 = vst [vmem:[#allocation2 + $0x30] sm:$0xf] %v3487
        %3494 = vst [vmem:[#allocation2 + $0x38] sm:$0xf] %v3490
        %3495 = vrot.lane.b32.xlu0 %v2828, 127
        %v3496 = vpop.permute.xlu0 %3495
        %3497 = vrot.lane.b32.xlu0 %v2830, 127
        %v3498 = vpop.permute.xlu0 %3497
        %3499 = vrot.lane.b32.xlu0 %v2833, 127
        %v3500 = vpop.permute.xlu0 %3499
        %3501 = vrot.lane.b32.xlu0 %v2835, 127
        %v3502 = vpop.permute.xlu0 %3501
        %3503 = vrot.lane.b32.xlu0 %v2838, 127
        %v3504 = vpop.permute.xlu0 %3503
        %3505 = vrot.lane.b32.xlu0 %v2840, 127
        %v3506 = vpop.permute.xlu0 %3505
        %3507 = vrot.lane.b32.xlu0 %v2843, 127
        %v3508 = vpop.permute.xlu0 %3507
        %3509 = vrot.lane.b32.xlu0 %v2845, 127
        %v3510 = vpop.permute.xlu0 %3509
        %v3519 = vcombine.low %v3496, %v3504
        %v3520 = vcombine.high %v3496, %v3504
        %v3522 = vunpack.c.l.s4 1983009808
        %v3523 = vunpack.c.0.s8 %v3522
        %v3524 = vlaneseq
        %v3525 = vshrl.u32 %v3524, 7
        %v3526 = vsub.s32 %v3523, %v3525
        %v3527 = vrot.slane %v3519, %v3526
        %v3529 = vunpack.c.l.s4 1983009808
        %v3530 = vunpack.c.0.s8 %v3529
        %v3531 = vlaneseq
        %v3532 = vshrl.u32 %v3531, 7
        %v3533 = vsub.s32 %v3530, %v3532
        %v3534 = vrot.slane %v3520, %v3533
        %v3535 = vcombine.low %v3500, %v3508
        %v3536 = vcombine.high %v3500, %v3508
        %v3538 = vunpack.c.l.s4 1983009808
        %v3539 = vunpack.c.0.s8 %v3538
        %v3540 = vlaneseq
        %v3541 = vshrl.u32 %v3540, 7
        %v3542 = vsub.s32 %v3539, %v3541
        %v3543 = vrot.slane %v3535, %v3542
        %v3545 = vunpack.c.l.s4 1983009808
        %v3546 = vunpack.c.0.s8 %v3545
        %v3547 = vlaneseq
        %v3548 = vshrl.u32 %v3547, 7
        %v3549 = vsub.s32 %v3546, %v3548
        %v3550 = vrot.slane %v3536, %v3549
        %v3551 = vcombine.low %v3527, %v3543
        %v3552 = vcombine.high %v3527, %v3543
        %v3554 = vunpack.c.l.s4 1934713408
        %v3555 = vunpack.c.0.s8 %v3554
        %v3556 = vlaneseq
        %v3557 = vshrl.u32 %v3556, 7
        %v3558 = vsub.s32 %v3555, %v3557
        %v3559 = vrot.slane %v3551, %v3558
        %v3561 = vunpack.c.l.s4 1934713408
        %v3562 = vunpack.c.0.s8 %v3561
        %v3563 = vlaneseq
        %v3564 = vshrl.u32 %v3563, 7
        %v3565 = vsub.s32 %v3562, %v3564
        %v3566 = vrot.slane %v3552, %v3565
        %v3567 = vcombine.low %v3534, %v3550
        %v3568 = vcombine.high %v3534, %v3550
        %v3570 = vunpack.c.l.s4 1934713408
        %v3571 = vunpack.c.0.s8 %v3570
        %v3572 = vlaneseq
        %v3573 = vshrl.u32 %v3572, 7
        %v3574 = vsub.s32 %v3571, %v3573
        %v3575 = vrot.slane %v3567, %v3574
        %v3577 = vunpack.c.l.s4 1934713408
        %v3578 = vunpack.c.0.s8 %v3577
        %v3579 = vlaneseq
        %v3580 = vshrl.u32 %v3579, 7
        %v3581 = vsub.s32 %v3578, %v3580
        %v3582 = vrot.slane %v3568, %v3581
        %v3583 = vcombine.high %v3559, 0.0
        %v3584 = vcombine.high %v3566, 0.0
        %v3585 = vcombine.high %v3575, 0.0
        %v3586 = vcombine.high %v3582, 0.0
        %v3587 = vcombine.low %v3498, %v3506
        %v3588 = vcombine.high %v3498, %v3506
        %v3590 = vunpack.c.l.s4 1983009808
        %v3591 = vunpack.c.0.s8 %v3590
        %v3592 = vlaneseq
        %v3593 = vshrl.u32 %v3592, 7
        %v3594 = vsub.s32 %v3591, %v3593
        %v3595 = vrot.slane %v3587, %v3594
        %v3597 = vunpack.c.l.s4 1983009808
        %v3598 = vunpack.c.0.s8 %v3597
        %v3599 = vlaneseq
        %v3600 = vshrl.u32 %v3599, 7
        %v3601 = vsub.s32 %v3598, %v3600
        %v3602 = vrot.slane %v3588, %v3601
        %v3603 = vcombine.low %v3502, %v3510
        %v3604 = vcombine.high %v3502, %v3510
        %v3606 = vunpack.c.l.s4 1983009808
        %v3607 = vunpack.c.0.s8 %v3606
        %v3608 = vlaneseq
        %v3609 = vshrl.u32 %v3608, 7
        %v3610 = vsub.s32 %v3607, %v3609
        %v3611 = vrot.slane %v3603, %v3610
        %v3613 = vunpack.c.l.s4 1983009808
        %v3614 = vunpack.c.0.s8 %v3613
        %v3615 = vlaneseq
        %v3616 = vshrl.u32 %v3615, 7
        %v3617 = vsub.s32 %v3614, %v3616
        %v3618 = vrot.slane %v3604, %v3617
        %v3619 = vcombine.low %v3595, %v3611
        %v3620 = vcombine.high %v3595, %v3611
        %v3622 = vunpack.c.l.s4 1934713408
        %v3623 = vunpack.c.0.s8 %v3622
        %v3624 = vlaneseq
        %v3625 = vshrl.u32 %v3624, 7
        %v3626 = vsub.s32 %v3623, %v3625
        %v3627 = vrot.slane %v3619, %v3626
        %v3629 = vunpack.c.l.s4 1934713408
        %v3630 = vunpack.c.0.s8 %v3629
        %v3631 = vlaneseq
        %v3632 = vshrl.u32 %v3631, 7
        %v3633 = vsub.s32 %v3630, %v3632
        %v3634 = vrot.slane %v3620, %v3633
        %v3635 = vcombine.low %v3602, %v3618
        %v3636 = vcombine.high %v3602, %v3618
        %v3638 = vunpack.c.l.s4 1934713408
        %v3639 = vunpack.c.0.s8 %v3638
        %v3640 = vlaneseq
        %v3641 = vshrl.u32 %v3640, 7
        %v3642 = vsub.s32 %v3639, %v3641
        %v3643 = vrot.slane %v3635, %v3642
        %v3645 = vunpack.c.l.s4 1934713408
        %v3646 = vunpack.c.0.s8 %v3645
        %v3647 = vlaneseq
        %v3648 = vshrl.u32 %v3647, 7
        %v3649 = vsub.s32 %v3646, %v3648
        %v3650 = vrot.slane %v3636, %v3649
        %v3651 = vcombine.high %v3627, 0.0
        %v3652 = vcombine.high %v3634, 0.0
        %v3653 = vcombine.high %v3643, 0.0
        %v3654 = vcombine.high %v3650, 0.0
        %3656 = vrot.lane.b32.xlu0 %v3583, 32
        %v3657 = vpop.permute.xlu0 %3656
        %3660 = vrot.lane.b32.xlu0 %v3566, 64
        %v3661 = vpop.permute.xlu0 %3660
        %3664 = vrot.lane.b32.xlu0 %v3584, 96
        %v3665 = vpop.permute.xlu0 %3664
        %3668 = vrot.lane.b32.xlu0 %v3585, 32
        %v3669 = vpop.permute.xlu0 %3668
        %3672 = vrot.lane.b32.xlu0 %v3582, 64
        %v3673 = vpop.permute.xlu0 %3672
        %3676 = vrot.lane.b32.xlu0 %v3586, 96
        %v3677 = vpop.permute.xlu0 %3676
        %3680 = vrot.lane.b32.xlu0 %v3651, 32
        %v3681 = vpop.permute.xlu0 %3680
        %3684 = vrot.lane.b32.xlu0 %v3634, 64
        %v3685 = vpop.permute.xlu0 %3684
        %3688 = vrot.lane.b32.xlu0 %v3652, 96
        %v3689 = vpop.permute.xlu0 %3688
        %3692 = vrot.lane.b32.xlu0 %v3653, 32
        %v3693 = vpop.permute.xlu0 %3692
        %3696 = vrot.lane.b32.xlu0 %v3650, 64
        %v3697 = vpop.permute.xlu0 %3696
        %3700 = vrot.lane.b32.xlu0 %v3654, 96
        %v3701 = vpop.permute.xlu0 %3700
        %v3703 = vsel %vm571, %v3559, %v3657
        %v3704 = vsel %vm573, %v3703, %v3661
        %v3705 = vsel %vm575, %v3704, %v3665
        %v3706 = vsel %vm571, %v3575, %v3669
        %v3707 = vsel %vm573, %v3706, %v3673
        %v3708 = vsel %vm575, %v3707, %v3677
        %v3709 = vsel %vm571, %v3627, %v3681
        %v3710 = vsel %vm573, %v3709, %v3685
        %v3711 = vsel %vm575, %v3710, %v3689
        %v3712 = vsel %vm571, %v3643, %v3693
        %v3713 = vsel %vm573, %v3712, %v3697
        %v3714 = vsel %vm575, %v3713, %v3701
        %v3719 = vrot.slane %v3705, 4
        %v3720 = vrot.slane %v3708, 4
        %v3721 = vrot.slane %v3711, 4
        %v3722 = vrot.slane %v3714, 4
        %3727 = vst [vmem:[#allocation2 + $0x20] sm:$0xf0] %v3719
        %3728 = vst [vmem:[#allocation2 + $0x28] sm:$0xf0] %v3720
        %3729 = vst [vmem:[#allocation2 + $0x30] sm:$0xf0] %v3721
        %3730 = vst [vmem:[#allocation2 + $0x38] sm:$0xf0] %v3722
        %3731 = vrot.lane.b32.xlu0 %v3057, 127
        %v3732 = vpop.permute.xlu0 %3731
        %3733 = vrot.lane.b32.xlu0 %v3059, 127
        %v3734 = vpop.permute.xlu0 %3733
        %3735 = vrot.lane.b32.xlu0 %v3062, 127
        %v3736 = vpop.permute.xlu0 %3735
        %3737 = vrot.lane.b32.xlu0 %v3064, 127
        %v3738 = vpop.permute.xlu0 %3737
        %3739 = vrot.lane.b32.xlu0 %v3067, 127
        %v3740 = vpop.permute.xlu0 %3739
        %3741 = vrot.lane.b32.xlu0 %v3069, 127
        %v3742 = vpop.permute.xlu0 %3741
        %3743 = vrot.lane.b32.xlu0 %v3072, 127
        %v3744 = vpop.permute.xlu0 %3743
        %3745 = vrot.lane.b32.xlu0 %v3074, 127
        %v3746 = vpop.permute.xlu0 %3745
        %v3755 = vcombine.low %v3732, %v3740
        %v3756 = vcombine.high %v3732, %v3740
        %v3758 = vunpack.c.l.s4 1983009808
        %v3759 = vunpack.c.0.s8 %v3758
        %v3760 = vlaneseq
        %v3761 = vshrl.u32 %v3760, 7
        %v3762 = vsub.s32 %v3759, %v3761
        %v3763 = vrot.slane %v3755, %v3762
        %v3765 = vunpack.c.l.s4 1983009808
        %v3766 = vunpack.c.0.s8 %v3765
        %v3767 = vlaneseq
        %v3768 = vshrl.u32 %v3767, 7
        %v3769 = vsub.s32 %v3766, %v3768
        %v3770 = vrot.slane %v3756, %v3769
        %v3771 = vcombine.low %v3736, %v3744
        %v3772 = vcombine.high %v3736, %v3744
        %v3774 = vunpack.c.l.s4 1983009808
        %v3775 = vunpack.c.0.s8 %v3774
        %v3776 = vlaneseq
        %v3777 = vshrl.u32 %v3776, 7
        %v3778 = vsub.s32 %v3775, %v3777
        %v3779 = vrot.slane %v3771, %v3778
        %v3781 = vunpack.c.l.s4 1983009808
        %v3782 = vunpack.c.0.s8 %v3781
        %v3783 = vlaneseq
        %v3784 = vshrl.u32 %v3783, 7
        %v3785 = vsub.s32 %v3782, %v3784
        %v3786 = vrot.slane %v3772, %v3785
        %v3787 = vcombine.low %v3763, %v3779
        %v3788 = vcombine.high %v3763, %v3779
        %v3790 = vunpack.c.l.s4 1934713408
        %v3791 = vunpack.c.0.s8 %v3790
        %v3792 = vlaneseq
        %v3793 = vshrl.u32 %v3792, 7
        %v3794 = vsub.s32 %v3791, %v3793
        %v3795 = vrot.slane %v3787, %v3794
        %v3797 = vunpack.c.l.s4 1934713408
        %v3798 = vunpack.c.0.s8 %v3797
        %v3799 = vlaneseq
        %v3800 = vshrl.u32 %v3799, 7
        %v3801 = vsub.s32 %v3798, %v3800
        %v3802 = vrot.slane %v3788, %v3801
        %v3803 = vcombine.low %v3770, %v3786
        %v3804 = vcombine.high %v3770, %v3786
        %v3806 = vunpack.c.l.s4 1934713408
        %v3807 = vunpack.c.0.s8 %v3806
        %v3808 = vlaneseq
        %v3809 = vshrl.u32 %v3808, 7
        %v3810 = vsub.s32 %v3807, %v3809
        %v3811 = vrot.slane %v3803, %v3810
        %v3813 = vunpack.c.l.s4 1934713408
        %v3814 = vunpack.c.0.s8 %v3813
        %v3815 = vlaneseq
        %v3816 = vshrl.u32 %v3815, 7
        %v3817 = vsub.s32 %v3814, %v3816
        %v3818 = vrot.slane %v3804, %v3817
        %v3819 = vcombine.high %v3795, 0.0
        %v3820 = vcombine.high %v3802, 0.0
        %v3821 = vcombine.high %v3811, 0.0
        %v3822 = vcombine.high %v3818, 0.0
        %v3823 = vcombine.low %v3734, %v3742
        %v3824 = vcombine.high %v3734, %v3742
        %v3826 = vunpack.c.l.s4 1983009808
        %v3827 = vunpack.c.0.s8 %v3826
        %v3828 = vlaneseq
        %v3829 = vshrl.u32 %v3828, 7
        %v3830 = vsub.s32 %v3827, %v3829
        %v3831 = vrot.slane %v3823, %v3830
        %v3833 = vunpack.c.l.s4 1983009808
        %v3834 = vunpack.c.0.s8 %v3833
        %v3835 = vlaneseq
        %v3836 = vshrl.u32 %v3835, 7
        %v3837 = vsub.s32 %v3834, %v3836
        %v3838 = vrot.slane %v3824, %v3837
        %v3839 = vcombine.low %v3738, %v3746
        %v3840 = vcombine.high %v3738, %v3746
        %v3842 = vunpack.c.l.s4 1983009808
        %v3843 = vunpack.c.0.s8 %v3842
        %v3844 = vlaneseq
        %v3845 = vshrl.u32 %v3844, 7
        %v3846 = vsub.s32 %v3843, %v3845
        %v3847 = vrot.slane %v3839, %v3846
        %v3849 = vunpack.c.l.s4 1983009808
        %v3850 = vunpack.c.0.s8 %v3849
        %v3851 = vlaneseq
        %v3852 = vshrl.u32 %v3851, 7
        %v3853 = vsub.s32 %v3850, %v3852
        %v3854 = vrot.slane %v3840, %v3853
        %v3855 = vcombine.low %v3831, %v3847
        %v3856 = vcombine.high %v3831, %v3847
        %v3858 = vunpack.c.l.s4 1934713408
        %v3859 = vunpack.c.0.s8 %v3858
        %v3860 = vlaneseq
        %v3861 = vshrl.u32 %v3860, 7
        %v3862 = vsub.s32 %v3859, %v3861
        %v3863 = vrot.slane %v3855, %v3862
        %v3865 = vunpack.c.l.s4 1934713408
        %v3866 = vunpack.c.0.s8 %v3865
        %v3867 = vlaneseq
        %v3868 = vshrl.u32 %v3867, 7
        %v3869 = vsub.s32 %v3866, %v3868
        %v3870 = vrot.slane %v3856, %v3869
        %v3871 = vcombine.low %v3838, %v3854
        %v3872 = vcombine.high %v3838, %v3854
        %v3874 = vunpack.c.l.s4 1934713408
        %v3875 = vunpack.c.0.s8 %v3874
        %v3876 = vlaneseq
        %v3877 = vshrl.u32 %v3876, 7
        %v3878 = vsub.s32 %v3875, %v3877
        %v3879 = vrot.slane %v3871, %v3878
        %v3881 = vunpack.c.l.s4 1934713408
        %v3882 = vunpack.c.0.s8 %v3881
        %v3883 = vlaneseq
        %v3884 = vshrl.u32 %v3883, 7
        %v3885 = vsub.s32 %v3882, %v3884
        %v3886 = vrot.slane %v3872, %v3885
        %v3887 = vcombine.high %v3863, 0.0
        %v3888 = vcombine.high %v3870, 0.0
        %v3889 = vcombine.high %v3879, 0.0
        %v3890 = vcombine.high %v3886, 0.0
        %3892 = vrot.lane.b32.xlu0 %v3819, 32
        %v3893 = vpop.permute.xlu0 %3892
        %3896 = vrot.lane.b32.xlu0 %v3802, 64
        %v3897 = vpop.permute.xlu0 %3896
        %3900 = vrot.lane.b32.xlu0 %v3820, 96
        %v3901 = vpop.permute.xlu0 %3900
        %3904 = vrot.lane.b32.xlu0 %v3821, 32
        %v3905 = vpop.permute.xlu0 %3904
        %3908 = vrot.lane.b32.xlu0 %v3818, 64
        %v3909 = vpop.permute.xlu0 %3908
        %3912 = vrot.lane.b32.xlu0 %v3822, 96
        %v3913 = vpop.permute.xlu0 %3912
        %3916 = vrot.lane.b32.xlu0 %v3887, 32
        %v3917 = vpop.permute.xlu0 %3916
        %3920 = vrot.lane.b32.xlu0 %v3870, 64
        %v3921 = vpop.permute.xlu0 %3920
        %3924 = vrot.lane.b32.xlu0 %v3888, 96
        %v3925 = vpop.permute.xlu0 %3924
        %3928 = vrot.lane.b32.xlu0 %v3889, 32
        %v3929 = vpop.permute.xlu0 %3928
        %3932 = vrot.lane.b32.xlu0 %v3886, 64
        %v3933 = vpop.permute.xlu0 %3932
        %3936 = vrot.lane.b32.xlu0 %v3890, 96
        %v3937 = vpop.permute.xlu0 %3936
        %v3939 = vsel %vm571, %v3795, %v3893
        %v3940 = vsel %vm573, %v3939, %v3897
        %v3941 = vsel %vm575, %v3940, %v3901
        %v3942 = vsel %vm571, %v3811, %v3905
        %v3943 = vsel %vm573, %v3942, %v3909
        %v3944 = vsel %vm575, %v3943, %v3913
        %v3945 = vsel %vm571, %v3863, %v3917
        %v3946 = vsel %vm573, %v3945, %v3921
        %v3947 = vsel %vm575, %v3946, %v3925
        %v3948 = vsel %vm571, %v3879, %v3929
        %v3949 = vsel %vm573, %v3948, %v3933
        %v3950 = vsel %vm575, %v3949, %v3937
        %3951 = vst [vmem:[#allocation2 + $0x40] sm:$0xf] %v3941
        %3952 = vst [vmem:[#allocation2 + $0x48] sm:$0xf] %v3944
        %3953 = vst [vmem:[#allocation2 + $0x50] sm:$0xf] %v3947
        %3954 = vst [vmem:[#allocation2 + $0x58] sm:$0xf] %v3950
        %3955 = vrot.lane.b32.xlu0 %v2760, 127
        %v3956 = vpop.permute.xlu0 %3955
        %3957 = vrot.lane.b32.xlu0 %v2765, 127
        %v3958 = vpop.permute.xlu0 %3957
        %3959 = vrot.lane.b32.xlu0 %v2775, 127
        %v3960 = vpop.permute.xlu0 %3959
        %3961 = vrot.lane.b32.xlu0 %v2780, 127
        %v3962 = vpop.permute.xlu0 %3961
        %3963 = vrot.lane.b32.xlu0 %v2790, 127
        %v3964 = vpop.permute.xlu0 %3963
        %3965 = vrot.lane.b32.xlu0 %v2795, 127
        %v3966 = vpop.permute.xlu0 %3965
        %3967 = vrot.lane.b32.xlu0 %v2805, 127
        %v3968 = vpop.permute.xlu0 %3967
        %3969 = vrot.lane.b32.xlu0 %v2810, 127
        %v3970 = vpop.permute.xlu0 %3969
        %v3979 = vcombine.low %v3956, %v3964
        %v3980 = vcombine.high %v3956, %v3964
        %v3982 = vunpack.c.l.s4 1983009808
        %v3983 = vunpack.c.0.s8 %v3982
        %v3984 = vlaneseq
        %v3985 = vshrl.u32 %v3984, 7
        %v3986 = vsub.s32 %v3983, %v3985
        %v3987 = vrot.slane %v3979, %v3986
        %v3989 = vunpack.c.l.s4 1983009808
        %v3990 = vunpack.c.0.s8 %v3989
        %v3991 = vlaneseq
        %v3992 = vshrl.u32 %v3991, 7
        %v3993 = vsub.s32 %v3990, %v3992
        %v3994 = vrot.slane %v3980, %v3993
        %v3995 = vcombine.low %v3960, %v3968
        %v3996 = vcombine.high %v3960, %v3968
        %v3998 = vunpack.c.l.s4 1983009808
        %v3999 = vunpack.c.0.s8 %v3998
        %v4000 = vlaneseq
        %v4001 = vshrl.u32 %v4000, 7
        %v4002 = vsub.s32 %v3999, %v4001
        %v4003 = vrot.slane %v3995, %v4002
        %v4005 = vunpack.c.l.s4 1983009808
        %v4006 = vunpack.c.0.s8 %v4005
        %v4007 = vlaneseq
        %v4008 = vshrl.u32 %v4007, 7
        %v4009 = vsub.s32 %v4006, %v4008
        %v4010 = vrot.slane %v3996, %v4009
        %v4011 = vcombine.low %v3987, %v4003
        %v4012 = vcombine.high %v3987, %v4003
        %v4014 = vunpack.c.l.s4 1934713408
        %v4015 = vunpack.c.0.s8 %v4014
        %v4016 = vlaneseq
        %v4017 = vshrl.u32 %v4016, 7
        %v4018 = vsub.s32 %v4015, %v4017
        %v4019 = vrot.slane %v4011, %v4018
        %v4021 = vunpack.c.l.s4 1934713408
        %v4022 = vunpack.c.0.s8 %v4021
        %v4023 = vlaneseq
        %v4024 = vshrl.u32 %v4023, 7
        %v4025 = vsub.s32 %v4022, %v4024
        %v4026 = vrot.slane %v4012, %v4025
        %v4027 = vcombine.low %v3994, %v4010
        %v4028 = vcombine.high %v3994, %v4010
        %v4030 = vunpack.c.l.s4 1934713408
        %v4031 = vunpack.c.0.s8 %v4030
        %v4032 = vlaneseq
        %v4033 = vshrl.u32 %v4032, 7
        %v4034 = vsub.s32 %v4031, %v4033
        %v4035 = vrot.slane %v4027, %v4034
        %v4037 = vunpack.c.l.s4 1934713408
        %v4038 = vunpack.c.0.s8 %v4037
        %v4039 = vlaneseq
        %v4040 = vshrl.u32 %v4039, 7
        %v4041 = vsub.s32 %v4038, %v4040
        %v4042 = vrot.slane %v4028, %v4041
        %v4043 = vcombine.high %v4019, 0.0
        %v4044 = vcombine.high %v4026, 0.0
        %v4045 = vcombine.high %v4035, 0.0
        %v4046 = vcombine.high %v4042, 0.0
        %v4047 = vcombine.low %v3958, %v3966
        %v4048 = vcombine.high %v3958, %v3966
        %v4050 = vunpack.c.l.s4 1983009808
        %v4051 = vunpack.c.0.s8 %v4050
        %v4052 = vlaneseq
        %v4053 = vshrl.u32 %v4052, 7
        %v4054 = vsub.s32 %v4051, %v4053
        %v4055 = vrot.slane %v4047, %v4054
        %v4057 = vunpack.c.l.s4 1983009808
        %v4058 = vunpack.c.0.s8 %v4057
        %v4059 = vlaneseq
        %v4060 = vshrl.u32 %v4059, 7
        %v4061 = vsub.s32 %v4058, %v4060
        %v4062 = vrot.slane %v4048, %v4061
        %v4063 = vcombine.low %v3962, %v3970
        %v4064 = vcombine.high %v3962, %v3970
        %v4066 = vunpack.c.l.s4 1983009808
        %v4067 = vunpack.c.0.s8 %v4066
        %v4068 = vlaneseq
        %v4069 = vshrl.u32 %v4068, 7
        %v4070 = vsub.s32 %v4067, %v4069
        %v4071 = vrot.slane %v4063, %v4070
        %v4073 = vunpack.c.l.s4 1983009808
        %v4074 = vunpack.c.0.s8 %v4073
        %v4075 = vlaneseq
        %v4076 = vshrl.u32 %v4075, 7
        %v4077 = vsub.s32 %v4074, %v4076
        %v4078 = vrot.slane %v4064, %v4077
        %v4079 = vcombine.low %v4055, %v4071
        %v4080 = vcombine.high %v4055, %v4071
        %v4082 = vunpack.c.l.s4 1934713408
        %v4083 = vunpack.c.0.s8 %v4082
        %v4084 = vlaneseq
        %v4085 = vshrl.u32 %v4084, 7
        %v4086 = vsub.s32 %v4083, %v4085
        %v4087 = vrot.slane %v4079, %v4086
        %v4089 = vunpack.c.l.s4 1934713408
        %v4090 = vunpack.c.0.s8 %v4089
        %v4091 = vlaneseq
        %v4092 = vshrl.u32 %v4091, 7
        %v4093 = vsub.s32 %v4090, %v4092
        %v4094 = vrot.slane %v4080, %v4093
        %v4095 = vcombine.low %v4062, %v4078
        %v4096 = vcombine.high %v4062, %v4078
        %v4098 = vunpack.c.l.s4 1934713408
        %v4099 = vunpack.c.0.s8 %v4098
        %v4100 = vlaneseq
        %v4101 = vshrl.u32 %v4100, 7
        %v4102 = vsub.s32 %v4099, %v4101
        %v4103 = vrot.slane %v4095, %v4102
        %v4105 = vunpack.c.l.s4 1934713408
        %v4106 = vunpack.c.0.s8 %v4105
        %v4107 = vlaneseq
        %v4108 = vshrl.u32 %v4107, 7
        %v4109 = vsub.s32 %v4106, %v4108
        %v4110 = vrot.slane %v4096, %v4109
        %v4111 = vcombine.high %v4087, 0.0
        %v4112 = vcombine.high %v4094, 0.0
        %v4113 = vcombine.high %v4103, 0.0
        %v4114 = vcombine.high %v4110, 0.0
        %4116 = vrot.lane.b32.xlu0 %v4043, 32
        %v4117 = vpop.permute.xlu0 %4116
        %4120 = vrot.lane.b32.xlu0 %v4026, 64
        %v4121 = vpop.permute.xlu0 %4120
        %4124 = vrot.lane.b32.xlu0 %v4044, 96
        %v4125 = vpop.permute.xlu0 %4124
        %4128 = vrot.lane.b32.xlu0 %v4045, 32
        %v4129 = vpop.permute.xlu0 %4128
        %4132 = vrot.lane.b32.xlu0 %v4042, 64
        %v4133 = vpop.permute.xlu0 %4132
        %4136 = vrot.lane.b32.xlu0 %v4046, 96
        %v4137 = vpop.permute.xlu0 %4136
        %4140 = vrot.lane.b32.xlu0 %v4111, 32
        %v4141 = vpop.permute.xlu0 %4140
        %4144 = vrot.lane.b32.xlu0 %v4094, 64
        %v4145 = vpop.permute.xlu0 %4144
        %4148 = vrot.lane.b32.xlu0 %v4112, 96
        %v4149 = vpop.permute.xlu0 %4148
        %4152 = vrot.lane.b32.xlu0 %v4113, 32
        %v4153 = vpop.permute.xlu0 %4152
        %4156 = vrot.lane.b32.xlu0 %v4110, 64
        %v4157 = vpop.permute.xlu0 %4156
        %4160 = vrot.lane.b32.xlu0 %v4114, 96
        %v4161 = vpop.permute.xlu0 %4160
        %v4163 = vsel %vm571, %v4019, %v4117
        %v4164 = vsel %vm573, %v4163, %v4121
        %v4165 = vsel %vm575, %v4164, %v4125
        %v4166 = vsel %vm571, %v4035, %v4129
        %v4167 = vsel %vm573, %v4166, %v4133
        %v4168 = vsel %vm575, %v4167, %v4137
        %v4169 = vsel %vm571, %v4087, %v4141
        %v4170 = vsel %vm573, %v4169, %v4145
        %v4171 = vsel %vm575, %v4170, %v4149
        %v4172 = vsel %vm571, %v4103, %v4153
        %v4173 = vsel %vm573, %v4172, %v4157
        %v4174 = vsel %vm575, %v4173, %v4161
        %v4179 = vrot.slane %v4165, 4
        %v4180 = vrot.slane %v4168, 4
        %v4181 = vrot.slane %v4171, 4
        %v4182 = vrot.slane %v4174, 4
        %4187 = vst [vmem:[#allocation2 + $0x40] sm:$0xf0] %v4179
        %4188 = vst [vmem:[#allocation2 + $0x48] sm:$0xf0] %v4180
        %4189 = vst [vmem:[#allocation2 + $0x50] sm:$0xf0] %v4181
        %4190 = vst [vmem:[#allocation2 + $0x58] sm:$0xf0] %v4182
        %4191 = vrot.lane.b32.xlu0 %v2828, 126
        %v4192 = vpop.permute.xlu0 %4191
        %4193 = vrot.lane.b32.xlu0 %v2830, 126
        %v4194 = vpop.permute.xlu0 %4193
        %4195 = vrot.lane.b32.xlu0 %v2833, 126
        %v4196 = vpop.permute.xlu0 %4195
        %4197 = vrot.lane.b32.xlu0 %v2835, 126
        %v4198 = vpop.permute.xlu0 %4197
        %4199 = vrot.lane.b32.xlu0 %v2838, 126
        %v4200 = vpop.permute.xlu0 %4199
        %4201 = vrot.lane.b32.xlu0 %v2840, 126
        %v4202 = vpop.permute.xlu0 %4201
        %4203 = vrot.lane.b32.xlu0 %v2843, 126
        %v4204 = vpop.permute.xlu0 %4203
        %4205 = vrot.lane.b32.xlu0 %v2845, 126
        %v4206 = vpop.permute.xlu0 %4205
        %v4215 = vcombine.low %v4192, %v4200
        %v4216 = vcombine.high %v4192, %v4200
        %v4218 = vunpack.c.l.s4 1983009808
        %v4219 = vunpack.c.0.s8 %v4218
        %v4220 = vlaneseq
        %v4221 = vshrl.u32 %v4220, 7
        %v4222 = vsub.s32 %v4219, %v4221
        %v4223 = vrot.slane %v4215, %v4222
        %v4225 = vunpack.c.l.s4 1983009808
        %v4226 = vunpack.c.0.s8 %v4225
        %v4227 = vlaneseq
        %v4228 = vshrl.u32 %v4227, 7
        %v4229 = vsub.s32 %v4226, %v4228
        %v4230 = vrot.slane %v4216, %v4229
        %v4231 = vcombine.low %v4196, %v4204
        %v4232 = vcombine.high %v4196, %v4204
        %v4234 = vunpack.c.l.s4 1983009808
        %v4235 = vunpack.c.0.s8 %v4234
        %v4236 = vlaneseq
        %v4237 = vshrl.u32 %v4236, 7
        %v4238 = vsub.s32 %v4235, %v4237
        %v4239 = vrot.slane %v4231, %v4238
        %v4241 = vunpack.c.l.s4 1983009808
        %v4242 = vunpack.c.0.s8 %v4241
        %v4243 = vlaneseq
        %v4244 = vshrl.u32 %v4243, 7
        %v4245 = vsub.s32 %v4242, %v4244
        %v4246 = vrot.slane %v4232, %v4245
        %v4247 = vcombine.low %v4223, %v4239
        %v4248 = vcombine.high %v4223, %v4239
        %v4250 = vunpack.c.l.s4 1934713408
        %v4251 = vunpack.c.0.s8 %v4250
        %v4252 = vlaneseq
        %v4253 = vshrl.u32 %v4252, 7
        %v4254 = vsub.s32 %v4251, %v4253
        %v4255 = vrot.slane %v4247, %v4254
        %v4257 = vunpack.c.l.s4 1934713408
        %v4258 = vunpack.c.0.s8 %v4257
        %v4259 = vlaneseq
        %v4260 = vshrl.u32 %v4259, 7
        %v4261 = vsub.s32 %v4258, %v4260
        %v4262 = vrot.slane %v4248, %v4261
        %v4263 = vcombine.low %v4230, %v4246
        %v4264 = vcombine.high %v4230, %v4246
        %v4266 = vunpack.c.l.s4 1934713408
        %v4267 = vunpack.c.0.s8 %v4266
        %v4268 = vlaneseq
        %v4269 = vshrl.u32 %v4268, 7
        %v4270 = vsub.s32 %v4267, %v4269
        %v4271 = vrot.slane %v4263, %v4270
        %v4273 = vunpack.c.l.s4 1934713408
        %v4274 = vunpack.c.0.s8 %v4273
        %v4275 = vlaneseq
        %v4276 = vshrl.u32 %v4275, 7
        %v4277 = vsub.s32 %v4274, %v4276
        %v4278 = vrot.slane %v4264, %v4277
        %v4279 = vcombine.high %v4255, 0.0
        %v4280 = vcombine.high %v4262, 0.0
        %v4281 = vcombine.high %v4271, 0.0
        %v4282 = vcombine.high %v4278, 0.0
        %v4283 = vcombine.low %v4194, %v4202
        %v4284 = vcombine.high %v4194, %v4202
        %v4286 = vunpack.c.l.s4 1983009808
        %v4287 = vunpack.c.0.s8 %v4286
        %v4288 = vlaneseq
        %v4289 = vshrl.u32 %v4288, 7
        %v4290 = vsub.s32 %v4287, %v4289
        %v4291 = vrot.slane %v4283, %v4290
        %v4293 = vunpack.c.l.s4 1983009808
        %v4294 = vunpack.c.0.s8 %v4293
        %v4295 = vlaneseq
        %v4296 = vshrl.u32 %v4295, 7
        %v4297 = vsub.s32 %v4294, %v4296
        %v4298 = vrot.slane %v4284, %v4297
        %v4299 = vcombine.low %v4198, %v4206
        %v4300 = vcombine.high %v4198, %v4206
        %v4302 = vunpack.c.l.s4 1983009808
        %v4303 = vunpack.c.0.s8 %v4302
        %v4304 = vlaneseq
        %v4305 = vshrl.u32 %v4304, 7
        %v4306 = vsub.s32 %v4303, %v4305
        %v4307 = vrot.slane %v4299, %v4306
        %v4309 = vunpack.c.l.s4 1983009808
        %v4310 = vunpack.c.0.s8 %v4309
        %v4311 = vlaneseq
        %v4312 = vshrl.u32 %v4311, 7
        %v4313 = vsub.s32 %v4310, %v4312
        %v4314 = vrot.slane %v4300, %v4313
        %v4315 = vcombine.low %v4291, %v4307
        %v4316 = vcombine.high %v4291, %v4307
        %v4318 = vunpack.c.l.s4 1934713408
        %v4319 = vunpack.c.0.s8 %v4318
        %v4320 = vlaneseq
        %v4321 = vshrl.u32 %v4320, 7
        %v4322 = vsub.s32 %v4319, %v4321
        %v4323 = vrot.slane %v4315, %v4322
        %v4325 = vunpack.c.l.s4 1934713408
        %v4326 = vunpack.c.0.s8 %v4325
        %v4327 = vlaneseq
        %v4328 = vshrl.u32 %v4327, 7
        %v4329 = vsub.s32 %v4326, %v4328
        %v4330 = vrot.slane %v4316, %v4329
        %v4331 = vcombine.low %v4298, %v4314
        %v4332 = vcombine.high %v4298, %v4314
        %v4334 = vunpack.c.l.s4 1934713408
        %v4335 = vunpack.c.0.s8 %v4334
        %v4336 = vlaneseq
        %v4337 = vshrl.u32 %v4336, 7
        %v4338 = vsub.s32 %v4335, %v4337
        %v4339 = vrot.slane %v4331, %v4338
        %v4341 = vunpack.c.l.s4 1934713408
        %v4342 = vunpack.c.0.s8 %v4341
        %v4343 = vlaneseq
        %v4344 = vshrl.u32 %v4343, 7
        %v4345 = vsub.s32 %v4342, %v4344
        %v4346 = vrot.slane %v4332, %v4345
        %v4347 = vcombine.high %v4323, 0.0
        %v4348 = vcombine.high %v4330, 0.0
        %v4349 = vcombine.high %v4339, 0.0
        %v4350 = vcombine.high %v4346, 0.0
        %4352 = vrot.lane.b32.xlu0 %v4279, 32
        %v4353 = vpop.permute.xlu0 %4352
        %4356 = vrot.lane.b32.xlu0 %v4262, 64
        %v4357 = vpop.permute.xlu0 %4356
        %4360 = vrot.lane.b32.xlu0 %v4280, 96
        %v4361 = vpop.permute.xlu0 %4360
        %4364 = vrot.lane.b32.xlu0 %v4281, 32
        %v4365 = vpop.permute.xlu0 %4364
        %4368 = vrot.lane.b32.xlu0 %v4278, 64
        %v4369 = vpop.permute.xlu0 %4368
        %4372 = vrot.lane.b32.xlu0 %v4282, 96
        %v4373 = vpop.permute.xlu0 %4372
        %4376 = vrot.lane.b32.xlu0 %v4347, 32
        %v4377 = vpop.permute.xlu0 %4376
        %4380 = vrot.lane.b32.xlu0 %v4330, 64
        %v4381 = vpop.permute.xlu0 %4380
        %4384 = vrot.lane.b32.xlu0 %v4348, 96
        %v4385 = vpop.permute.xlu0 %4384
        %4388 = vrot.lane.b32.xlu0 %v4349, 32
        %v4389 = vpop.permute.xlu0 %4388
        %4392 = vrot.lane.b32.xlu0 %v4346, 64
        %v4393 = vpop.permute.xlu0 %4392
        %4396 = vrot.lane.b32.xlu0 %v4350, 96
        %v4397 = vpop.permute.xlu0 %4396
        %v4399 = vsel %vm571, %v4255, %v4353
        %v4400 = vsel %vm573, %v4399, %v4357
        %v4401 = vsel %vm575, %v4400, %v4361
        %v4402 = vsel %vm571, %v4271, %v4365
        %v4403 = vsel %vm573, %v4402, %v4369
        %v4404 = vsel %vm575, %v4403, %v4373
        %v4405 = vsel %vm571, %v4323, %v4377
        %v4406 = vsel %vm573, %v4405, %v4381
        %v4407 = vsel %vm575, %v4406, %v4385
        %v4408 = vsel %vm571, %v4339, %v4389
        %v4409 = vsel %vm573, %v4408, %v4393
        %v4410 = vsel %vm575, %v4409, %v4397
        %4411 = vst [vmem:[#allocation2 + $0x60] sm:$0xf] %v4401
        %4412 = vst [vmem:[#allocation2 + $0x68] sm:$0xf] %v4404
        %4413 = vst [vmem:[#allocation2 + $0x70] sm:$0xf] %v4407
        %4414 = vst [vmem:[#allocation2 + $0x78] sm:$0xf] %v4410
        %4415 = vrot.lane.b32.xlu0 %v3057, 126
        %v4416 = vpop.permute.xlu0 %4415
        %4417 = vrot.lane.b32.xlu0 %v3059, 126
        %v4418 = vpop.permute.xlu0 %4417
        %4419 = vrot.lane.b32.xlu0 %v3062, 126
        %v4420 = vpop.permute.xlu0 %4419
        %4421 = vrot.lane.b32.xlu0 %v3064, 126
        %v4422 = vpop.permute.xlu0 %4421
        %4423 = vrot.lane.b32.xlu0 %v3067, 126
        %v4424 = vpop.permute.xlu0 %4423
        %4425 = vrot.lane.b32.xlu0 %v3069, 126
        %v4426 = vpop.permute.xlu0 %4425
        %4427 = vrot.lane.b32.xlu0 %v3072, 126
        %v4428 = vpop.permute.xlu0 %4427
        %4429 = vrot.lane.b32.xlu0 %v3074, 126
        %v4430 = vpop.permute.xlu0 %4429
        %v4439 = vcombine.low %v4416, %v4424
        %v4440 = vcombine.high %v4416, %v4424
        %v4442 = vunpack.c.l.s4 1983009808
        %v4443 = vunpack.c.0.s8 %v4442
        %v4444 = vlaneseq
        %v4445 = vshrl.u32 %v4444, 7
        %v4446 = vsub.s32 %v4443, %v4445
        %v4447 = vrot.slane %v4439, %v4446
        %v4449 = vunpack.c.l.s4 1983009808
        %v4450 = vunpack.c.0.s8 %v4449
        %v4451 = vlaneseq
        %v4452 = vshrl.u32 %v4451, 7
        %v4453 = vsub.s32 %v4450, %v4452
        %v4454 = vrot.slane %v4440, %v4453
        %v4455 = vcombine.low %v4420, %v4428
        %v4456 = vcombine.high %v4420, %v4428
        %v4458 = vunpack.c.l.s4 1983009808
        %v4459 = vunpack.c.0.s8 %v4458
        %v4460 = vlaneseq
        %v4461 = vshrl.u32 %v4460, 7
        %v4462 = vsub.s32 %v4459, %v4461
        %v4463 = vrot.slane %v4455, %v4462
        %v4465 = vunpack.c.l.s4 1983009808
        %v4466 = vunpack.c.0.s8 %v4465
        %v4467 = vlaneseq
        %v4468 = vshrl.u32 %v4467, 7
        %v4469 = vsub.s32 %v4466, %v4468
        %v4470 = vrot.slane %v4456, %v4469
        %v4471 = vcombine.low %v4447, %v4463
        %v4472 = vcombine.high %v4447, %v4463
        %v4474 = vunpack.c.l.s4 1934713408
        %v4475 = vunpack.c.0.s8 %v4474
        %v4476 = vlaneseq
        %v4477 = vshrl.u32 %v4476, 7
        %v4478 = vsub.s32 %v4475, %v4477
        %v4479 = vrot.slane %v4471, %v4478
        %v4481 = vunpack.c.l.s4 1934713408
        %v4482 = vunpack.c.0.s8 %v4481
        %v4483 = vlaneseq
        %v4484 = vshrl.u32 %v4483, 7
        %v4485 = vsub.s32 %v4482, %v4484
        %v4486 = vrot.slane %v4472, %v4485
        %v4487 = vcombine.low %v4454, %v4470
        %v4488 = vcombine.high %v4454, %v4470
        %v4490 = vunpack.c.l.s4 1934713408
        %v4491 = vunpack.c.0.s8 %v4490
        %v4492 = vlaneseq
        %v4493 = vshrl.u32 %v4492, 7
        %v4494 = vsub.s32 %v4491, %v4493
        %v4495 = vrot.slane %v4487, %v4494
        %v4497 = vunpack.c.l.s4 1934713408
        %v4498 = vunpack.c.0.s8 %v4497
        %v4499 = vlaneseq
        %v4500 = vshrl.u32 %v4499, 7
        %v4501 = vsub.s32 %v4498, %v4500
        %v4502 = vrot.slane %v4488, %v4501
        %v4503 = vcombine.high %v4479, 0.0
        %v4504 = vcombine.high %v4486, 0.0
        %v4505 = vcombine.high %v4495, 0.0
        %v4506 = vcombine.high %v4502, 0.0
        %v4507 = vcombine.low %v4418, %v4426
        %v4508 = vcombine.high %v4418, %v4426
        %v4510 = vunpack.c.l.s4 1983009808
        %v4511 = vunpack.c.0.s8 %v4510
        %v4512 = vlaneseq
        %v4513 = vshrl.u32 %v4512, 7
        %v4514 = vsub.s32 %v4511, %v4513
        %v4515 = vrot.slane %v4507, %v4514
        %v4517 = vunpack.c.l.s4 1983009808
        %v4518 = vunpack.c.0.s8 %v4517
        %v4519 = vlaneseq
        %v4520 = vshrl.u32 %v4519, 7
        %v4521 = vsub.s32 %v4518, %v4520
        %v4522 = vrot.slane %v4508, %v4521
        %v4523 = vcombine.low %v4422, %v4430
        %v4524 = vcombine.high %v4422, %v4430
        %v4526 = vunpack.c.l.s4 1983009808
        %v4527 = vunpack.c.0.s8 %v4526
        %v4528 = vlaneseq
        %v4529 = vshrl.u32 %v4528, 7
        %v4530 = vsub.s32 %v4527, %v4529
        %v4531 = vrot.slane %v4523, %v4530
        %v4533 = vunpack.c.l.s4 1983009808
        %v4534 = vunpack.c.0.s8 %v4533
        %v4535 = vlaneseq
        %v4536 = vshrl.u32 %v4535, 7
        %v4537 = vsub.s32 %v4534, %v4536
        %v4538 = vrot.slane %v4524, %v4537
        %v4539 = vcombine.low %v4515, %v4531
        %v4540 = vcombine.high %v4515, %v4531
        %v4542 = vunpack.c.l.s4 1934713408
        %v4543 = vunpack.c.0.s8 %v4542
        %v4544 = vlaneseq
        %v4545 = vshrl.u32 %v4544, 7
        %v4546 = vsub.s32 %v4543, %v4545
        %v4547 = vrot.slane %v4539, %v4546
        %v4549 = vunpack.c.l.s4 1934713408
        %v4550 = vunpack.c.0.s8 %v4549
        %v4551 = vlaneseq
        %v4552 = vshrl.u32 %v4551, 7
        %v4553 = vsub.s32 %v4550, %v4552
        %v4554 = vrot.slane %v4540, %v4553
        %v4555 = vcombine.low %v4522, %v4538
        %v4556 = vcombine.high %v4522, %v4538
        %v4558 = vunpack.c.l.s4 1934713408
        %v4559 = vunpack.c.0.s8 %v4558
        %v4560 = vlaneseq
        %v4561 = vshrl.u32 %v4560, 7
        %v4562 = vsub.s32 %v4559, %v4561
        %v4563 = vrot.slane %v4555, %v4562
        %v4565 = vunpack.c.l.s4 1934713408
        %v4566 = vunpack.c.0.s8 %v4565
        %v4567 = vlaneseq
        %v4568 = vshrl.u32 %v4567, 7
        %v4569 = vsub.s32 %v4566, %v4568
        %v4570 = vrot.slane %v4556, %v4569
        %v4571 = vcombine.high %v4547, 0.0
        %v4572 = vcombine.high %v4554, 0.0
        %v4573 = vcombine.high %v4563, 0.0
        %v4574 = vcombine.high %v4570, 0.0
        %4576 = vrot.lane.b32.xlu0 %v4503, 32
        %v4577 = vpop.permute.xlu0 %4576
        %4580 = vrot.lane.b32.xlu0 %v4486, 64
        %v4581 = vpop.permute.xlu0 %4580
        %4584 = vrot.lane.b32.xlu0 %v4504, 96
        %v4585 = vpop.permute.xlu0 %4584
        %4588 = vrot.lane.b32.xlu0 %v4505, 32
        %v4589 = vpop.permute.xlu0 %4588
        %4592 = vrot.lane.b32.xlu0 %v4502, 64
        %v4593 = vpop.permute.xlu0 %4592
        %4596 = vrot.lane.b32.xlu0 %v4506, 96
        %v4597 = vpop.permute.xlu0 %4596
        %4600 = vrot.lane.b32.xlu0 %v4571, 32
        %v4601 = vpop.permute.xlu0 %4600
        %4604 = vrot.lane.b32.xlu0 %v4554, 64
        %v4605 = vpop.permute.xlu0 %4604
        %4608 = vrot.lane.b32.xlu0 %v4572, 96
        %v4609 = vpop.permute.xlu0 %4608
        %4612 = vrot.lane.b32.xlu0 %v4573, 32
        %v4613 = vpop.permute.xlu0 %4612
        %4616 = vrot.lane.b32.xlu0 %v4570, 64
        %v4617 = vpop.permute.xlu0 %4616
        %4620 = vrot.lane.b32.xlu0 %v4574, 96
        %v4621 = vpop.permute.xlu0 %4620
        %v4623 = vsel %vm571, %v4479, %v4577
        %v4624 = vsel %vm573, %v4623, %v4581
        %v4625 = vsel %vm575, %v4624, %v4585
        %v4626 = vsel %vm571, %v4495, %v4589
        %v4627 = vsel %vm573, %v4626, %v4593
        %v4628 = vsel %vm575, %v4627, %v4597
        %v4629 = vsel %vm571, %v4547, %v4601
        %v4630 = vsel %vm573, %v4629, %v4605
        %v4631 = vsel %vm575, %v4630, %v4609
        %v4632 = vsel %vm571, %v4563, %v4613
        %v4633 = vsel %vm573, %v4632, %v4617
        %v4634 = vsel %vm575, %v4633, %v4621
        %v4639 = vrot.slane %v4625, 4
        %v4640 = vrot.slane %v4628, 4
        %v4641 = vrot.slane %v4631, 4
        %v4642 = vrot.slane %v4634, 4
        %4647 = vst [vmem:[#allocation2 + $0x60] sm:$0xf0] %v4639
        %4648 = vst [vmem:[#allocation2 + $0x68] sm:$0xf0] %v4640
        %4649 = vst [vmem:[#allocation2 + $0x70] sm:$0xf0] %v4641
        %4650 = vst [vmem:[#allocation2 + $0x78] sm:$0xf0] %v4642
        %4651 = vrot.lane.b32.xlu0 %v2760, 126
        %v4652 = vpop.permute.xlu0 %4651
        %4653 = vrot.lane.b32.xlu0 %v2765, 126
        %v4654 = vpop.permute.xlu0 %4653
        %4655 = vrot.lane.b32.xlu0 %v2775, 126
        %v4656 = vpop.permute.xlu0 %4655
        %4657 = vrot.lane.b32.xlu0 %v2780, 126
        %v4658 = vpop.permute.xlu0 %4657
        %4659 = vrot.lane.b32.xlu0 %v2790, 126
        %v4660 = vpop.permute.xlu0 %4659
        %4661 = vrot.lane.b32.xlu0 %v2795, 126
        %v4662 = vpop.permute.xlu0 %4661
        %4663 = vrot.lane.b32.xlu0 %v2805, 126
        %v4664 = vpop.permute.xlu0 %4663
        %4665 = vrot.lane.b32.xlu0 %v2810, 126
        %v4666 = vpop.permute.xlu0 %4665
        %v4675 = vcombine.low %v4652, %v4660
        %v4676 = vcombine.high %v4652, %v4660
        %v4678 = vunpack.c.l.s4 1983009808
        %v4679 = vunpack.c.0.s8 %v4678
        %v4680 = vlaneseq
        %v4681 = vshrl.u32 %v4680, 7
        %v4682 = vsub.s32 %v4679, %v4681
        %v4683 = vrot.slane %v4675, %v4682
        %v4685 = vunpack.c.l.s4 1983009808
        %v4686 = vunpack.c.0.s8 %v4685
        %v4687 = vlaneseq
        %v4688 = vshrl.u32 %v4687, 7
        %v4689 = vsub.s32 %v4686, %v4688
        %v4690 = vrot.slane %v4676, %v4689
        %v4691 = vcombine.low %v4656, %v4664
        %v4692 = vcombine.high %v4656, %v4664
        %v4694 = vunpack.c.l.s4 1983009808
        %v4695 = vunpack.c.0.s8 %v4694
        %v4696 = vlaneseq
        %v4697 = vshrl.u32 %v4696, 7
        %v4698 = vsub.s32 %v4695, %v4697
        %v4699 = vrot.slane %v4691, %v4698
        %v4701 = vunpack.c.l.s4 1983009808
        %v4702 = vunpack.c.0.s8 %v4701
        %v4703 = vlaneseq
        %v4704 = vshrl.u32 %v4703, 7
        %v4705 = vsub.s32 %v4702, %v4704
        %v4706 = vrot.slane %v4692, %v4705
        %v4707 = vcombine.low %v4683, %v4699
        %v4708 = vcombine.high %v4683, %v4699
        %v4710 = vunpack.c.l.s4 1934713408
        %v4711 = vunpack.c.0.s8 %v4710
        %v4712 = vlaneseq
        %v4713 = vshrl.u32 %v4712, 7
        %v4714 = vsub.s32 %v4711, %v4713
        %v4715 = vrot.slane %v4707, %v4714
        %v4717 = vunpack.c.l.s4 1934713408
        %v4718 = vunpack.c.0.s8 %v4717
        %v4719 = vlaneseq
        %v4720 = vshrl.u32 %v4719, 7
        %v4721 = vsub.s32 %v4718, %v4720
        %v4722 = vrot.slane %v4708, %v4721
        %v4723 = vcombine.low %v4690, %v4706
        %v4724 = vcombine.high %v4690, %v4706
        %v4726 = vunpack.c.l.s4 1934713408
        %v4727 = vunpack.c.0.s8 %v4726
        %v4728 = vlaneseq
        %v4729 = vshrl.u32 %v4728, 7
        %v4730 = vsub.s32 %v4727, %v4729
        %v4731 = vrot.slane %v4723, %v4730
        %v4733 = vunpack.c.l.s4 1934713408
        %v4734 = vunpack.c.0.s8 %v4733
        %v4735 = vlaneseq
        %v4736 = vshrl.u32 %v4735, 7
        %v4737 = vsub.s32 %v4734, %v4736
        %v4738 = vrot.slane %v4724, %v4737
        %v4739 = vcombine.high %v4715, 0.0
        %v4740 = vcombine.high %v4722, 0.0
        %v4741 = vcombine.high %v4731, 0.0
        %v4742 = vcombine.high %v4738, 0.0
        %v4743 = vcombine.low %v4654, %v4662
        %v4744 = vcombine.high %v4654, %v4662
        %v4746 = vunpack.c.l.s4 1983009808
        %v4747 = vunpack.c.0.s8 %v4746
        %v4748 = vlaneseq
        %v4749 = vshrl.u32 %v4748, 7
        %v4750 = vsub.s32 %v4747, %v4749
        %v4751 = vrot.slane %v4743, %v4750
        %v4753 = vunpack.c.l.s4 1983009808
        %v4754 = vunpack.c.0.s8 %v4753
        %v4755 = vlaneseq
        %v4756 = vshrl.u32 %v4755, 7
        %v4757 = vsub.s32 %v4754, %v4756
        %v4758 = vrot.slane %v4744, %v4757
        %v4759 = vcombine.low %v4658, %v4666
        %v4760 = vcombine.high %v4658, %v4666
        %v4762 = vunpack.c.l.s4 1983009808
        %v4763 = vunpack.c.0.s8 %v4762
        %v4764 = vlaneseq
        %v4765 = vshrl.u32 %v4764, 7
        %v4766 = vsub.s32 %v4763, %v4765
        %v4767 = vrot.slane %v4759, %v4766
        %v4769 = vunpack.c.l.s4 1983009808
        %v4770 = vunpack.c.0.s8 %v4769
        %v4771 = vlaneseq
        %v4772 = vshrl.u32 %v4771, 7
        %v4773 = vsub.s32 %v4770, %v4772
        %v4774 = vrot.slane %v4760, %v4773
        %v4775 = vcombine.low %v4751, %v4767
        %v4776 = vcombine.high %v4751, %v4767
        %v4778 = vunpack.c.l.s4 1934713408
        %v4779 = vunpack.c.0.s8 %v4778
        %v4780 = vlaneseq
        %v4781 = vshrl.u32 %v4780, 7
        %v4782 = vsub.s32 %v4779, %v4781
        %v4783 = vrot.slane %v4775, %v4782
        %v4785 = vunpack.c.l.s4 1934713408
        %v4786 = vunpack.c.0.s8 %v4785
        %v4787 = vlaneseq
        %v4788 = vshrl.u32 %v4787, 7
        %v4789 = vsub.s32 %v4786, %v4788
        %v4790 = vrot.slane %v4776, %v4789
        %v4791 = vcombine.low %v4758, %v4774
        %v4792 = vcombine.high %v4758, %v4774
        %v4794 = vunpack.c.l.s4 1934713408
        %v4795 = vunpack.c.0.s8 %v4794
        %v4796 = vlaneseq
        %v4797 = vshrl.u32 %v4796, 7
        %v4798 = vsub.s32 %v4795, %v4797
        %v4799 = vrot.slane %v4791, %v4798
        %v4801 = vunpack.c.l.s4 1934713408
        %v4802 = vunpack.c.0.s8 %v4801
        %v4803 = vlaneseq
        %v4804 = vshrl.u32 %v4803, 7
        %v4805 = vsub.s32 %v4802, %v4804
        %v4806 = vrot.slane %v4792, %v4805
        %v4807 = vcombine.high %v4783, 0.0
        %v4808 = vcombine.high %v4790, 0.0
        %v4809 = vcombine.high %v4799, 0.0
        %v4810 = vcombine.high %v4806, 0.0
        %4812 = vrot.lane.b32.xlu0 %v4739, 32
        %v4813 = vpop.permute.xlu0 %4812
        %4816 = vrot.lane.b32.xlu0 %v4722, 64
        %v4817 = vpop.permute.xlu0 %4816
        %4820 = vrot.lane.b32.xlu0 %v4740, 96
        %v4821 = vpop.permute.xlu0 %4820
        %4824 = vrot.lane.b32.xlu0 %v4741, 32
        %v4825 = vpop.permute.xlu0 %4824
        %4828 = vrot.lane.b32.xlu0 %v4738, 64
        %v4829 = vpop.permute.xlu0 %4828
        %4832 = vrot.lane.b32.xlu0 %v4742, 96
        %v4833 = vpop.permute.xlu0 %4832
        %4836 = vrot.lane.b32.xlu0 %v4807, 32
        %v4837 = vpop.permute.xlu0 %4836
        %4840 = vrot.lane.b32.xlu0 %v4790, 64
        %v4841 = vpop.permute.xlu0 %4840
        %4844 = vrot.lane.b32.xlu0 %v4808, 96
        %v4845 = vpop.permute.xlu0 %4844
        %4848 = vrot.lane.b32.xlu0 %v4809, 32
        %v4849 = vpop.permute.xlu0 %4848
        %4852 = vrot.lane.b32.xlu0 %v4806, 64
        %v4853 = vpop.permute.xlu0 %4852
        %4856 = vrot.lane.b32.xlu0 %v4810, 96
        %v4857 = vpop.permute.xlu0 %4856
        %v4859 = vsel %vm571, %v4715, %v4813
        %v4860 = vsel %vm573, %v4859, %v4817
        %v4861 = vsel %vm575, %v4860, %v4821
        %v4862 = vsel %vm571, %v4731, %v4825
        %v4863 = vsel %vm573, %v4862, %v4829
        %v4864 = vsel %vm575, %v4863, %v4833
        %v4865 = vsel %vm571, %v4783, %v4837
        %v4866 = vsel %vm573, %v4865, %v4841
        %v4867 = vsel %vm575, %v4866, %v4845
        %v4868 = vsel %vm571, %v4799, %v4849
        %v4869 = vsel %vm573, %v4868, %v4853
        %v4870 = vsel %vm575, %v4869, %v4857
        %4871 = vst [vmem:[#allocation2 + $0x80] sm:$0xf] %v4861
        %4872 = vst [vmem:[#allocation2 + $0x88] sm:$0xf] %v4864
        %4873 = vst [vmem:[#allocation2 + $0x90] sm:$0xf] %v4867
        %4874 = vst [vmem:[#allocation2 + $0x98] sm:$0xf] %v4870
        %v4875 = vld [vmem:[#allocation2] sm:$0xff]
        %v4876 = vld [vmem:[#allocation2 + $0x8] sm:$0xff]
        %v4877 = vld [vmem:[#allocation2 + $0x10] sm:$0xff]
        %v4878 = vld [vmem:[#allocation2 + $0x18] sm:$0xff]
        %v4879 = vld [vmem:[#allocation2 + $0x20] sm:$0xff]
        %v4880 = vld [vmem:[#allocation2 + $0x28] sm:$0xff]
        %v4881 = vld [vmem:[#allocation2 + $0x30] sm:$0xff]
        %v4882 = vld [vmem:[#allocation2 + $0x38] sm:$0xff]
        %v4883 = vld [vmem:[#allocation2 + $0x40] sm:$0xff]
        %v4884 = vld [vmem:[#allocation2 + $0x48] sm:$0xff]
        %v4885 = vld [vmem:[#allocation2 + $0x50] sm:$0xff]
        %v4886 = vld [vmem:[#allocation2 + $0x58] sm:$0xff]
        %v4887 = vld [vmem:[#allocation2 + $0x60] sm:$0xff]
        %v4888 = vld [vmem:[#allocation2 + $0x68] sm:$0xff]
        %v4889 = vld [vmem:[#allocation2 + $0x70] sm:$0xff]
        %v4890 = vld [vmem:[#allocation2 + $0x78] sm:$0xff]
        %v4891 = vld [vmem:[#allocation2 + $0x80] sm:$0xff]
        %v4892 = vld [vmem:[#allocation2 + $0x88] sm:$0xff]
        %v4893 = vld [vmem:[#allocation2 + $0x90] sm:$0xff]
        %v4894 = vld [vmem:[#allocation2 + $0x98] sm:$0xff]
        %4895 = vmatprep.subr.mxu0 0.0
        %4896 = vmatpush1.msra.mxu0 0.0
        %4897 = vmatprep.subr.mxu0 0.0
        %4898 = vmatpush1.msra.mxu0 0.0
        %4899 = vmatprep.subr.mxu0 0.0
        %4900 = vmatpush1.msra.mxu0 0.0
        %4901 = vmatprep.subr.mxu0 0.0
        %4902 = vmatpush1.msra.mxu0 0.0
        %4903 = vmatprep.subr.mxu0 0.0
        %4904 = vmatpush1.msra.mxu0 0.0
        %4905 = vmatprep.subr.mxu0 0.0
        %4906 = vmatpush1.msra.mxu0 0.0
        %4907 = vmatprep.subr.mxu0 0.0
        %4908 = vmatpush1.msra.mxu0 0.0
        %4909 = vmatprep.subr.mxu0 0.0
        %4910 = vmatpush1.msra.mxu0 0.0
        %4911 = vmatprep.subr.mxu0 0.0
        %4912 = vmatpush1.msra.mxu0 0.0
        %4913 = vmatprep.subr.mxu0 0.0
        %4914 = vmatpush1.msra.mxu0 0.0
        %4915 = vmatprep.subr.mxu0 0.0
        %4916 = vmatpush1.msra.mxu0 0.0
        %4917 = vmatprep.subr.mxu0 %v4892
        %4918 = vmatpush1.msra.mxu0 %v4891
        %4919 = vmatprep.subr.mxu0 %v4888
        %4920 = vmatpush1.msra.mxu0 %v4887
        %4921 = vmatprep.subr.mxu0 %v4884
        %4922 = vmatpush1.msra.mxu0 %v4883
        %4923 = vmatprep.subr.mxu0 %v4880
        %4924 = vmatpush1.msra.mxu0 %v4879
        %4925 = vmatprep.subr.mxu0 %v4876
        %4926 = vmatpush1.msra.mxu0 %v4875
        %4927 = vmatprep.subr.mxu0 0.0
        %4928 = vmatpush2.msra.mxu0 0.0
        %4929 = vmatprep.subr.mxu0 0.0
        %4930 = vmatpush2.msra.mxu0 0.0
        %4931 = vmatprep.subr.mxu0 0.0
        %4932 = vmatpush2.msra.mxu0 0.0
        %4933 = vmatprep.subr.mxu0 0.0
        %4934 = vmatpush2.msra.mxu0 0.0
        %4935 = vmatprep.subr.mxu0 0.0
        %4936 = vmatpush2.msra.mxu0 0.0
        %4937 = vmatprep.subr.mxu0 0.0
        %4938 = vmatpush2.msra.mxu0 0.0
        %4939 = vmatprep.subr.mxu0 0.0
        %4940 = vmatpush2.msra.mxu0 0.0
        %4941 = vmatprep.subr.mxu0 0.0
        %4942 = vmatpush2.msra.mxu0 0.0
        %4943 = vmatprep.subr.mxu0 0.0
        %4944 = vmatpush2.msra.mxu0 0.0
        %4945 = vmatprep.subr.mxu0 0.0
        %4946 = vmatpush2.msra.mxu0 0.0
        %4947 = vmatprep.subr.mxu0 0.0
        %4948 = vmatpush2.msra.mxu0 0.0
        %4949 = vmatprep.subr.mxu0 0.0
        %4950 = vmatpush2.msra.mxu0 0.0
        %4951 = vmatprep.subr.mxu0 0.0
        %4952 = vmatpush2.msra.mxu0 0.0
        %4953 = vmatprep.subr.mxu0 0.0
        %4954 = vmatpush2.msra.mxu0 0.0
        %4955 = vmatprep.subr.mxu0 0.0
        %4956 = vmatpush2.msra.mxu0 0.0
        %4957 = vmatprep.subr.mxu0 0.0
        %4958 = vmatpush2.msra.mxu0 0.0
        %4959 = vmatprep.mubr.f32.mxu0 0.0
        %4960 = vmatmul.mubr.f32.gmra.mxu0 %v2474
        %v4961 = vpop.f32.mrf.mxu0
        %v4962 = vadd.f32 0.0, %v4961
        %v4963 = vpop.f32.mrf.mxu0
        %v4964 = vadd.f32 0.0, %v4963
        %4965 = vdwg.mxu0
        %4966 = vmatprep.subr.mxu0 0.0
        %4967 = vmatpush1.msra.mxu0 0.0
        %4968 = vmatprep.subr.mxu0 0.0
        %4969 = vmatpush1.msra.mxu0 0.0
        %4970 = vmatprep.subr.mxu0 0.0
        %4971 = vmatpush1.msra.mxu0 0.0
        %4972 = vmatprep.subr.mxu0 0.0
        %4973 = vmatpush1.msra.mxu0 0.0
        %4974 = vmatprep.subr.mxu0 0.0
        %4975 = vmatpush1.msra.mxu0 0.0
        %4976 = vmatprep.subr.mxu0 0.0
        %4977 = vmatpush1.msra.mxu0 0.0
        %4978 = vmatprep.subr.mxu0 0.0
        %4979 = vmatpush1.msra.mxu0 0.0
        %4980 = vmatprep.subr.mxu0 0.0
        %4981 = vmatpush1.msra.mxu0 0.0
        %4982 = vmatprep.subr.mxu0 0.0
        %4983 = vmatpush1.msra.mxu0 0.0
        %4984 = vmatprep.subr.mxu0 0.0
        %4985 = vmatpush1.msra.mxu0 0.0
        %4986 = vmatprep.subr.mxu0 0.0
        %4987 = vmatpush1.msra.mxu0 0.0
        %4988 = vmatprep.subr.mxu0 %v4894
        %4989 = vmatpush1.msra.mxu0 %v4893
        %4990 = vmatprep.subr.mxu0 %v4890
        %4991 = vmatpush1.msra.mxu0 %v4889
        %4992 = vmatprep.subr.mxu0 %v4886
        %4993 = vmatpush1.msra.mxu0 %v4885
        %4994 = vmatprep.subr.mxu0 %v4882
        %4995 = vmatpush1.msra.mxu0 %v4881
        %4996 = vmatprep.subr.mxu0 %v4878
        %4997 = vmatpush1.msra.mxu0 %v4877
        %4998 = vmatprep.subr.mxu0 0.0
        %4999 = vmatpush2.msra.mxu0 0.0
        %5000 = vmatprep.subr.mxu0 0.0
        %5001 = vmatpush2.msra.mxu0 0.0
        %5002 = vmatprep.subr.mxu0 0.0
        %5003 = vmatpush2.msra.mxu0 0.0
        %5004 = vmatprep.subr.mxu0 0.0
        %5005 = vmatpush2.msra.mxu0 0.0
        %5006 = vmatprep.subr.mxu0 0.0
        %5007 = vmatpush2.msra.mxu0 0.0
        %5008 = vmatprep.subr.mxu0 0.0
        %5009 = vmatpush2.msra.mxu0 0.0
        %5010 = vmatprep.subr.mxu0 0.0
        %5011 = vmatpush2.msra.mxu0 0.0
        %5012 = vmatprep.subr.mxu0 0.0
        %5013 = vmatpush2.msra.mxu0 0.0
        %5014 = vmatprep.subr.mxu0 0.0
        %5015 = vmatpush2.msra.mxu0 0.0
        %5016 = vmatprep.subr.mxu0 0.0
        %5017 = vmatpush2.msra.mxu0 0.0
        %5018 = vmatprep.subr.mxu0 0.0
        %5019 = vmatpush2.msra.mxu0 0.0
        %5020 = vmatprep.subr.mxu0 0.0
        %5021 = vmatpush2.msra.mxu0 0.0
        %5022 = vmatprep.subr.mxu0 0.0
        %5023 = vmatpush2.msra.mxu0 0.0
        %5024 = vmatprep.subr.mxu0 0.0
        %5025 = vmatpush2.msra.mxu0 0.0
        %5026 = vmatprep.subr.mxu0 0.0
        %5027 = vmatpush2.msra.mxu0 0.0
        %5028 = vmatprep.subr.mxu0 0.0
        %5029 = vmatpush2.msra.mxu0 0.0
        %5030 = vmatprep.mubr.f32.mxu0 0.0
        %5031 = vmatmul.mubr.f32.gmra.mxu0 %v2474
        %v5032 = vpop.f32.mrf.mxu0
        %v5033 = vadd.f32 0.0, %v5032
        %v5034 = vpop.f32.mrf.mxu0
        %v5035 = vadd.f32 0.0, %v5034
        %5036 = vdwg.mxu0
        %v5037 = vadd.f32 %v4962, %v4964
        %v5038 = vadd.f32 %v5037, %v5033
        %v5039 = vadd.f32 %v5038, %v5035
        %5040 = vadd.xlane.f32.xlu0 %v5039
        %v5041 = vpop.xlane.xlu0 %5040
        %v5042 = vadd.f32 %v2623, %v5041
        %v5043 = vmul.f32 %v4962, %v4962
        %v5044 = vmul.f32 %v4964, %v4964
        %v5045 = vmul.f32 %v5033, %v5033
        %v5046 = vmul.f32 %v5035, %v5035
        %v5047 = vadd.f32 %v5043, %v5044
        %v5048 = vadd.f32 %v5047, %v5045
        %v5049 = vadd.f32 %v5048, %v5046
        %5050 = vadd.xlane.f32.xlu0 %v5049
        %v5051 = vpop.xlane.xlu0 %5050
        %v5052 = vadd.f32 %v2633, %v5051
        %5053 = vst [vmem:[%s190 + $0x20] sm:$0xff] %v4962
        %5054 = vst [vmem:[%s190 + $0x28] sm:$0xff] %v4964
        %5055 = vst [vmem:[%s190 + $0x30] sm:$0xff] %v5033
        %5056 = vst [vmem:[%s190 + $0x38] sm:$0xff] %v5035
        %v5057 = vmul.f32 %v5042, 0.0009765625
        %v5058 = vmul.f32 %v5052, 0.0009765625
        %v5059 = vmul.f32 %v5057, %v5057
        %v5060 = vsub.f32 %v5058, %v5059
        %v5061 = vmax.f32 %v5060, 0.0
        %v5062 = vadd.f32 %v5061, 1e-05
        %v5063 = vrsqrt.pop %v5062
        %v5064 = vmul.f32 %v208, %v5063
        %v5065 = vmul.f32 %v5057, %v5064
        %v5066 = vsub.f32 %v210, %v5065
        %v5067 = vld [vmem:[%s190] sm:$0xff]
        %v5068 = vld [vmem:[%s190 + $0x8] sm:$0xff]
        %v5069 = vld [vmem:[%s190 + $0x10] sm:$0xff]
        %v5070 = vld [vmem:[%s190 + $0x18] sm:$0xff]
        %5072 = vset.pattern.permute.xlu0 0
        %5073 = vperm.xlu0 %5072, %v5064
        %v5074 = vpop.permute.xlu0 %5073
        %v5076 = vmul.f32 %v5067, %v5074
        %v5077 = vmul.f32 %v5068, %v5074
        %v5078 = vmul.f32 %v5069, %v5074
        %v5079 = vmul.f32 %v5070, %v5074
        %5081 = vset.pattern.permute.xlu0 0
        %5082 = vperm.xlu0 %5081, %v5066
        %v5083 = vpop.permute.xlu0 %5082
        %v5085 = vadd.f32 %v5076, %v5083
        %v5086 = vadd.f32 %v5077, %v5083
        %v5087 = vadd.f32 %v5078, %v5083
        %v5088 = vadd.f32 %v5079, %v5083
        %5089 = vst [vmem:[%s190] sm:$0xff] %v5085
        %5090 = vst [vmem:[%s190 + $0x8] sm:$0xff] %v5086
        %5091 = vst [vmem:[%s190 + $0x10] sm:$0xff] %v5087
        %5092 = vst [vmem:[%s190 + $0x18] sm:$0xff] %v5088
        %v5093 = vld [vmem:[%s190 + $0x20] sm:$0xff]
        %v5094 = vld [vmem:[%s190 + $0x28] sm:$0xff]
        %v5095 = vld [vmem:[%s190 + $0x30] sm:$0xff]
        %v5096 = vld [vmem:[%s190 + $0x38] sm:$0xff]
        %v5097 = vmul.f32 %v5093, %v5074
        %v5098 = vmul.f32 %v5094, %v5074
        %v5099 = vmul.f32 %v5095, %v5074
        %v5100 = vmul.f32 %v5096, %v5074
        %v5101 = vadd.f32 %v5097, %v5083
        %v5102 = vadd.f32 %v5098, %v5083
        %v5103 = vadd.f32 %v5099, %v5083
        %v5104 = vadd.f32 %v5100, %v5083
        %5105 = vst [vmem:[%s190 + $0x20] sm:$0xff] %v5101
        %5106 = vst [vmem:[%s190 + $0x28] sm:$0xff] %v5102
        %5107 = vst [vmem:[%s190 + $0x30] sm:$0xff] %v5103
        %5108 = vst [vmem:[%s190 + $0x38] sm:$0xff] %v5104
        %s5109 = sand.u32 %s115, 1
        %s5110 = scalar_lea.sflag [#allocation4], %s5109
        %s5111 = sand.u32 %s115, 1
        %s5112 = smul.addr %s5111, 64
        %s5113 = scalar_lea.vmem [#allocation3], %s5112
        // Predicated region
        $region37: #{tpu_custom_call.1} parent=35 // pred_check
          %p5114 = pneg %p125
        $region38: #{tpu_custom_call.1} parent=35 // pred_check_branch
          %5116 = sbr.rel (%p5114) target = $region40
        $region39: #{tpu_custom_call.1} parent=35 // pred_region
          %s5118 = ssub.s32 1024, 1024
          %5119 = vsyncadd %s5110, %s5118
          %s5120 = smul.addr %s18, 8
          %s5121 = smul.addr %s5120, 128
          %s5122 = scalar_lea.hbm %s4, %s5121
          %s5124 = sshll.u32 %s5113, 4
          %s5125 = int_to_ptr.vmem [resolvable:$true] %s5124
          %5127 = dma.vmem_to_hbm [thread:$0]  %s5125, 1024, %s5122, %s5110
        $region40: #{tpu_custom_call.1} parent=35 // pred_fallthru
          _
      $region36: #{tpu_custom_call.1} parent=5 // pred_fallthru
        _
      %p5128 = scmp.le.s32.totalorder 2, %s13
      // Predicated region
      $region41: #{tpu_custom_call.1} parent=5 // pred_check
        %p5129 = pneg %p5128
      $region42: #{tpu_custom_call.1} parent=5 // pred_check_branch
        %5131 = sbr.rel (%p5129) target = $region44
      $region43: #{tpu_custom_call.1} parent=5 // pred_region
        %s5132 = ssub.s32 %s13, 2
        // Predicated region
        $region45: #{tpu_custom_call.1} parent=43 // pred_check
          %p5133 = pneg %p131
        $region46: #{tpu_custom_call.1} parent=43 // pred_check_branch
          %5135 = sbr.rel (%p5133) target = $region48
        $region47: #{tpu_custom_call.1} parent=43 // pred_region
          %s5136 = sand.u32 %s116, 1
          %s5137 = scalar_lea.sflag [#allocation4], %s5136
          %s5138 = sand.u32 %s116, 1
          %s5139 = smul.addr %s5138, 64
          %s5140 = scalar_lea.vmem [#allocation3], %s5139
          %5141 = dma.done %s5137, 1024
        $region48: #{tpu_custom_call.1} parent=43 // pred_fallthru
          _
      $region44: #{tpu_custom_call.1} parent=5 // pred_fallthru
        _
    $region6: #{tpu_custom_call.1} parent=1 // loop_footer
      %s17 = sadd.s32 1, %s13
    $region7: #{tpu_custom_call.1} parent=1 // loop_footer_branch
      %12 = sbr.rel target = $region3
    $region8: #{tpu_custom_call.1} parent=1 // loop_exit
      _
    %5142 = vsyncpa [#allocation4], 1
    %s5143 = scalar_lea.sflag [#allocation4], 1
    %5144 = vsyncpa %s5143, 1

</llo_original>
